<compile_context>
chip_gen: v5e
topology: v5e:2x2
jax: 0.10.0
libtpu: 0.0.40
codegen_flags: <defaults>
</compile_context>

<pallas_src>
import numpy as np
import jax
import jax.numpy as jnp
from jax.experimental import pallas as pl
from jax.experimental.pallas import tpu as pltpu

_LANE = 128
_SUBLANE = 8


def _round_up(x, m):
    return ((x + m - 1) // m) * m


def _gan_forward_kernel(x_real_ref, z_ref,
                        gw1_ref, gb1_ref, gw2_ref, gb2_ref,
                        dw1_ref, db1_ref, dw2_ref, db2_ref,
                        out_ref):
    """Fused generator + discriminator pass for one batch tile.

    Tile shapes (TN = batch tile, D = image dim, Hp = 128-padded hidden):
      x_real (TN, D) f32, z (TN, D) f32
      gw1 (D, Hp) bf16, gb1 (1, Hp) f32, gw2 (Hp, D) bf16, gb2 (1, D) f32
      dw1 (D, Hp) bf16, db1 (1, Hp) f32, dw2 (1, Hp) f32 row, db2 (1, 1) SMEM
      out (TN, 128) f32: column 0 = d_real, column 1 = d_gen
    """
    bf16 = jnp.bfloat16

    # ----- generator: x_gen = relu(z @ gw1 + gb1) @ gw2 + gb2 --------------
    h = jnp.dot(z_ref[...].astype(bf16), gw1_ref[...],
                preferred_element_type=jnp.float32) + gb1_ref[...]
    h = jnp.maximum(h, 0.0)
    x_gen = jnp.dot(h.astype(bf16), gw2_ref[...],
                    preferred_element_type=jnp.float32) + gb2_ref[...]

    # ----- discriminator (shared resident weights, two dis1 dots) ----------
    dw1 = dw1_ref[...]
    db1 = db1_ref[...]
    dw2 = dw2_ref[...]          # (1, Hp) f32 row
    db2 = db2_ref[0, 0]         # scalar from SMEM

    def discriminate(x_bf16):
        hd = jnp.dot(x_bf16, dw1, preferred_element_type=jnp.float32) + db1
        hd = jnp.maximum(hd, 0.0)                                   # (TN, Hp)
        # dis2 (Hp -> 1): VPU multiply + XLU lane reduce (no 1-col MXU pass).
        logit = jnp.sum(hd * dw2, axis=-1, keepdims=True) + db2     # (TN, 1)
        return jax.nn.sigmoid(logit)

    d_real = discriminate(x_real_ref[...].astype(bf16))             # (TN, 1)
    d_gen = discriminate(x_gen.astype(bf16))                        # (TN, 1)

    # Lane-dense (TN, 128) write: unmasked full-vreg stores.
    col = jax.lax.broadcasted_iota(jnp.int32, out_ref.shape, dimension=1)
    out_ref[...] = jnp.where(col == 0, d_real,
                             jnp.where(col == 1, d_gen, 0.0))


def _pad_params(params, hidden_pad):
    """Zero-pad hidden dim (H=300) to hidden_pad; cast matmul weights to bf16."""
    gw1, gb1, gw2, gb2, dw1, db1, dw2, db2 = params
    H = gw1.shape[1]
    ph = hidden_pad - H
    gw1_p = jnp.pad(gw1, ((0, 0), (0, ph))).astype(jnp.bfloat16)   # (M, Hp)
    gb1_p = jnp.pad(gb1, ((0, 0), (0, ph)))                        # (1, Hp) f32
    gw2_p = jnp.pad(gw2, ((0, ph), (0, 0))).astype(jnp.bfloat16)   # (Hp, D)
    dw1_p = jnp.pad(dw1, ((0, 0), (0, ph))).astype(jnp.bfloat16)   # (D, Hp)
    db1_p = jnp.pad(db1, ((0, 0), (0, ph)))                        # (1, Hp) f32
    dw2_row = jnp.pad(dw2.T, ((0, 0), (0, ph)))                    # (1, Hp) f32
    return gw1_p, gb1_p, gw2_p, gb2, dw1_p, db1_p, dw2_row, db2


def gan_forward(x_real, z, params, *, block_n=512):
    """Pallas wrapper: (x_real, z, params) -> (d_real, d_gen), each (N, 1)."""
    N, D = x_real.shape
    assert z.shape == (N, D), "generate() samples z with self.D, so M must equal D"
    H = params[0].shape[1]
    Hp = _round_up(H, _LANE)

    # Batch tiling: pick the tile count first so a batch slightly above the
    # max tile size does not ~double the padded work, then round the tile to
    # a sublane multiple.  Use >= 2 tiles when possible so the "parallel"
    # batch axis feeds both TensorCores on v7x (near-free on 1-TC chips).
    tn_max = max(_SUBLANE, _round_up(min(block_n, N), _SUBLANE))
    n_tiles = pl.cdiv(N, tn_max)
    if N > _SUBLANE:
        n_tiles = max(n_tiles, 2)
    TN = _round_up(pl.cdiv(N, n_tiles), _SUBLANE)
    N_pad = n_tiles * TN

    if N_pad != N:
        pad = ((0, N_pad - N), (0, 0))
        x_real = jnp.pad(x_real, pad)
        z = jnp.pad(z, pad)

    gw1, gb1, gw2, gb2, dw1, db1, dw2_row, db2 = _pad_params(params, Hp)

    def run(single_buffer):
        def resident(shape):
            # Constant index_map -> the block never changes across grid steps;
            # single-buffer it to halve its VMEM footprint.
            if single_buffer and hasattr(pl, "Buffered"):
                return pl.BlockSpec(shape, lambda i: (0, 0),
                                    pipeline_mode=pl.Buffered(1))
            return pl.BlockSpec(shape, lambda i: (0, 0))

        row_spec = pl.BlockSpec((TN, D), lambda i: (i, 0))
        return pl.pallas_call(
            _gan_forward_kernel,
            out_shape=jax.ShapeDtypeStruct((N_pad, _LANE), jnp.float32),
            grid=(N_pad // TN,),
            in_specs=[
                row_spec,                    # x_real tile (f32)
                row_spec,                    # z tile      (f32)
                resident((D, Hp)),           # gen1 weight (bf16)
                resident((1, Hp)),           # gen1 bias   (f32)
                resident((Hp, D)),           # gen2 weight (bf16)
                resident((1, D)),            # gen2 bias   (f32)
                resident((D, Hp)),           # dis1 weight (bf16)
                resident((1, Hp)),           # dis1 bias   (f32)
                resident((1, Hp)),           # dis2 weight row (f32)
                pl.BlockSpec(memory_space=pltpu.MemorySpace.SMEM),  # dis2 bias
            ],
            out_specs=pl.BlockSpec((TN, _LANE), lambda i: (i, 0)),
            compiler_params=pltpu.CompilerParams(
                dimension_semantics=("parallel",),
                vmem_limit_bytes=48 * 1024 * 1024),
        )(x_real, z, gw1, gb1, gw2, gb2, dw1, db1, dw2_row, db2)

    try:
        out = run(single_buffer=True)
        jax.block_until_ready(out)
    except Exception:
        # Fallback if this JAX version rejects pipeline_mode=pl.Buffered(1).
        out = run(single_buffer=False)

    d_real = out[:N, 0:1]
    d_gen = out[:N, 1:2]
    return d_real, d_gen


def init_linear(key, in_features, out_features):
    """Deterministic PyTorch-style nn.Linear init; returns (W^T, b_row)."""
    k = 1.0 / np.sqrt(in_features)
    kw, kb = jax.random.split(key)
    # PyTorch weight is (out, in); we store the transpose (in, out).
    w_t = jax.random.uniform(kw, (in_features, out_features), jnp.float32, -k, k)
    b = jax.random.uniform(kb, (1, out_features), jnp.float32, -k, k)
    return w_t, b


def reference_forward(x_real, z, params):
    """Pure-JAX f32 reference for correctness checking (unpadded params)."""
    gw1, gb1, gw2, gb2, dw1, db1, dw2, db2 = params
    h = jnp.maximum(z @ gw1 + gb1, 0.0)
    x_gen = h @ gw2 + gb2

    def disc(x):
        hd = jnp.maximum(x @ dw1 + db1, 0.0)
        return jax.nn.sigmoid(hd @ dw2 + db2)

    return disc(x_real), disc(x_gen)


if __name__ == "__main__":
    # Small, module-consistent shapes.  The real module uses D = 32*32 = 1024;
    # here D = 256, latent M = D (generate() samples z with self.D), hidden
    # H = 300 exactly as in the module.  N = 12 exercises the multi-tile path
    # (2 grid steps) and batch padding.
    N = 12         # batch
    D = 256        # flattened image features
    M = D          # latent dim (must equal D per the original generate())
    H = 300        # hidden width of gen1/dis1

    key = jax.random.PRNGKey(0)
    k_x, k_z, k_g1, k_g2, k_d1, k_d2 = jax.random.split(key, 6)

    # Deterministic parameter init (synthetic, no checkpoint).
    gw1, gb1 = init_linear(k_g1, M, H)   # gen1: Linear(M, 300)
    gw2, gb2 = init_linear(k_g2, H, D)   # gen2: Linear(300, D)
    dw1, db1 = init_linear(k_d1, D, H)   # dis1: Linear(D, 300)
    dw2, db2 = init_linear(k_d2, H, 1)   # dis2: Linear(300, 1)
    params = (gw1, gb1, gw2, gb2, dw1, db1, dw2, db2)

    # Inputs.  z = torch.randn((N, D)) in the module; the random draw itself
    # is glue and is done with jax.random here (deterministic seed).
    x_real = jax.random.normal(k_x, (N, D), jnp.float32)
    z = jax.random.normal(k_z, (N, M), jnp.float32)

    d_real, d_gen = gan_forward(x_real, z, params)
    jax.block_until_ready((d_real, d_gen))

    # Correctness check against a pure-JAX f32 reference (kernel uses bf16
    # MXU operands with f32 accumulation -> loosened tolerance).
    ref_real, ref_gen = reference_forward(x_real, z, params)
    np.testing.assert_allclose(np.asarray(d_real), np.asarray(ref_real),
                               rtol=2e-2, atol=2e-2)
    np.testing.assert_allclose(np.asarray(d_gen), np.asarray(ref_gen),
                               rtol=2e-2, atol=2e-2)
    assert d_real.shape == (N, 1) and d_gen.shape == (N, 1)

    print("KERNEL_OK")
</pallas_src>

<mosaic_0001>
module attributes {stable_mosaic.version = 11 : i64} {
  func.func @_gan_forward_kernel(%arg0: i32, %arg1: memref<8x256xf32, #tpu.memory_space<vmem>>, %arg2: memref<8x256xf32, #tpu.memory_space<vmem>>, %arg3: memref<256x384xbf16, #tpu.memory_space<vmem>>, %arg4: memref<1x384xf32, #tpu.memory_space<vmem>>, %arg5: memref<384x256xbf16, #tpu.memory_space<vmem>>, %arg6: memref<1x256xf32, #tpu.memory_space<vmem>>, %arg7: memref<256x384xbf16, #tpu.memory_space<vmem>>, %arg8: memref<1x384xf32, #tpu.memory_space<vmem>>, %arg9: memref<1x384xf32, #tpu.memory_space<vmem>>, %arg10: memref<1x1xf32, #tpu.memory_space<smem>>, %arg11: memref<8x128xf32, #tpu.memory_space<vmem>>) attributes {dimension_semantics = [#tpu.dimension_semantics<parallel>], iteration_bounds = array<i64: 2>, scalar_prefetch = 0 : i64, scratch_operands = 0 : i64, tpu.core_type = #tpu.core_type<tc>, window_params = [{transform_indices = @transform_0, window_bounds = array<i64: 8, 256>}, {transform_indices = @transform_1, window_bounds = array<i64: 8, 256>}, {pipeline_mode = #tpu.pipeline_mode<synchronous>, transform_indices = @transform_2, window_bounds = array<i64: 256, 384>}, {pipeline_mode = #tpu.pipeline_mode<synchronous>, transform_indices = @transform_3, window_bounds = array<i64: 1, 384>}, {pipeline_mode = #tpu.pipeline_mode<synchronous>, transform_indices = @transform_4, window_bounds = array<i64: 384, 256>}, {pipeline_mode = #tpu.pipeline_mode<synchronous>, transform_indices = @transform_5, window_bounds = array<i64: 1, 256>}, {pipeline_mode = #tpu.pipeline_mode<synchronous>, transform_indices = @transform_6, window_bounds = array<i64: 256, 384>}, {pipeline_mode = #tpu.pipeline_mode<synchronous>, transform_indices = @transform_7, window_bounds = array<i64: 1, 384>}, {pipeline_mode = #tpu.pipeline_mode<synchronous>, transform_indices = @transform_8, window_bounds = array<i64: 1, 384>}, {transform_indices = @transform_9, window_bounds = array<i64: 1, 1>}, {transform_indices = @transform_10, window_bounds = array<i64: 8, 128>}]} {
    %c0 = arith.constant 0 : index
    %c0_0 = arith.constant 0 : index
    %0 = vector.load %arg2[%c0, %c0_0] : memref<8x256xf32, #tpu.memory_space<vmem>>, vector<8x256xf32>
    %1 = arith.truncf %0 : vector<8x256xf32> to vector<8x256xbf16>
    %c0_1 = arith.constant 0 : index
    %c0_2 = arith.constant 0 : index
    %2 = vector.load %arg3[%c0_1, %c0_2] : memref<256x384xbf16, #tpu.memory_space<vmem>>, vector<256x384xbf16>
    %cst = arith.constant dense<0.000000e+00> : vector<8x384xf32>
    %3 = tpu.matmul %1, %2, %cst {dimension_numbers = #tpu.dot_dimension_numbers<[1], [0], [0], [1], [0, 0, 1, 1], [], []>} : vector<8x256xbf16>, vector<256x384xbf16>, vector<8x384xf32> -> vector<8x384xf32>
    %c0_3 = arith.constant 0 : index
    %c0_4 = arith.constant 0 : index
    %4 = vector.load %arg4[%c0_3, %c0_4] : memref<1x384xf32, #tpu.memory_space<vmem>>, vector<1x384xf32>
    %5 = vector.broadcast %4 : vector<1x384xf32> to vector<8x384xf32>
    %6 = arith.addf %3, %5 : vector<8x384xf32>
    %cst_5 = arith.constant 0.000000e+00 : f32
    %7 = vector.broadcast %cst_5 : f32 to vector<8x384xf32>
    %8 = arith.maximumf %6, %7 : vector<8x384xf32>
    %9 = arith.truncf %8 : vector<8x384xf32> to vector<8x384xbf16>
    %c0_6 = arith.constant 0 : index
    %c0_7 = arith.constant 0 : index
    %10 = vector.load %arg5[%c0_6, %c0_7] : memref<384x256xbf16, #tpu.memory_space<vmem>>, vector<384x256xbf16>
    %cst_8 = arith.constant dense<0.000000e+00> : vector<8x256xf32>
    %11 = tpu.matmul %9, %10, %cst_8 {dimension_numbers = #tpu.dot_dimension_numbers<[1], [0], [0], [1], [0, 0, 1, 1], [], []>} : vector<8x384xbf16>, vector<384x256xbf16>, vector<8x256xf32> -> vector<8x256xf32>
    %c0_9 = arith.constant 0 : index
    %c0_10 = arith.constant 0 : index
    %12 = vector.load %arg6[%c0_9, %c0_10] : memref<1x256xf32, #tpu.memory_space<vmem>>, vector<1x256xf32>
    %13 = vector.broadcast %12 : vector<1x256xf32> to vector<8x256xf32>
    %14 = arith.addf %11, %13 : vector<8x256xf32>
    %c0_11 = arith.constant 0 : index
    %c0_12 = arith.constant 0 : index
    %15 = vector.load %arg7[%c0_11, %c0_12] : memref<256x384xbf16, #tpu.memory_space<vmem>>, vector<256x384xbf16>
    %c0_13 = arith.constant 0 : index
    %c0_14 = arith.constant 0 : index
    %16 = vector.load %arg8[%c0_13, %c0_14] : memref<1x384xf32, #tpu.memory_space<vmem>>, vector<1x384xf32>
    %c0_15 = arith.constant 0 : index
    %c0_16 = arith.constant 0 : index
    %17 = vector.load %arg9[%c0_15, %c0_16] : memref<1x384xf32, #tpu.memory_space<vmem>>, vector<1x384xf32>
    %c0_17 = arith.constant 0 : index
    %c0_18 = arith.constant 0 : index
    %18 = memref.load %arg10[%c0_17, %c0_18] : memref<1x1xf32, #tpu.memory_space<smem>>
    %c0_19 = arith.constant 0 : index
    %c0_20 = arith.constant 0 : index
    %19 = vector.load %arg1[%c0_19, %c0_20] : memref<8x256xf32, #tpu.memory_space<vmem>>, vector<8x256xf32>
    %20 = arith.truncf %19 : vector<8x256xf32> to vector<8x256xbf16>
    %cst_21 = arith.constant dense<0.000000e+00> : vector<8x384xf32>
    %21 = tpu.matmul %20, %15, %cst_21 {dimension_numbers = #tpu.dot_dimension_numbers<[1], [0], [0], [1], [0, 0, 1, 1], [], []>} : vector<8x256xbf16>, vector<256x384xbf16>, vector<8x384xf32> -> vector<8x384xf32>
    %22 = vector.broadcast %16 : vector<1x384xf32> to vector<8x384xf32>
    %23 = arith.addf %21, %22 : vector<8x384xf32>
    %cst_22 = arith.constant 0.000000e+00 : f32
    %24 = vector.broadcast %cst_22 : f32 to vector<8x384xf32>
    %25 = arith.maximumf %23, %24 : vector<8x384xf32>
    %26 = vector.broadcast %17 : vector<1x384xf32> to vector<8x384xf32>
    %27 = arith.mulf %25, %26 : vector<8x384xf32>
    %cst_23 = arith.constant dense<0.000000e+00> : vector<8xf32>
    %28 = vector.multi_reduction <add>, %27, %cst_23 [1] : vector<8x384xf32> to vector<8xf32>
    %29 = vector.shape_cast %28 : vector<8xf32> to vector<8x1xf32>
    %30 = vector.broadcast %18 : f32 to vector<8x1xf32>
    %31 = arith.addf %29, %30 : vector<8x1xf32>
    %32 = arith.negf %31 : vector<8x1xf32>
    %33 = math.exp %32 : vector<8x1xf32>
    %cst_24 = arith.constant 1.000000e+00 : f32
    %34 = vector.broadcast %cst_24 : f32 to vector<8x1xf32>
    %35 = arith.addf %34, %33 : vector<8x1xf32>
    %36 = arith.divf %34, %35 : vector<8x1xf32>
    %37 = arith.truncf %14 : vector<8x256xf32> to vector<8x256xbf16>
    %cst_25 = arith.constant dense<0.000000e+00> : vector<8x384xf32>
    %38 = tpu.matmul %37, %15, %cst_25 {dimension_numbers = #tpu.dot_dimension_numbers<[1], [0], [0], [1], [0, 0, 1, 1], [], []>} : vector<8x256xbf16>, vector<256x384xbf16>, vector<8x384xf32> -> vector<8x384xf32>
    %39 = vector.broadcast %16 : vector<1x384xf32> to vector<8x384xf32>
    %40 = arith.addf %38, %39 : vector<8x384xf32>
    %cst_26 = arith.constant 0.000000e+00 : f32
    %41 = vector.broadcast %cst_26 : f32 to vector<8x384xf32>
    %42 = arith.maximumf %40, %41 : vector<8x384xf32>
    %43 = vector.broadcast %17 : vector<1x384xf32> to vector<8x384xf32>
    %44 = arith.mulf %42, %43 : vector<8x384xf32>
    %cst_27 = arith.constant dense<0.000000e+00> : vector<8xf32>
    %45 = vector.multi_reduction <add>, %44, %cst_27 [1] : vector<8x384xf32> to vector<8xf32>
    %46 = vector.shape_cast %45 : vector<8xf32> to vector<8x1xf32>
    %47 = vector.broadcast %18 : f32 to vector<8x1xf32>
    %48 = arith.addf %46, %47 : vector<8x1xf32>
    %49 = arith.negf %48 : vector<8x1xf32>
    %50 = math.exp %49 : vector<8x1xf32>
    %cst_28 = arith.constant 1.000000e+00 : f32
    %51 = vector.broadcast %cst_28 : f32 to vector<8x1xf32>
    %52 = arith.addf %51, %50 : vector<8x1xf32>
    %53 = arith.divf %51, %52 : vector<8x1xf32>
    %54 = tpu.iota {dimensions = array<i32: 1>} : vector<8x128xi32>
    %c0_i32 = arith.constant 0 : i32
    %55 = vector.broadcast %c0_i32 : i32 to vector<8x128xi32>
    %56 = arith.cmpi eq, %54, %55 : vector<8x128xi32>
    %c1_i32 = arith.constant 1 : i32
    %57 = vector.broadcast %c1_i32 : i32 to vector<8x128xi32>
    %58 = arith.cmpi eq, %54, %57 : vector<8x128xi32>
    %cst_29 = arith.constant 0.000000e+00 : f32
    %59 = vector.shape_cast %53 : vector<8x1xf32> to vector<8x1xf32>
    %60 = vector.broadcast %59 : vector<8x1xf32> to vector<8x128xf32>
    %61 = vector.broadcast %cst_29 : f32 to vector<8x128xf32>
    %62 = arith.select %58, %60, %61 : vector<8x128xi1>, vector<8x128xf32>
    %63 = vector.shape_cast %36 : vector<8x1xf32> to vector<8x1xf32>
    %64 = vector.broadcast %63 : vector<8x1xf32> to vector<8x128xf32>
    %65 = arith.select %56, %64, %62 : vector<8x128xi1>, vector<8x128xf32>
    %c0_30 = arith.constant 0 : index
    %c0_31 = arith.constant 0 : index
    %66 = vector.load %arg11[%c0_30, %c0_31] : memref<8x128xf32, #tpu.memory_space<vmem>>, vector<8x128xf32>
    tpu.vector_store %arg11[%c0_30, %c0_31], %65 {strides = array<i32>} : memref<8x128xf32, #tpu.memory_space<vmem>>, vector<8x128xf32>,
    return
  }
  func.func @transform_0(%arg0: i32) -> (i32, i32) {
    %c0_i32 = arith.constant 0 : i32
    %c0_i32_0 = arith.constant 0 : i32
    return %arg0, %c0_i32 : i32, i32
  }
  func.func @transform_1(%arg0: i32) -> (i32, i32) {
    %c0_i32 = arith.constant 0 : i32
    %c0_i32_0 = arith.constant 0 : i32
    return %arg0, %c0_i32 : i32, i32
  }
  func.func @transform_2(%arg0: i32) -> (i32, i32) {
    %c0_i32 = arith.constant 0 : i32
    %c0_i32_0 = arith.constant 0 : i32
    %c0_i32_1 = arith.constant 0 : i32
    return %c0_i32, %c0_i32_0 : i32, i32
  }
  func.func @transform_3(%arg0: i32) -> (i32, i32) {
    %c0_i32 = arith.constant 0 : i32
    %c0_i32_0 = arith.constant 0 : i32
    %c0_i32_1 = arith.constant 0 : i32
    return %c0_i32, %c0_i32_0 : i32, i32
  }
  func.func @transform_4(%arg0: i32) -> (i32, i32) {
    %c0_i32 = arith.constant 0 : i32
    %c0_i32_0 = arith.constant 0 : i32
    %c0_i32_1 = arith.constant 0 : i32
    return %c0_i32, %c0_i32_0 : i32, i32
  }
  func.func @transform_5(%arg0: i32) -> (i32, i32) {
    %c0_i32 = arith.constant 0 : i32
    %c0_i32_0 = arith.constant 0 : i32
    %c0_i32_1 = arith.constant 0 : i32
    return %c0_i32, %c0_i32_0 : i32, i32
  }
  func.func @transform_6(%arg0: i32) -> (i32, i32) {
    %c0_i32 = arith.constant 0 : i32
    %c0_i32_0 = arith.constant 0 : i32
    %c0_i32_1 = arith.constant 0 : i32
    return %c0_i32, %c0_i32_0 : i32, i32
  }
  func.func @transform_7(%arg0: i32) -> (i32, i32) {
    %c0_i32 = arith.constant 0 : i32
    %c0_i32_0 = arith.constant 0 : i32
    %c0_i32_1 = arith.constant 0 : i32
    return %c0_i32, %c0_i32_0 : i32, i32
  }
  func.func @transform_8(%arg0: i32) -> (i32, i32) {
    %c0_i32 = arith.constant 0 : i32
    %c0_i32_0 = arith.constant 0 : i32
    %c0_i32_1 = arith.constant 0 : i32
    return %c0_i32, %c0_i32_0 : i32, i32
  }
  func.func @transform_9(%arg0: i32) -> (i32, i32) {
    %c0_i32 = arith.constant 0 : i32
    %c0_i32_0 = arith.constant 0 : i32
    %c0_i32_1 = arith.constant 0 : i32
    return %c0_i32, %c0_i32_0 : i32, i32
  }
  func.func @transform_10(%arg0: i32) -> (i32, i32) {
    %c0_i32 = arith.constant 0 : i32
    %c0_i32_0 = arith.constant 0 : i32
    return %arg0, %c0_i32 : i32, i32
  }
}

module attributes {stable_mosaic.version = 11 : i64} {
  func.func @_gan_forward_kernel(%arg0: i32, %arg1: memref<8x256xf32, #tpu.memory_space<vmem>>, %arg2: memref<8x256xf32, #tpu.memory_space<vmem>>, %arg3: memref<256x384xbf16, #tpu.memory_space<vmem>>, %arg4: memref<1x384xf32, #tpu.memory_space<vmem>>, %arg5: memref<384x256xbf16, #tpu.memory_space<vmem>>, %arg6: memref<1x256xf32, #tpu.memory_space<vmem>>, %arg7: memref<256x384xbf16, #tpu.memory_space<vmem>>, %arg8: memref<1x384xf32, #tpu.memory_space<vmem>>, %arg9: memref<1x384xf32, #tpu.memory_space<vmem>>, %arg10: memref<1x1xf32, #tpu.memory_space<smem>>, %arg11: memref<8x128xf32, #tpu.memory_space<vmem>>) attributes {dimension_semantics = [#tpu.dimension_semantics<parallel>], iteration_bounds = array<i64: 2>, scalar_prefetch = 0 : i64, scratch_operands = 0 : i64, tpu.core_type = #tpu.core_type<tc>, window_params = [{transform_indices = @transform_0, window_bounds = array<i64: 8, 256>}, {transform_indices = @transform_1, window_bounds = array<i64: 8, 256>}, {pipeline_mode = #tpu.pipeline_mode<synchronous>, transform_indices = @transform_2, window_bounds = array<i64: 256, 384>}, {pipeline_mode = #tpu.pipeline_mode<synchronous>, transform_indices = @transform_3, window_bounds = array<i64: 1, 384>}, {pipeline_mode = #tpu.pipeline_mode<synchronous>, transform_indices = @transform_4, window_bounds = array<i64: 384, 256>}, {pipeline_mode = #tpu.pipeline_mode<synchronous>, transform_indices = @transform_5, window_bounds = array<i64: 1, 256>}, {pipeline_mode = #tpu.pipeline_mode<synchronous>, transform_indices = @transform_6, window_bounds = array<i64: 256, 384>}, {pipeline_mode = #tpu.pipeline_mode<synchronous>, transform_indices = @transform_7, window_bounds = array<i64: 1, 384>}, {pipeline_mode = #tpu.pipeline_mode<synchronous>, transform_indices = @transform_8, window_bounds = array<i64: 1, 384>}, {transform_indices = @transform_9, window_bounds = array<i64: 1, 1>}, {transform_indices = @transform_10, window_bounds = array<i64: 8, 128>}]} {
    %c0 = arith.constant 0 : index
    %c0_0 = arith.constant 0 : index
    %0 = vector.load %arg2[%c0, %c0_0] : memref<8x256xf32, #tpu.memory_space<vmem>>, vector<8x256xf32>
    %1 = arith.truncf %0 : vector<8x256xf32> to vector<8x256xbf16>
    %c0_1 = arith.constant 0 : index
    %c0_2 = arith.constant 0 : index
    %2 = vector.load %arg3[%c0_1, %c0_2] : memref<256x384xbf16, #tpu.memory_space<vmem>>, vector<256x384xbf16>
    %cst = arith.constant dense<0.000000e+00> : vector<8x384xf32>
    %3 = tpu.matmul %1, %2, %cst {dimension_numbers = #tpu.dot_dimension_numbers<[1], [0], [0], [1], [0, 0, 1, 1], [], []>} : vector<8x256xbf16>, vector<256x384xbf16>, vector<8x384xf32> -> vector<8x384xf32>
    %c0_3 = arith.constant 0 : index
    %c0_4 = arith.constant 0 : index
    %4 = vector.load %arg4[%c0_3, %c0_4] : memref<1x384xf32, #tpu.memory_space<vmem>>, vector<1x384xf32>
    %5 = vector.broadcast %4 : vector<1x384xf32> to vector<8x384xf32>
    %6 = arith.addf %3, %5 : vector<8x384xf32>
    %cst_5 = arith.constant 0.000000e+00 : f32
    %7 = vector.broadcast %cst_5 : f32 to vector<8x384xf32>
    %8 = arith.maximumf %6, %7 : vector<8x384xf32>
    %9 = arith.truncf %8 : vector<8x384xf32> to vector<8x384xbf16>
    %c0_6 = arith.constant 0 : index
    %c0_7 = arith.constant 0 : index
    %10 = vector.load %arg5[%c0_6, %c0_7] : memref<384x256xbf16, #tpu.memory_space<vmem>>, vector<384x256xbf16>
    %cst_8 = arith.constant dense<0.000000e+00> : vector<8x256xf32>
    %11 = tpu.matmul %9, %10, %cst_8 {dimension_numbers = #tpu.dot_dimension_numbers<[1], [0], [0], [1], [0, 0, 1, 1], [], []>} : vector<8x384xbf16>, vector<384x256xbf16>, vector<8x256xf32> -> vector<8x256xf32>
    %c0_9 = arith.constant 0 : index
    %c0_10 = arith.constant 0 : index
    %12 = vector.load %arg6[%c0_9, %c0_10] : memref<1x256xf32, #tpu.memory_space<vmem>>, vector<1x256xf32>
    %13 = vector.broadcast %12 : vector<1x256xf32> to vector<8x256xf32>
    %14 = arith.addf %11, %13 : vector<8x256xf32>
    %c0_11 = arith.constant 0 : index
    %c0_12 = arith.constant 0 : index
    %15 = vector.load %arg7[%c0_11, %c0_12] : memref<256x384xbf16, #tpu.memory_space<vmem>>, vector<256x384xbf16>
    %c0_13 = arith.constant 0 : index
    %c0_14 = arith.constant 0 : index
    %16 = vector.load %arg8[%c0_13, %c0_14] : memref<1x384xf32, #tpu.memory_space<vmem>>, vector<1x384xf32>
    %c0_15 = arith.constant 0 : index
    %c0_16 = arith.constant 0 : index
    %17 = vector.load %arg9[%c0_15, %c0_16] : memref<1x384xf32, #tpu.memory_space<vmem>>, vector<1x384xf32>
    %c0_17 = arith.constant 0 : index
    %c0_18 = arith.constant 0 : index
    %18 = memref.load %arg10[%c0_17, %c0_18] : memref<1x1xf32, #tpu.memory_space<smem>>
    %c0_19 = arith.constant 0 : index
    %c0_20 = arith.constant 0 : index
    %19 = vector.load %arg1[%c0_19, %c0_20] : memref<8x256xf32, #tpu.memory_space<vmem>>, vector<8x256xf32>
    %20 = arith.truncf %19 : vector<8x256xf32> to vector<8x256xbf16>
    %cst_21 = arith.constant dense<0.000000e+00> : vector<8x384xf32>
    %21 = tpu.matmul %20, %15, %cst_21 {dimension_numbers = #tpu.dot_dimension_numbers<[1], [0], [0], [1], [0, 0, 1, 1], [], []>} : vector<8x256xbf16>, vector<256x384xbf16>, vector<8x384xf32> -> vector<8x384xf32>
    %22 = vector.broadcast %16 : vector<1x384xf32> to vector<8x384xf32>
    %23 = arith.addf %21, %22 : vector<8x384xf32>
    %cst_22 = arith.constant 0.000000e+00 : f32
    %24 = vector.broadcast %cst_22 : f32 to vector<8x384xf32>
    %25 = arith.maximumf %23, %24 : vector<8x384xf32>
    %26 = vector.broadcast %17 : vector<1x384xf32> to vector<8x384xf32>
    %27 = arith.mulf %25, %26 : vector<8x384xf32>
    %cst_23 = arith.constant dense<0.000000e+00> : vector<8xf32>
    %28 = vector.multi_reduction <add>, %27, %cst_23 [1] : vector<8x384xf32> to vector<8xf32>
    %29 = vector.shape_cast %28 : vector<8xf32> to vector<8x1xf32>
    %30 = vector.broadcast %18 : f32 to vector<8x1xf32>
    %31 = arith.addf %29, %30 : vector<8x1xf32>
    %32 = arith.negf %31 : vector<8x1xf32>
    %33 = math.exp %32 : vector<8x1xf32>
    %cst_24 = arith.constant 1.000000e+00 : f32
    %34 = vector.broadcast %cst_24 : f32 to vector<8x1xf32>
    %35 = arith.addf %34, %33 : vector<8x1xf32>
    %36 = arith.divf %34, %35 : vector<8x1xf32>
    %37 = arith.truncf %14 : vector<8x256xf32> to vector<8x256xbf16>
    %cst_25 = arith.constant dense<0.000000e+00> : vector<8x384xf32>
    %38 = tpu.matmul %37, %15, %cst_25 {dimension_numbers = #tpu.dot_dimension_numbers<[1], [0], [0], [1], [0, 0, 1, 1], [], []>} : vector<8x256xbf16>, vector<256x384xbf16>, vector<8x384xf32> -> vector<8x384xf32>
    %39 = vector.broadcast %16 : vector<1x384xf32> to vector<8x384xf32>
    %40 = arith.addf %38, %39 : vector<8x384xf32>
    %cst_26 = arith.constant 0.000000e+00 : f32
    %41 = vector.broadcast %cst_26 : f32 to vector<8x384xf32>
    %42 = arith.maximumf %40, %41 : vector<8x384xf32>
    %43 = vector.broadcast %17 : vector<1x384xf32> to vector<8x384xf32>
    %44 = arith.mulf %42, %43 : vector<8x384xf32>
    %cst_27 = arith.constant dense<0.000000e+00> : vector<8xf32>
    %45 = vector.multi_reduction <add>, %44, %cst_27 [1] : vector<8x384xf32> to vector<8xf32>
    %46 = vector.shape_cast %45 : vector<8xf32> to vector<8x1xf32>
    %47 = vector.broadcast %18 : f32 to vector<8x1xf32>
    %48 = arith.addf %46, %47 : vector<8x1xf32>
    %49 = arith.negf %48 : vector<8x1xf32>
    %50 = math.exp %49 : vector<8x1xf32>
    %cst_28 = arith.constant 1.000000e+00 : f32
    %51 = vector.broadcast %cst_28 : f32 to vector<8x1xf32>
    %52 = arith.addf %51, %50 : vector<8x1xf32>
    %53 = arith.divf %51, %52 : vector<8x1xf32>
    %54 = tpu.iota {dimensions = array<i32: 1>} : vector<8x128xi32>
    %c0_i32 = arith.constant 0 : i32
    %55 = vector.broadcast %c0_i32 : i32 to vector<8x128xi32>
    %56 = arith.cmpi eq, %54, %55 : vector<8x128xi32>
    %c1_i32 = arith.constant 1 : i32
    %57 = vector.broadcast %c1_i32 : i32 to vector<8x128xi32>
    %58 = arith.cmpi eq, %54, %57 : vector<8x128xi32>
    %cst_29 = arith.constant 0.000000e+00 : f32
    %59 = vector.shape_cast %53 : vector<8x1xf32> to vector<8x1xf32>
    %60 = vector.broadcast %59 : vector<8x1xf32> to vector<8x128xf32>
    %61 = vector.broadcast %cst_29 : f32 to vector<8x128xf32>
    %62 = arith.select %58, %60, %61 : vector<8x128xi1>, vector<8x128xf32>
    %63 = vector.shape_cast %36 : vector<8x1xf32> to vector<8x1xf32>
    %64 = vector.broadcast %63 : vector<8x1xf32> to vector<8x128xf32>
    %65 = arith.select %56, %64, %62 : vector<8x128xi1>, vector<8x128xf32>
    %c0_30 = arith.constant 0 : index
    %c0_31 = arith.constant 0 : index
    %66 = vector.load %arg11[%c0_30, %c0_31] : memref<8x128xf32, #tpu.memory_space<vmem>>, vector<8x128xf32>
    tpu.vector_store %arg11[%c0_30, %c0_31], %65 {strides = array<i32>} : memref<8x128xf32, #tpu.memory_space<vmem>>, vector<8x128xf32>,
    return
  }
  func.func @transform_0(%arg0: i32) -> (i32, i32) {
    %c0_i32 = arith.constant 0 : i32
    %c0_i32_0 = arith.constant 0 : i32
    return %arg0, %c0_i32 : i32, i32
  }
  func.func @transform_1(%arg0: i32) -> (i32, i32) {
    %c0_i32 = arith.constant 0 : i32
    %c0_i32_0 = arith.constant 0 : i32
    return %arg0, %c0_i32 : i32, i32
  }
  func.func @transform_2(%arg0: i32) -> (i32, i32) {
    %c0_i32 = arith.constant 0 : i32
    %c0_i32_0 = arith.constant 0 : i32
    %c0_i32_1 = arith.constant 0 : i32
    return %c0_i32, %c0_i32_0 : i32, i32
  }
  func.func @transform_3(%arg0: i32) -> (i32, i32) {
    %c0_i32 = arith.constant 0 : i32
    %c0_i32_0 = arith.constant 0 : i32
    %c0_i32_1 = arith.constant 0 : i32
    return %c0_i32, %c0_i32_0 : i32, i32
  }
  func.func @transform_4(%arg0: i32) -> (i32, i32) {
    %c0_i32 = arith.constant 0 : i32
    %c0_i32_0 = arith.constant 0 : i32
    %c0_i32_1 = arith.constant 0 : i32
    return %c0_i32, %c0_i32_0 : i32, i32
  }
  func.func @transform_5(%arg0: i32) -> (i32, i32) {
    %c0_i32 = arith.constant 0 : i32
    %c0_i32_0 = arith.constant 0 : i32
    %c0_i32_1 = arith.constant 0 : i32
    return %c0_i32, %c0_i32_0 : i32, i32
  }
  func.func @transform_6(%arg0: i32) -> (i32, i32) {
    %c0_i32 = arith.constant 0 : i32
    %c0_i32_0 = arith.constant 0 : i32
    %c0_i32_1 = arith.constant 0 : i32
    return %c0_i32, %c0_i32_0 : i32, i32
  }
  func.func @transform_7(%arg0: i32) -> (i32, i32) {
    %c0_i32 = arith.constant 0 : i32
    %c0_i32_0 = arith.constant 0 : i32
    %c0_i32_1 = arith.constant 0 : i32
    return %c0_i32, %c0_i32_0 : i32, i32
  }
  func.func @transform_8(%arg0: i32) -> (i32, i32) {
    %c0_i32 = arith.constant 0 : i32
    %c0_i32_0 = arith.constant 0 : i32
    %c0_i32_1 = arith.constant 0 : i32
    return %c0_i32, %c0_i32_0 : i32, i32
  }
  func.func @transform_9(%arg0: i32) -> (i32, i32) {
    %c0_i32 = arith.constant 0 : i32
    %c0_i32_0 = arith.constant 0 : i32
    %c0_i32_1 = arith.constant 0 : i32
    return %c0_i32, %c0_i32_0 : i32, i32
  }
  func.func @transform_10(%arg0: i32) -> (i32, i32) {
    %c0_i32 = arith.constant 0 : i32
    %c0_i32_0 = arith.constant 0 : i32
    return %arg0, %c0_i32 : i32, i32
  }
}

</mosaic_0001>

<llo_original>
// kernel: tpu_custom_call.1
$region0: #{tpu_custom_call.1}
  #allocation0 [shape = 'u32[]', space=smem, size = 0x4, offset = 0x4, fixed_abs, tag = 'smem constant byte address 0x4 - core index']
  #allocation1 [shape = 'u32[72,128]{1,0:T(1,128)}', space=vmem, size = 0x9000, scoped, tag = 'internal scratch']
  #allocation2 [shape = 'f32[1,1]{1,0:T(1,128)S(6)}', space=smem, size = 0x200, scoped, tag = 'scoped memory for tpu_custom_call.1']
  %s0 = inlined_call_operand.hbm [shape: f32[16,256], index: 0, kind: input, shape index: {}]
  %s1 = inlined_call_operand.hbm [shape: f32[16,256], index: 1, kind: input, shape index: {}]
  %s2 = inlined_call_operand.hbm [shape: bf16[256,384], index: 2, kind: input, shape index: {}]
  %s3 = inlined_call_operand.vmem [shape: f32[1,384], index: 3, kind: input, shape index: {}]
  %s4 = inlined_call_operand.hbm [shape: bf16[384,256], index: 4, kind: input, shape index: {}]
  %s5 = inlined_call_operand.hbm [shape: f32[1,256], index: 5, kind: input, shape index: {}]
  %s6 = inlined_call_operand.hbm [shape: bf16[256,384], index: 6, kind: input, shape index: {}]
  %s7 = inlined_call_operand.vmem [shape: f32[1,384], index: 7, kind: input, shape index: {}]
  %s8 = inlined_call_operand.vmem [shape: f32[1,384], index: 8, kind: input, shape index: {}]
  %s9 = inlined_call_operand.<no memory space> [shape: f32[1,1], index: 9, kind: input, shape index: {}]
  %s10 = inlined_call_operand.hbm [shape: f32[16,128], index: 10, kind: output, shape index: {}]
  %s11 = sld [smem:[#allocation0]]
  $region97: #{tpu_custom_call.1} parent=0
    _
  %s13 = ssub.s32 1, %s11
  %s14 = scalar_select 0, %s13, %s11
  %15 = sst [smem:[#allocation2]] %s9
  $region1: #{tpu_custom_call.1} parent=0
    #allocation3 [shape = 'u8[16384]{0}', space=vmem, size = 0x4000, scoped, tag = 'input window, operand 0']
    #allocation4 [shape = 's32[2]{0}', space=sflag, size = 0x8, scoped, tag = 'scoped memory for tpu_custom_call.1']
    #allocation5 [shape = 's32[2]{0}', space=sflag, size = 0x8, scoped, tag = 'scoped memory for tpu_custom_call.1']
    #allocation6 [shape = 'u8[16384]{0}', space=vmem, size = 0x4000, scoped, tag = 'input window, operand 1']
    #allocation7 [shape = 's32[2]{0}', space=sflag, size = 0x8, scoped, tag = 'scoped memory for tpu_custom_call.1']
    #allocation8 [shape = 'u8[196608]{0}', space=vmem, size = 0x30000, scoped, tag = 'input window, operand 2, single buffered']
    #allocation9 [shape = 'u8[196608]{0}', space=vmem, size = 0x30000, scoped, tag = 'input window, operand 4, single buffered']
    #allocation10 [shape = 's32[1]{0}', space=sflag, size = 0x4, scoped, tag = 'scoped memory for tpu_custom_call.1']
    #allocation11 [shape = 'u8[1024]{0}', space=vmem, size = 0x400, scoped, tag = 'input window, operand 5, single buffered']
    #allocation12 [shape = 'u8[196608]{0}', space=vmem, size = 0x30000, scoped, tag = 'input window, operand 6, single buffered']
    #allocation13 [shape = 's32[1]{0}', space=sflag, size = 0x4, scoped, tag = 'scoped memory for tpu_custom_call.1']
    #allocation14 [shape = 'u8[8192]{0}', space=vmem, size = 0x2000, scoped, tag = 'output window, operand 0']
    %16 = vsyncpa [#allocation4], 0
    %s17 = scalar_lea.sflag [#allocation4], 1
    %18 = vsyncpa %s17, 0
    %19 = vsyncpa [#allocation7], 0
    %s20 = scalar_lea.sflag [#allocation7], 1
    %21 = vsyncpa %s20, 0
    %22 = vsyncpa [#allocation10], 0
    %23 = vsyncpa [#allocation13], 0
    %24 = vsyncpa [#allocation5], 0
    %s25 = scalar_lea.sflag [#allocation5], 1
    %26 = vsyncpa %s25, 0
    loop: start=0, step=1, limit=4
    $region2: #{tpu_custom_call.1} parent=1 // loop_pre_header
      _
    $region3: #{tpu_custom_call.1} parent=1 // loop_header
      %s28 = sphi 0, %s32
      %p29 = scmp.ge.s32.totalorder %s28, 4
      %s38 = sphi 0, %s40
      %s41 = sphi 0, %s38
      %s42 = sphi 0, %s41
      %s58 = sphi 0, %s42
      %s64 = sphi 0, %s66
      %s67 = sphi 0, %s64
      %s68 = sphi 0, %s67
      %s84 = sphi 0, %s68
      %s88 = sphi 0, %s88
      %s90 = sphi 0, %s88
      %s91 = sphi 0, %s90
      %s105 = sphi 0, %s91
      %s109 = sphi 0, %s109
      %s111 = sphi 0, %s109
      %s112 = sphi 0, %s111
      %s126 = sphi 0, %s112
      %s130 = sphi 0, %s130
      %s132 = sphi 0, %s130
      %s133 = sphi 0, %s132
      %s147 = sphi 0, %s133
      %s151 = sphi 0, %s151
      %s153 = sphi 0, %s151
      %s154 = sphi 0, %s153
      %s168 = sphi 0, %s154
      %s172 = sphi 0, %s172
      %s174 = sphi 0, %s172
      %s175 = sphi 0, %s174
      %s189 = sphi 0, %s175
      %s193 = sphi 0, %s193
      %s195 = sphi 0, %s193
      %s196 = sphi 0, %s195
      %s210 = sphi 0, %s196
      %s214 = sphi 0, %s214
      %s216 = sphi 0, %s214
      %s217 = sphi 0, %s216
      %s231 = sphi 0, %s217
      %s235 = sphi 0, %s235
      %s237 = sphi 0, %s235
      %s238 = sphi 0, %s237
      %s252 = sphi 0, %s238
      %s258 = sphi 0, %s260
      %s261 = sphi 0, %s258
      %s262 = sphi 0, %s261
      %s278 = sphi 0, %s262
    $region4: #{tpu_custom_call.1} parent=1 // loop_header_branch
      %31 = sbr.rel (%p29) target = $region8
    $region5: #{tpu_custom_call.1} parent=1 // loop_body
      %s33 = ssub.s32 %s28, 1
      %s34 = ssub.s32 %s28, 2
      %s35 = sadd.s32 %s28, 1
      %s36 = ssub.s32 %s28, %s35
      %p37 = scmp.eq.s32.totalorder %s36, 0
      %s39 = sadd.s32 %s38, 1
      %s40 = scalar_select %p37, %s38, %s39
      %p43 = pneg %p37
      %p44 = scmp.eq.s32.totalorder %s28, 1
      %p45 = por %p43, %p44
      %p46 = scmp.ne.s32.totalorder %s38, %s41
      %p47 = scmp.eq.s32.totalorder %s28, 0
      %p48 = por %p46, %p47
      %p49 = scmp.ne.s32.totalorder %s38, %s41
      %p50 = scmp.eq.s32.totalorder %s33, 1
      %p51 = por %p49, %p50
      %p52 = scmp.ne.s32.totalorder %s41, %s42
      %p53 = scmp.eq.s32.totalorder %s33, 0
      %p54 = por %p52, %p53
      %p55 = scmp.ne.s32.totalorder %s41, %s42
      %p56 = scmp.eq.s32.totalorder %s34, 1
      %p57 = por %p55, %p56
      %p59 = scmp.ne.s32.totalorder %s42, %s58
      %p60 = scmp.eq.s32.totalorder %s34, 0
      %p61 = por %p59, %p60
      %s62 = ssub.s32 %s28, %s35
      %p63 = scmp.eq.s32.totalorder %s62, 0
      %s65 = sadd.s32 %s64, 1
      %s66 = scalar_select %p63, %s64, %s65
      %p69 = pneg %p63
      %p70 = scmp.eq.s32.totalorder %s28, 1
      %p71 = por %p69, %p70
      %p72 = scmp.ne.s32.totalorder %s64, %s67
      %p73 = scmp.eq.s32.totalorder %s28, 0
      %p74 = por %p72, %p73
      %p75 = scmp.ne.s32.totalorder %s64, %s67
      %p76 = scmp.eq.s32.totalorder %s33, 1
      %p77 = por %p75, %p76
      %p78 = scmp.ne.s32.totalorder %s67, %s68
      %p79 = scmp.eq.s32.totalorder %s33, 0
      %p80 = por %p78, %p79
      %p81 = scmp.ne.s32.totalorder %s67, %s68
      %p82 = scmp.eq.s32.totalorder %s34, 1
      %p83 = por %p81, %p82
      %p85 = scmp.ne.s32.totalorder %s68, %s84
      %p86 = scmp.eq.s32.totalorder %s34, 0
      %p87 = por %p85, %p86
      %s89 = sadd.s32 %s88, 1
      %p92 = scmp.eq.s32.totalorder %s28, 1
      %p93 = scmp.ne.s32.totalorder %s88, %s90
      %p94 = scmp.eq.s32.totalorder %s28, 0
      %p95 = por %p93, %p94
      %p96 = scmp.ne.s32.totalorder %s88, %s90
      %p97 = scmp.eq.s32.totalorder %s33, 1
      %p98 = por %p96, %p97
      %p99 = scmp.ne.s32.totalorder %s90, %s91
      %p100 = scmp.eq.s32.totalorder %s33, 0
      %p101 = por %p99, %p100
      %p102 = scmp.ne.s32.totalorder %s90, %s91
      %p103 = scmp.eq.s32.totalorder %s34, 1
      %p104 = por %p102, %p103
      %p106 = scmp.ne.s32.totalorder %s91, %s105
      %p107 = scmp.eq.s32.totalorder %s34, 0
      %p108 = por %p106, %p107
      %s110 = sadd.s32 %s109, 1
      %p113 = scmp.eq.s32.totalorder %s28, 1
      %p114 = scmp.ne.s32.totalorder %s109, %s111
      %p115 = scmp.eq.s32.totalorder %s28, 0
      %p116 = por %p114, %p115
      %p117 = scmp.ne.s32.totalorder %s109, %s111
      %p118 = scmp.eq.s32.totalorder %s33, 1
      %p119 = por %p117, %p118
      %p120 = scmp.ne.s32.totalorder %s111, %s112
      %p121 = scmp.eq.s32.totalorder %s33, 0
      %p122 = por %p120, %p121
      %p123 = scmp.ne.s32.totalorder %s111, %s112
      %p124 = scmp.eq.s32.totalorder %s34, 1
      %p125 = por %p123, %p124
      %p127 = scmp.ne.s32.totalorder %s112, %s126
      %p128 = scmp.eq.s32.totalorder %s34, 0
      %p129 = por %p127, %p128
      %s131 = sadd.s32 %s130, 1
      %p134 = scmp.eq.s32.totalorder %s28, 1
      %p135 = scmp.ne.s32.totalorder %s130, %s132
      %p136 = scmp.eq.s32.totalorder %s28, 0
      %p137 = por %p135, %p136
      %p138 = scmp.ne.s32.totalorder %s130, %s132
      %p139 = scmp.eq.s32.totalorder %s33, 1
      %p140 = por %p138, %p139
      %p141 = scmp.ne.s32.totalorder %s132, %s133
      %p142 = scmp.eq.s32.totalorder %s33, 0
      %p143 = por %p141, %p142
      %p144 = scmp.ne.s32.totalorder %s132, %s133
      %p145 = scmp.eq.s32.totalorder %s34, 1
      %p146 = por %p144, %p145
      %p148 = scmp.ne.s32.totalorder %s133, %s147
      %p149 = scmp.eq.s32.totalorder %s34, 0
      %p150 = por %p148, %p149
      %s152 = sadd.s32 %s151, 1
      %p155 = scmp.eq.s32.totalorder %s28, 1
      %p156 = scmp.ne.s32.totalorder %s151, %s153
      %p157 = scmp.eq.s32.totalorder %s28, 0
      %p158 = por %p156, %p157
      %p159 = scmp.ne.s32.totalorder %s151, %s153
      %p160 = scmp.eq.s32.totalorder %s33, 1
      %p161 = por %p159, %p160
      %p162 = scmp.ne.s32.totalorder %s153, %s154
      %p163 = scmp.eq.s32.totalorder %s33, 0
      %p164 = por %p162, %p163
      %p165 = scmp.ne.s32.totalorder %s153, %s154
      %p166 = scmp.eq.s32.totalorder %s34, 1
      %p167 = por %p165, %p166
      %p169 = scmp.ne.s32.totalorder %s154, %s168
      %p170 = scmp.eq.s32.totalorder %s34, 0
      %p171 = por %p169, %p170
      %s173 = sadd.s32 %s172, 1
      %p176 = scmp.eq.s32.totalorder %s28, 1
      %p177 = scmp.ne.s32.totalorder %s172, %s174
      %p178 = scmp.eq.s32.totalorder %s28, 0
      %p179 = por %p177, %p178
      %p180 = scmp.ne.s32.totalorder %s172, %s174
      %p181 = scmp.eq.s32.totalorder %s33, 1
      %p182 = por %p180, %p181
      %p183 = scmp.ne.s32.totalorder %s174, %s175
      %p184 = scmp.eq.s32.totalorder %s33, 0
      %p185 = por %p183, %p184
      %p186 = scmp.ne.s32.totalorder %s174, %s175
      %p187 = scmp.eq.s32.totalorder %s34, 1
      %p188 = por %p186, %p187
      %p190 = scmp.ne.s32.totalorder %s175, %s189
      %p191 = scmp.eq.s32.totalorder %s34, 0
      %p192 = por %p190, %p191
      %s194 = sadd.s32 %s193, 1
      %p197 = scmp.eq.s32.totalorder %s28, 1
      %p198 = scmp.ne.s32.totalorder %s193, %s195
      %p199 = scmp.eq.s32.totalorder %s28, 0
      %p200 = por %p198, %p199
      %p201 = scmp.ne.s32.totalorder %s193, %s195
      %p202 = scmp.eq.s32.totalorder %s33, 1
      %p203 = por %p201, %p202
      %p204 = scmp.ne.s32.totalorder %s195, %s196
      %p205 = scmp.eq.s32.totalorder %s33, 0
      %p206 = por %p204, %p205
      %p207 = scmp.ne.s32.totalorder %s195, %s196
      %p208 = scmp.eq.s32.totalorder %s34, 1
      %p209 = por %p207, %p208
      %p211 = scmp.ne.s32.totalorder %s196, %s210
      %p212 = scmp.eq.s32.totalorder %s34, 0
      %p213 = por %p211, %p212
      %s215 = sadd.s32 %s214, 1
      %p218 = scmp.eq.s32.totalorder %s28, 1
      %p219 = scmp.ne.s32.totalorder %s214, %s216
      %p220 = scmp.eq.s32.totalorder %s28, 0
      %p221 = por %p219, %p220
      %p222 = scmp.ne.s32.totalorder %s214, %s216
      %p223 = scmp.eq.s32.totalorder %s33, 1
      %p224 = por %p222, %p223
      %p225 = scmp.ne.s32.totalorder %s216, %s217
      %p226 = scmp.eq.s32.totalorder %s33, 0
      %p227 = por %p225, %p226
      %p228 = scmp.ne.s32.totalorder %s216, %s217
      %p229 = scmp.eq.s32.totalorder %s34, 1
      %p230 = por %p228, %p229
      %p232 = scmp.ne.s32.totalorder %s217, %s231
      %p233 = scmp.eq.s32.totalorder %s34, 0
      %p234 = por %p232, %p233
      %s236 = sadd.s32 %s235, 1
      %p239 = scmp.eq.s32.totalorder %s28, 1
      %p240 = scmp.ne.s32.totalorder %s235, %s237
      %p241 = scmp.eq.s32.totalorder %s28, 0
      %p242 = por %p240, %p241
      %p243 = scmp.ne.s32.totalorder %s235, %s237
      %p244 = scmp.eq.s32.totalorder %s33, 1
      %p245 = por %p243, %p244
      %p246 = scmp.ne.s32.totalorder %s237, %s238
      %p247 = scmp.eq.s32.totalorder %s33, 0
      %p248 = por %p246, %p247
      %p249 = scmp.ne.s32.totalorder %s237, %s238
      %p250 = scmp.eq.s32.totalorder %s34, 1
      %p251 = por %p249, %p250
      %p253 = scmp.ne.s32.totalorder %s238, %s252
      %p254 = scmp.eq.s32.totalorder %s34, 0
      %p255 = por %p253, %p254
      %s256 = ssub.s32 %s28, %s35
      %p257 = scmp.eq.s32.totalorder %s256, 0
      %s259 = sadd.s32 %s258, 1
      %s260 = scalar_select %p257, %s258, %s259
      %p263 = pneg %p257
      %p264 = scmp.eq.s32.totalorder %s28, 1
      %p265 = por %p263, %p264
      %p266 = scmp.ne.s32.totalorder %s258, %s261
      %p267 = scmp.eq.s32.totalorder %s28, 0
      %p268 = por %p266, %p267
      %p269 = scmp.ne.s32.totalorder %s258, %s261
      %p270 = scmp.eq.s32.totalorder %s33, 1
      %p271 = por %p269, %p270
      %p272 = scmp.ne.s32.totalorder %s261, %s262
      %p273 = scmp.eq.s32.totalorder %s33, 0
      %p274 = por %p272, %p273
      %p275 = scmp.ne.s32.totalorder %s261, %s262
      %p276 = scmp.eq.s32.totalorder %s34, 1
      %p277 = por %p275, %p276
      %p279 = scmp.ne.s32.totalorder %s262, %s278
      %p280 = scmp.eq.s32.totalorder %s34, 0
      %p281 = por %p279, %p280
      %p282 = scmp.le.s32.totalorder 1, %s28
      %p283 = scmp.lt.s32.totalorder %s28, 3
      %p284 = pnand %p282, %p283
      %p285 = pneg %p284
      // Predicated region
      $region9: #{tpu_custom_call.1} parent=5 // pred_check
        _
      $region10: #{tpu_custom_call.1} parent=5 // pred_check_branch
        %287 = sbr.rel (%p284) target = $region12
      $region11: #{tpu_custom_call.1} parent=5 // pred_region
        %s288 = ssub.s32 %s28, 1
        // Predicated region
        $region13: #{tpu_custom_call.1} parent=11 // pred_check
          %p289 = pneg %p101
        $region14: #{tpu_custom_call.1} parent=11 // pred_check_branch
          %291 = sbr.rel (%p289) target = $region16
        $region15: #{tpu_custom_call.1} parent=11 // pred_region
          %293 = vsyncadd [#allocation7], 0
          %s294 = sshll.u32 %s2, 4
          %s295 = int_to_ptr.hbm [resolvable:$true] %s294
          %s296 = sshll.u32 [#allocation8], 4
          %s297 = int_to_ptr.vmem [resolvable:$true] %s296
          %302 = dma.hbm_to_vmem [thread:$0]  %s295, 6144, %s297, [#allocation7], 192, 192, 12
        $region16: #{tpu_custom_call.1} parent=11 // pred_fallthru
          _
        // Predicated region
        $region17: #{tpu_custom_call.1} parent=11 // pred_check
          %p303 = pneg %p122
        $region18: #{tpu_custom_call.1} parent=11 // pred_check_branch
          %305 = sbr.rel (%p303) target = $region20
        $region19: #{tpu_custom_call.1} parent=11 // pred_region
          _
        $region20: #{tpu_custom_call.1} parent=11 // pred_fallthru
          _
        // Predicated region
        $region21: #{tpu_custom_call.1} parent=11 // pred_check
          %p306 = pneg %p143
        $region22: #{tpu_custom_call.1} parent=11 // pred_check_branch
          %308 = sbr.rel (%p306) target = $region24
        $region23: #{tpu_custom_call.1} parent=11 // pred_region
          %310 = vsyncadd [#allocation10], 0
          %s311 = sshll.u32 %s4, 4
          %s312 = int_to_ptr.hbm [resolvable:$true] %s311
          %s313 = sshll.u32 [#allocation9], 4
          %s314 = int_to_ptr.vmem [resolvable:$true] %s313
          %319 = dma.hbm_to_vmem [thread:$0]  %s312, 6144, %s314, [#allocation10], 128, 128, 8
        $region24: #{tpu_custom_call.1} parent=11 // pred_fallthru
          _
        // Predicated region
        $region25: #{tpu_custom_call.1} parent=11 // pred_check
          %p320 = pneg %p164
        $region26: #{tpu_custom_call.1} parent=11 // pred_check_branch
          %322 = sbr.rel (%p320) target = $region28
        $region27: #{tpu_custom_call.1} parent=11 // pred_region
          %324 = vsyncadd [#allocation10], 0
          %s326 = sshll.u32 %s5, 4
          %s327 = int_to_ptr.hbm [resolvable:$true] %s326
          %s328 = sshll.u32 [#allocation11], 4
          %s329 = int_to_ptr.vmem [resolvable:$true] %s328
          %331 = dma.hbm_to_vmem [thread:$0]  %s327, 32, %s329, [#allocation10]
        $region28: #{tpu_custom_call.1} parent=11 // pred_fallthru
          _
        // Predicated region
        $region29: #{tpu_custom_call.1} parent=11 // pred_check
          %p332 = pneg %p185
        $region30: #{tpu_custom_call.1} parent=11 // pred_check_branch
          %334 = sbr.rel (%p332) target = $region32
        $region31: #{tpu_custom_call.1} parent=11 // pred_region
          %336 = vsyncadd [#allocation13], 0
          %s337 = sshll.u32 %s6, 4
          %s338 = int_to_ptr.hbm [resolvable:$true] %s337
          %s339 = sshll.u32 [#allocation12], 4
          %s340 = int_to_ptr.vmem [resolvable:$true] %s339
          %345 = dma.hbm_to_vmem [thread:$0]  %s338, 6144, %s340, [#allocation13], 192, 192, 12
        $region32: #{tpu_custom_call.1} parent=11 // pred_fallthru
          _
        // Predicated region
        $region33: #{tpu_custom_call.1} parent=11 // pred_check
          %p346 = pneg %p206
        $region34: #{tpu_custom_call.1} parent=11 // pred_check_branch
          %348 = sbr.rel (%p346) target = $region36
        $region35: #{tpu_custom_call.1} parent=11 // pred_region
          _
        $region36: #{tpu_custom_call.1} parent=11 // pred_fallthru
          _
        // Predicated region
        $region37: #{tpu_custom_call.1} parent=11 // pred_check
          %p349 = pneg %p227
        $region38: #{tpu_custom_call.1} parent=11 // pred_check_branch
          %351 = sbr.rel (%p349) target = $region40
        $region39: #{tpu_custom_call.1} parent=11 // pred_region
          _
        $region40: #{tpu_custom_call.1} parent=11 // pred_fallthru
          _
        // Predicated region
        $region41: #{tpu_custom_call.1} parent=11 // pred_check
          %p352 = pneg %p248
        $region42: #{tpu_custom_call.1} parent=11 // pred_check_branch
          %354 = sbr.rel (%p352) target = $region44
        $region43: #{tpu_custom_call.1} parent=11 // pred_region
          _
        $region44: #{tpu_custom_call.1} parent=11 // pred_fallthru
          _
      $region12: #{tpu_custom_call.1} parent=5 // pred_fallthru
        _
      %p355 = scmp.lt.s32.totalorder %s28, 2
      // Predicated region
      $region45: #{tpu_custom_call.1} parent=5 // pred_check
        %p356 = pneg %p355
      $region46: #{tpu_custom_call.1} parent=5 // pred_check_branch
        %358 = sbr.rel (%p356) target = $region48
      $region47: #{tpu_custom_call.1} parent=5 // pred_region
        // Predicated region
        $region49: #{tpu_custom_call.1} parent=47 // pred_check
          %p359 = pneg %p48
        $region50: #{tpu_custom_call.1} parent=47 // pred_check_branch
          %361 = sbr.rel (%p359) target = $region52
        $region51: #{tpu_custom_call.1} parent=47 // pred_region
          %s362 = sand.u32 %s38, 1
          %s363 = scalar_lea.sflag [#allocation4], %s362
          %s364 = sand.u32 %s38, 1
          %s365 = smul.addr %s364, 16
          %s366 = scalar_lea.vmem [#allocation3], %s365
          %368 = vsyncadd %s363, 0
          %s369 = smul.addr %s28, 2
          %s370 = smul.addr %s369, 8
          %s371 = scalar_lea.hbm %s0, %s370
          %s373 = sshll.u32 %s371, 4
          %s374 = int_to_ptr.hbm [resolvable:$true] %s373
          %s375 = sshll.u32 %s366, 4
          %s376 = int_to_ptr.vmem [resolvable:$true] %s375
          %378 = dma.hbm_to_vmem [thread:$0]  %s374, 256, %s376, %s363
        $region52: #{tpu_custom_call.1} parent=47 // pred_fallthru
          _
        // Predicated region
        $region53: #{tpu_custom_call.1} parent=47 // pred_check
          %p379 = pneg %p74
        $region54: #{tpu_custom_call.1} parent=47 // pred_check_branch
          %381 = sbr.rel (%p379) target = $region56
        $region55: #{tpu_custom_call.1} parent=47 // pred_region
          %s382 = sand.u32 %s28, 1
          %s383 = scalar_lea.sflag [#allocation7], %s382
          %s384 = sand.u32 %s64, 1
          %s385 = smul.addr %s384, 16
          %s386 = scalar_lea.vmem [#allocation6], %s385
          %388 = vsyncadd %s383, 0
          %s389 = smul.addr %s28, 2
          %s390 = smul.addr %s389, 8
          %s391 = scalar_lea.hbm %s1, %s390
          %s393 = sshll.u32 %s391, 4
          %s394 = int_to_ptr.hbm [resolvable:$true] %s393
          %s395 = sshll.u32 %s386, 4
          %s396 = int_to_ptr.vmem [resolvable:$true] %s395
          %398 = dma.hbm_to_vmem [thread:$0]  %s394, 256, %s396, %s383
        $region56: #{tpu_custom_call.1} parent=47 // pred_fallthru
          _
      $region48: #{tpu_custom_call.1} parent=5 // pred_fallthru
        _
      %p399 = scmp.le.s32.totalorder 1, %s28
      %p400 = scmp.lt.s32.totalorder %s28, 3
      %p401 = pnand %p399, %p400
      %p402 = pneg %p401
      // Predicated region
      $region57: #{tpu_custom_call.1} parent=5 // pred_check
        _
      $region58: #{tpu_custom_call.1} parent=5 // pred_check_branch
        %404 = sbr.rel (%p401) target = $region60
      $region59: #{tpu_custom_call.1} parent=5 // pred_region
        %s405 = ssub.s32 %s28, 1
        %s406 = sand.u32 %s41, 1
        %s407 = scalar_lea.sflag [#allocation4], %s406
        %s408 = sand.u32 %s41, 1
        %s409 = smul.addr %s408, 16
        %s410 = scalar_lea.vmem [#allocation3], %s409
        // Predicated region
        $region61: #{tpu_custom_call.1} parent=59 // pred_check
          %p411 = pneg %p54
        $region62: #{tpu_custom_call.1} parent=59 // pred_check_branch
          %413 = sbr.rel (%p411) target = $region64
        $region63: #{tpu_custom_call.1} parent=59 // pred_region
          %415 = dma.done %s407, 256
        $region64: #{tpu_custom_call.1} parent=59 // pred_fallthru
          _
        %s416 = sand.u32 %s33, 1
        %s417 = scalar_lea.sflag [#allocation7], %s416
        %s418 = sand.u32 %s67, 1
        %s419 = smul.addr %s418, 16
        %s420 = scalar_lea.vmem [#allocation6], %s419
        // Predicated region
        $region65: #{tpu_custom_call.1} parent=59 // pred_check
          %p421 = pneg %p80
        $region66: #{tpu_custom_call.1} parent=59 // pred_check_branch
          %423 = sbr.rel (%p421) target = $region68
        $region67: #{tpu_custom_call.1} parent=59 // pred_region
          %425 = dma.done %s417, 256
        $region68: #{tpu_custom_call.1} parent=59 // pred_fallthru
          _
        // Predicated region
        $region69: #{tpu_custom_call.1} parent=59 // pred_check
          %p426 = pneg %p101
        $region70: #{tpu_custom_call.1} parent=59 // pred_check_branch
          %428 = sbr.rel (%p426) target = $region72
        $region71: #{tpu_custom_call.1} parent=59 // pred_region
          %430 = dma.done [#allocation7], 6144
        $region72: #{tpu_custom_call.1} parent=59 // pred_fallthru
          _
        // Predicated region
        $region73: #{tpu_custom_call.1} parent=59 // pred_check
          %p431 = pneg %p143
        $region74: #{tpu_custom_call.1} parent=59 // pred_check_branch
          %433 = sbr.rel (%p431) target = $region76
        $region75: #{tpu_custom_call.1} parent=59 // pred_region
          %435 = dma.done [#allocation10], 6144
        $region76: #{tpu_custom_call.1} parent=59 // pred_fallthru
          _
        // Predicated region
        $region77: #{tpu_custom_call.1} parent=59 // pred_check
          %p436 = pneg %p164
        $region78: #{tpu_custom_call.1} parent=59 // pred_check_branch
          %438 = sbr.rel (%p436) target = $region80
        $region79: #{tpu_custom_call.1} parent=59 // pred_region
          %440 = dma.done [#allocation10], 32
        $region80: #{tpu_custom_call.1} parent=59 // pred_fallthru
          _
        // Predicated region
        $region81: #{tpu_custom_call.1} parent=59 // pred_check
          %p441 = pneg %p185
        $region82: #{tpu_custom_call.1} parent=59 // pred_check_branch
          %443 = sbr.rel (%p441) target = $region84
        $region83: #{tpu_custom_call.1} parent=59 // pred_region
          %445 = dma.done [#allocation13], 6144
        $region84: #{tpu_custom_call.1} parent=59 // pred_fallthru
          _
        %s446 = sand.u32 %s41, 1
        %s447 = scalar_lea.sflag [#allocation4], %s446
        %s448 = sand.u32 %s41, 1
        %s449 = smul.addr %s448, 16
        %s450 = scalar_lea.vmem [#allocation3], %s449
        %p451 = pneg %p54
        %p452 = pneg %p51
        %s453 = sand.u32 %s33, 1
        %s454 = scalar_lea.sflag [#allocation7], %s453
        %s455 = sand.u32 %s67, 1
        %s456 = smul.addr %s455, 16
        %s457 = scalar_lea.vmem [#allocation6], %s456
        %p458 = pneg %p80
        %p459 = pneg %p77
        %p460 = pneg %p101
        %p461 = pneg %p98
        %p462 = pneg %p122
        %p463 = pneg %p119
        %p464 = pneg %p143
        %p465 = pneg %p140
        %p466 = pneg %p164
        %p467 = pneg %p161
        %p468 = pneg %p185
        %p469 = pneg %p182
        %p470 = pneg %p206
        %p471 = pneg %p203
        %p472 = pneg %p227
        %p473 = pneg %p224
        %p474 = pneg %p248
        %p475 = pneg %p245
        %p476 = pneg %p274
        %p477 = pneg %p271
        %s478 = sand.u32 %s261, 1
        %s479 = scalar_lea.sflag [#allocation5], %s478
        %s480 = sand.u32 %s261, 1
        %s481 = smul.addr %s480, 8
        %s482 = scalar_lea.vmem [#allocation14], %s481
        %v483 = vld [vmem:[%s420] sm:$0xff]
        %v484 = vld [vmem:[%s420 + $0x8] sm:$0xff]
        %v485 = vpack.c.bf16 %v483, %v483
        %v486 = vpack.c.bf16 %v484, %v484
        %v487 = vld [vmem:[#allocation8] sm:$0xff]
        %v488 = vld [vmem:[#allocation8 + $0x8] sm:$0xf]
        %v489 = vld [vmem:[#allocation8 + $0xc] sm:$0xff]
        %v490 = vld [vmem:[#allocation8 + $0x14] sm:$0xf]
        %v491 = vld [vmem:[#allocation8 + $0x18] sm:$0xff]
        %v492 = vld [vmem:[#allocation8 + $0x20] sm:$0xf]
        %v493 = vld [vmem:[#allocation8 + $0x24] sm:$0xff]
        %v494 = vld [vmem:[#allocation8 + $0x2c] sm:$0xf]
        %v495 = vld [vmem:[#allocation8 + $0x30] sm:$0xff]
        %v496 = vld [vmem:[#allocation8 + $0x38] sm:$0xf]
        %v497 = vld [vmem:[#allocation8 + $0x3c] sm:$0xff]
        %v498 = vld [vmem:[#allocation8 + $0x44] sm:$0xf]
        %v499 = vld [vmem:[#allocation8 + $0x48] sm:$0xff]
        %v500 = vld [vmem:[#allocation8 + $0x50] sm:$0xf]
        %v501 = vld [vmem:[#allocation8 + $0x54] sm:$0xff]
        %v502 = vld [vmem:[#allocation8 + $0x5c] sm:$0xf]
        %v503 = vld [vmem:[#allocation8 + $0x60] sm:$0xff]
        %v504 = vld [vmem:[#allocation8 + $0x68] sm:$0xf]
        %v505 = vld [vmem:[#allocation8 + $0x6c] sm:$0xff]
        %v506 = vld [vmem:[#allocation8 + $0x74] sm:$0xf]
        %v507 = vld [vmem:[#allocation8 + $0x78] sm:$0xff]
        %v508 = vld [vmem:[#allocation8 + $0x80] sm:$0xf]
        %v509 = vld [vmem:[#allocation8 + $0x84] sm:$0xff]
        %v510 = vld [vmem:[#allocation8 + $0x8c] sm:$0xf]
        %v511 = vld [vmem:[#allocation8 + $0x90] sm:$0xff]
        %v512 = vld [vmem:[#allocation8 + $0x98] sm:$0xf]
        %v513 = vld [vmem:[#allocation8 + $0x9c] sm:$0xff]
        %v514 = vld [vmem:[#allocation8 + $0xa4] sm:$0xf]
        %v515 = vld [vmem:[#allocation8 + $0xa8] sm:$0xff]
        %v516 = vld [vmem:[#allocation8 + $0xb0] sm:$0xf]
        %v517 = vld [vmem:[#allocation8 + $0xb4] sm:$0xff]
        %v518 = vld [vmem:[#allocation8 + $0xbc] sm:$0xf]
        %v519 = vld [vmem:[#allocation8 + $0xc0] sm:$0xff]
        %v520 = vld [vmem:[#allocation8 + $0xc8] sm:$0xf]
        %v521 = vld [vmem:[#allocation8 + $0xcc] sm:$0xff]
        %v522 = vld [vmem:[#allocation8 + $0xd4] sm:$0xf]
        %v523 = vld [vmem:[#allocation8 + $0xd8] sm:$0xff]
        %v524 = vld [vmem:[#allocation8 + $0xe0] sm:$0xf]
        %v525 = vld [vmem:[#allocation8 + $0xe4] sm:$0xff]
        %v526 = vld [vmem:[#allocation8 + $0xec] sm:$0xf]
        %v527 = vld [vmem:[#allocation8 + $0xf0] sm:$0xff]
        %v528 = vld [vmem:[#allocation8 + $0xf8] sm:$0xf]
        %v529 = vld [vmem:[#allocation8 + $0xfc] sm:$0xff]
        %v530 = vld [vmem:[#allocation8 + $0x104] sm:$0xf]
        %v531 = vld [vmem:[#allocation8 + $0x108] sm:$0xff]
        %v532 = vld [vmem:[#allocation8 + $0x110] sm:$0xf]
        %v533 = vld [vmem:[#allocation8 + $0x114] sm:$0xff]
        %v534 = vld [vmem:[#allocation8 + $0x11c] sm:$0xf]
        %v535 = vld [vmem:[#allocation8 + $0x120] sm:$0xff]
        %v536 = vld [vmem:[#allocation8 + $0x128] sm:$0xf]
        %v537 = vld [vmem:[#allocation8 + $0x12c] sm:$0xff]
        %v538 = vld [vmem:[#allocation8 + $0x134] sm:$0xf]
        %v539 = vld [vmem:[#allocation8 + $0x138] sm:$0xff]
        %v540 = vld [vmem:[#allocation8 + $0x140] sm:$0xf]
        %v541 = vld [vmem:[#allocation8 + $0x144] sm:$0xff]
        %v542 = vld [vmem:[#allocation8 + $0x14c] sm:$0xf]
        %v543 = vld [vmem:[#allocation8 + $0x150] sm:$0xff]
        %v544 = vld [vmem:[#allocation8 + $0x158] sm:$0xf]
        %v545 = vld [vmem:[#allocation8 + $0x15c] sm:$0xff]
        %v546 = vld [vmem:[#allocation8 + $0x164] sm:$0xf]
        %v547 = vld [vmem:[#allocation8 + $0x168] sm:$0xff]
        %v548 = vld [vmem:[#allocation8 + $0x170] sm:$0xf]
        %v549 = vld [vmem:[#allocation8 + $0x174] sm:$0xff]
        %v550 = vld [vmem:[#allocation8 + $0x17c] sm:$0xf]
        %v551 = vld [vmem:[%s3] sm:$0x7]
        %v553 = vperm.slane %v551, 0
        %v554 = vperm.slane %v551, 1
        %v555 = vperm.slane %v551, 2
        %v623 = vunpack.c.l.b16 %v487
        %v624 = vunpack.c.h.b16 %v487
        %v625 = vunpack.c.l.b16 %v488
        %v626 = vunpack.c.l.b16 %v489
        %v627 = vunpack.c.h.b16 %v489
        %v628 = vunpack.c.l.b16 %v490
        %v629 = vunpack.c.l.b16 %v491
        %v630 = vunpack.c.h.b16 %v491
        %v631 = vunpack.c.l.b16 %v492
        %v632 = vunpack.c.l.b16 %v493
        %v633 = vunpack.c.h.b16 %v493
        %v634 = vunpack.c.l.b16 %v494
        %v635 = vunpack.c.l.b16 %v495
        %v636 = vunpack.c.h.b16 %v495
        %v637 = vunpack.c.l.b16 %v496
        %v638 = vunpack.c.l.b16 %v497
        %v639 = vunpack.c.h.b16 %v497
        %v640 = vunpack.c.l.b16 %v498
        %v641 = vunpack.c.l.b16 %v499
        %v642 = vunpack.c.h.b16 %v499
        %v643 = vunpack.c.l.b16 %v500
        %v644 = vunpack.c.l.b16 %v501
        %v645 = vunpack.c.h.b16 %v501
        %v646 = vunpack.c.l.b16 %v502
        %v647 = vunpack.c.l.b16 %v503
        %v648 = vunpack.c.h.b16 %v503
        %v649 = vunpack.c.l.b16 %v504
        %v650 = vunpack.c.l.b16 %v505
        %v651 = vunpack.c.h.b16 %v505
        %v652 = vunpack.c.l.b16 %v506
        %v653 = vunpack.c.l.b16 %v507
        %v654 = vunpack.c.h.b16 %v507
        %v655 = vunpack.c.l.b16 %v508
        %v656 = vunpack.c.l.b16 %v509
        %v657 = vunpack.c.h.b16 %v509
        %v658 = vunpack.c.l.b16 %v510
        %v659 = vunpack.c.l.b16 %v511
        %v660 = vunpack.c.h.b16 %v511
        %v661 = vunpack.c.l.b16 %v512
        %v662 = vunpack.c.l.b16 %v513
        %v663 = vunpack.c.h.b16 %v513
        %v664 = vunpack.c.l.b16 %v514
        %v665 = vunpack.c.l.b16 %v515
        %v666 = vunpack.c.h.b16 %v515
        %v667 = vunpack.c.l.b16 %v516
        %v668 = vunpack.c.l.b16 %v517
        %v669 = vunpack.c.h.b16 %v517
        %v670 = vunpack.c.l.b16 %v518
        %v671 = vunpack.c.l.b16 %v519
        %v672 = vunpack.c.h.b16 %v519
        %v673 = vunpack.c.l.b16 %v520
        %v674 = vunpack.c.l.b16 %v521
        %v675 = vunpack.c.h.b16 %v521
        %v676 = vunpack.c.l.b16 %v522
        %v677 = vunpack.c.l.b16 %v523
        %v678 = vunpack.c.h.b16 %v523
        %v679 = vunpack.c.l.b16 %v524
        %v680 = vunpack.c.l.b16 %v525
        %v681 = vunpack.c.h.b16 %v525
        %v682 = vunpack.c.l.b16 %v526
        %v683 = vunpack.c.l.b16 %v527
        %v684 = vunpack.c.h.b16 %v527
        %v685 = vunpack.c.l.b16 %v528
        %v686 = vunpack.c.l.b16 %v529
        %v687 = vunpack.c.h.b16 %v529
        %v688 = vunpack.c.l.b16 %v530
        %v689 = vunpack.c.l.b16 %v531
        %v690 = vunpack.c.h.b16 %v531
        %v691 = vunpack.c.l.b16 %v532
        %v692 = vunpack.c.l.b16 %v533
        %v693 = vunpack.c.h.b16 %v533
        %v694 = vunpack.c.l.b16 %v534
        %v695 = vunpack.c.l.b16 %v535
        %v696 = vunpack.c.h.b16 %v535
        %v697 = vunpack.c.l.b16 %v536
        %v698 = vunpack.c.l.b16 %v537
        %v699 = vunpack.c.h.b16 %v537
        %v700 = vunpack.c.l.b16 %v538
        %v701 = vunpack.c.l.b16 %v539
        %v702 = vunpack.c.h.b16 %v539
        %v703 = vunpack.c.l.b16 %v540
        %v704 = vunpack.c.l.b16 %v541
        %v705 = vunpack.c.h.b16 %v541
        %v706 = vunpack.c.l.b16 %v542
        %v707 = vunpack.c.l.b16 %v543
        %v708 = vunpack.c.h.b16 %v543
        %v709 = vunpack.c.l.b16 %v544
        %v710 = vunpack.c.l.b16 %v545
        %v711 = vunpack.c.h.b16 %v545
        %v712 = vunpack.c.l.b16 %v546
        %v713 = vunpack.c.l.b16 %v547
        %v714 = vunpack.c.h.b16 %v547
        %v715 = vunpack.c.l.b16 %v548
        %v716 = vunpack.c.l.b16 %v549
        %v717 = vunpack.c.h.b16 %v549
        %v718 = vunpack.c.l.b16 %v550
        %v719 = vpack.c.b16 %v626, %v623
        %v720 = vpack.c.b16 %v627, %v624
        %v721 = vpack.c.b16 %v628, %v625
        %v722 = vpack.c.b16 %v632, %v629
        %v723 = vpack.c.b16 %v633, %v630
        %v724 = vpack.c.b16 %v634, %v631
        %v725 = vpack.c.b16 %v638, %v635
        %v726 = vpack.c.b16 %v639, %v636
        %v727 = vpack.c.b16 %v640, %v637
        %v728 = vpack.c.b16 %v644, %v641
        %v729 = vpack.c.b16 %v645, %v642
        %v730 = vpack.c.b16 %v646, %v643
        %v731 = vpack.c.b16 %v650, %v647
        %v732 = vpack.c.b16 %v651, %v648
        %v733 = vpack.c.b16 %v652, %v649
        %v734 = vpack.c.b16 %v656, %v653
        %v735 = vpack.c.b16 %v657, %v654
        %v736 = vpack.c.b16 %v658, %v655
        %v737 = vpack.c.b16 %v662, %v659
        %v738 = vpack.c.b16 %v663, %v660
        %v739 = vpack.c.b16 %v664, %v661
        %v740 = vpack.c.b16 %v668, %v665
        %v741 = vpack.c.b16 %v669, %v666
        %v742 = vpack.c.b16 %v670, %v667
        %v743 = vpack.c.b16 %v674, %v671
        %v744 = vpack.c.b16 %v675, %v672
        %v745 = vpack.c.b16 %v676, %v673
        %v746 = vpack.c.b16 %v680, %v677
        %v747 = vpack.c.b16 %v681, %v678
        %v748 = vpack.c.b16 %v682, %v679
        %v749 = vpack.c.b16 %v686, %v683
        %v750 = vpack.c.b16 %v687, %v684
        %v751 = vpack.c.b16 %v688, %v685
        %v752 = vpack.c.b16 %v692, %v689
        %v753 = vpack.c.b16 %v693, %v690
        %v754 = vpack.c.b16 %v694, %v691
        %v755 = vpack.c.b16 %v698, %v695
        %v756 = vpack.c.b16 %v699, %v696
        %v757 = vpack.c.b16 %v700, %v697
        %v758 = vpack.c.b16 %v704, %v701
        %v759 = vpack.c.b16 %v705, %v702
        %v760 = vpack.c.b16 %v706, %v703
        %v761 = vpack.c.b16 %v710, %v707
        %v762 = vpack.c.b16 %v711, %v708
        %v763 = vpack.c.b16 %v712, %v709
        %v764 = vpack.c.b16 %v716, %v713
        %v765 = vpack.c.b16 %v717, %v714
        %v766 = vpack.c.b16 %v718, %v715
        %815 = vmatpush.bf16.msra.mxu0 %v740
        %816 = vmatpush.bf16.msra.mxu0 %v737
        %817 = vmatpush.bf16.msra.mxu0 %v734
        %818 = vmatpush.bf16.msra.mxu0 %v731
        %819 = vmatpush.bf16.msra.mxu0 %v728
        %820 = vmatpush.bf16.msra.mxu0 %v725
        %821 = vmatpush.bf16.msra.mxu0 %v722
        %822 = vmatpush.bf16.msra.mxu0 %v719
        %823 = vmatmul.bf16.gmra.mxu0 %v485
        %v824 = vpop.f32.mrf.mxu0
        %v825 = vadd.f32 %v553, %v824
        %v826 = vpop.f32.mrf.mxu0
        %827 = vdwg.mxu0
        %828 = vmatpush.bf16.msra.mxu0 %v764
        %829 = vmatpush.bf16.msra.mxu0 %v761
        %830 = vmatpush.bf16.msra.mxu0 %v758
        %831 = vmatpush.bf16.msra.mxu0 %v755
        %832 = vmatpush.bf16.msra.mxu0 %v752
        %833 = vmatpush.bf16.msra.mxu0 %v749
        %834 = vmatpush.bf16.msra.mxu0 %v746
        %835 = vmatpush.bf16.msra.mxu0 %v743
        %836 = vmatmul.bf16.gmra.mxu0 %v486
        %v837 = vpop.f32.mrf.mxu0
        %v838 = vadd.f32 %v825, %v837
        %v839 = vpop.f32.mrf.mxu0
        %840 = vdwg.mxu0
        %841 = vmatpush.bf16.msra.mxu0 %v741
        %842 = vmatpush.bf16.msra.mxu0 %v738
        %843 = vmatpush.bf16.msra.mxu0 %v735
        %844 = vmatpush.bf16.msra.mxu0 %v732
        %845 = vmatpush.bf16.msra.mxu0 %v729
        %846 = vmatpush.bf16.msra.mxu0 %v726
        %847 = vmatpush.bf16.msra.mxu0 %v723
        %848 = vmatpush.bf16.msra.mxu0 %v720
        %849 = vmatmul.bf16.gmra.mxu0 %v485
        %v850 = vpop.f32.mrf.mxu0
        %v851 = vadd.f32 %v554, %v850
        %v852 = vpop.f32.mrf.mxu0
        %853 = vdwg.mxu0
        %854 = vmatpush.bf16.msra.mxu0 %v765
        %855 = vmatpush.bf16.msra.mxu0 %v762
        %856 = vmatpush.bf16.msra.mxu0 %v759
        %857 = vmatpush.bf16.msra.mxu0 %v756
        %858 = vmatpush.bf16.msra.mxu0 %v753
        %859 = vmatpush.bf16.msra.mxu0 %v750
        %860 = vmatpush.bf16.msra.mxu0 %v747
        %861 = vmatpush.bf16.msra.mxu0 %v744
        %862 = vmatmul.bf16.gmra.mxu0 %v486
        %v863 = vpop.f32.mrf.mxu0
        %v864 = vadd.f32 %v851, %v863
        %v865 = vpop.f32.mrf.mxu0
        %866 = vdwg.mxu0
        %867 = vmatpush.bf16.msra.mxu0 %v742
        %868 = vmatpush.bf16.msra.mxu0 %v739
        %869 = vmatpush.bf16.msra.mxu0 %v736
        %870 = vmatpush.bf16.msra.mxu0 %v733
        %871 = vmatpush.bf16.msra.mxu0 %v730
        %872 = vmatpush.bf16.msra.mxu0 %v727
        %873 = vmatpush.bf16.msra.mxu0 %v724
        %874 = vmatpush.bf16.msra.mxu0 %v721
        %875 = vmatmul.bf16.gmra.mxu0 %v485
        %v876 = vpop.f32.mrf.mxu0
        %v877 = vadd.f32 %v555, %v876
        %v878 = vpop.f32.mrf.mxu0
        %879 = vdwg.mxu0
        %880 = vmatpush.bf16.msra.mxu0 %v766
        %881 = vmatpush.bf16.msra.mxu0 %v763
        %882 = vmatpush.bf16.msra.mxu0 %v760
        %883 = vmatpush.bf16.msra.mxu0 %v757
        %884 = vmatpush.bf16.msra.mxu0 %v754
        %885 = vmatpush.bf16.msra.mxu0 %v751
        %886 = vmatpush.bf16.msra.mxu0 %v748
        %887 = vmatpush.bf16.msra.mxu0 %v745
        %888 = vmatmul.bf16.gmra.mxu0 %v486
        %v889 = vpop.f32.mrf.mxu0
        %v890 = vadd.f32 %v877, %v889
        %v891 = vpop.f32.mrf.mxu0
        %892 = vdwg.mxu0
        %v893 = vmax.f32 %v838, 0.0
        %v894 = vmax.f32 %v864, 0.0
        %v895 = vmax.f32 %v890, 0.0
        %v896 = vpack.c.bf16 %v893, %v893
        %v897 = vpack.c.bf16 %v894, %v894
        %v898 = vpack.c.bf16 %v895, %v895
        %v899 = vld [vmem:[#allocation9] sm:$0xff]
        %v900 = vld [vmem:[#allocation9 + $0x8] sm:$0xff]
        %v901 = vld [vmem:[#allocation9 + $0x10] sm:$0xff]
        %v902 = vld [vmem:[#allocation9 + $0x18] sm:$0xff]
        %v903 = vld [vmem:[#allocation9 + $0x20] sm:$0xff]
        %v904 = vld [vmem:[#allocation9 + $0x28] sm:$0xff]
        %v905 = vld [vmem:[#allocation9 + $0x30] sm:$0xff]
        %v906 = vld [vmem:[#allocation9 + $0x38] sm:$0xff]
        %v907 = vld [vmem:[#allocation9 + $0x40] sm:$0xff]
        %v908 = vld [vmem:[#allocation9 + $0x48] sm:$0xff]
        %v909 = vld [vmem:[#allocation9 + $0x50] sm:$0xff]
        %v910 = vld [vmem:[#allocation9 + $0x58] sm:$0xff]
        %v911 = vld [vmem:[#allocation9 + $0x60] sm:$0xff]
        %v912 = vld [vmem:[#allocation9 + $0x68] sm:$0xff]
        %v913 = vld [vmem:[#allocation9 + $0x70] sm:$0xff]
        %v914 = vld [vmem:[#allocation9 + $0x78] sm:$0xff]
        %v915 = vld [vmem:[#allocation9 + $0x80] sm:$0xff]
        %v916 = vld [vmem:[#allocation9 + $0x88] sm:$0xff]
        %v917 = vld [vmem:[#allocation9 + $0x90] sm:$0xff]
        %v918 = vld [vmem:[#allocation9 + $0x98] sm:$0xff]
        %v919 = vld [vmem:[#allocation9 + $0xa0] sm:$0xff]
        %v920 = vld [vmem:[#allocation9 + $0xa8] sm:$0xff]
        %v921 = vld [vmem:[#allocation9 + $0xb0] sm:$0xff]
        %v922 = vld [vmem:[#allocation9 + $0xb8] sm:$0xff]
        %v923 = vld [vmem:[#allocation9 + $0xc0] sm:$0xff]
        %v924 = vld [vmem:[#allocation9 + $0xc8] sm:$0xff]
        %v925 = vld [vmem:[#allocation9 + $0xd0] sm:$0xff]
        %v926 = vld [vmem:[#allocation9 + $0xd8] sm:$0xff]
        %v927 = vld [vmem:[#allocation9 + $0xe0] sm:$0xff]
        %v928 = vld [vmem:[#allocation9 + $0xe8] sm:$0xff]
        %v929 = vld [vmem:[#allocation9 + $0xf0] sm:$0xff]
        %v930 = vld [vmem:[#allocation9 + $0xf8] sm:$0xff]
        %v931 = vld [vmem:[#allocation9 + $0x100] sm:$0xff]
        %v932 = vld [vmem:[#allocation9 + $0x108] sm:$0xff]
        %v933 = vld [vmem:[#allocation9 + $0x110] sm:$0xff]
        %v934 = vld [vmem:[#allocation9 + $0x118] sm:$0xff]
        %v935 = vld [vmem:[#allocation9 + $0x120] sm:$0xff]
        %v936 = vld [vmem:[#allocation9 + $0x128] sm:$0xff]
        %v937 = vld [vmem:[#allocation9 + $0x130] sm:$0xff]
        %v938 = vld [vmem:[#allocation9 + $0x138] sm:$0xff]
        %v939 = vld [vmem:[#allocation9 + $0x140] sm:$0xff]
        %v940 = vld [vmem:[#allocation9 + $0x148] sm:$0xff]
        %v941 = vld [vmem:[#allocation9 + $0x150] sm:$0xff]
        %v942 = vld [vmem:[#allocation9 + $0x158] sm:$0xff]
        %v943 = vld [vmem:[#allocation9 + $0x160] sm:$0xff]
        %v944 = vld [vmem:[#allocation9 + $0x168] sm:$0xff]
        %v945 = vld [vmem:[#allocation9 + $0x170] sm:$0xff]
        %v946 = vld [vmem:[#allocation9 + $0x178] sm:$0xff]
        %v947 = vld [vmem:[#allocation11] sm:$0x3]
        %v949 = vperm.slane %v947, 0
        %v950 = vperm.slane %v947, 1
        %v1001 = vunpack.c.l.b16 %v899
        %v1002 = vunpack.c.h.b16 %v899
        %v1003 = vunpack.c.l.b16 %v900
        %v1004 = vunpack.c.h.b16 %v900
        %v1005 = vunpack.c.l.b16 %v901
        %v1006 = vunpack.c.h.b16 %v901
        %v1007 = vunpack.c.l.b16 %v902
        %v1008 = vunpack.c.h.b16 %v902
        %v1009 = vunpack.c.l.b16 %v903
        %v1010 = vunpack.c.h.b16 %v903
        %v1011 = vunpack.c.l.b16 %v904
        %v1012 = vunpack.c.h.b16 %v904
        %v1013 = vunpack.c.l.b16 %v905
        %v1014 = vunpack.c.h.b16 %v905
        %v1015 = vunpack.c.l.b16 %v906
        %v1016 = vunpack.c.h.b16 %v906
        %v1017 = vunpack.c.l.b16 %v907
        %v1018 = vunpack.c.h.b16 %v907
        %v1019 = vunpack.c.l.b16 %v908
        %v1020 = vunpack.c.h.b16 %v908
        %v1021 = vunpack.c.l.b16 %v909
        %v1022 = vunpack.c.h.b16 %v909
        %v1023 = vunpack.c.l.b16 %v910
        %v1024 = vunpack.c.h.b16 %v910
        %v1025 = vunpack.c.l.b16 %v911
        %v1026 = vunpack.c.h.b16 %v911
        %v1027 = vunpack.c.l.b16 %v912
        %v1028 = vunpack.c.h.b16 %v912
        %v1029 = vunpack.c.l.b16 %v913
        %v1030 = vunpack.c.h.b16 %v913
        %v1031 = vunpack.c.l.b16 %v914
        %v1032 = vunpack.c.h.b16 %v914
        %v1033 = vunpack.c.l.b16 %v915
        %v1034 = vunpack.c.h.b16 %v915
        %v1035 = vunpack.c.l.b16 %v916
        %v1036 = vunpack.c.h.b16 %v916
        %v1037 = vunpack.c.l.b16 %v917
        %v1038 = vunpack.c.h.b16 %v917
        %v1039 = vunpack.c.l.b16 %v918
        %v1040 = vunpack.c.h.b16 %v918
        %v1041 = vunpack.c.l.b16 %v919
        %v1042 = vunpack.c.h.b16 %v919
        %v1043 = vunpack.c.l.b16 %v920
        %v1044 = vunpack.c.h.b16 %v920
        %v1045 = vunpack.c.l.b16 %v921
        %v1046 = vunpack.c.h.b16 %v921
        %v1047 = vunpack.c.l.b16 %v922
        %v1048 = vunpack.c.h.b16 %v922
        %v1049 = vunpack.c.l.b16 %v923
        %v1050 = vunpack.c.h.b16 %v923
        %v1051 = vunpack.c.l.b16 %v924
        %v1052 = vunpack.c.h.b16 %v924
        %v1053 = vunpack.c.l.b16 %v925
        %v1054 = vunpack.c.h.b16 %v925
        %v1055 = vunpack.c.l.b16 %v926
        %v1056 = vunpack.c.h.b16 %v926
        %v1057 = vunpack.c.l.b16 %v927
        %v1058 = vunpack.c.h.b16 %v927
        %v1059 = vunpack.c.l.b16 %v928
        %v1060 = vunpack.c.h.b16 %v928
        %v1061 = vunpack.c.l.b16 %v929
        %v1062 = vunpack.c.h.b16 %v929
        %v1063 = vunpack.c.l.b16 %v930
        %v1064 = vunpack.c.h.b16 %v930
        %v1065 = vunpack.c.l.b16 %v931
        %v1066 = vunpack.c.h.b16 %v931
        %v1067 = vunpack.c.l.b16 %v932
        %v1068 = vunpack.c.h.b16 %v932
        %v1069 = vunpack.c.l.b16 %v933
        %v1070 = vunpack.c.h.b16 %v933
        %v1071 = vunpack.c.l.b16 %v934
        %v1072 = vunpack.c.h.b16 %v934
        %v1073 = vunpack.c.l.b16 %v935
        %v1074 = vunpack.c.h.b16 %v935
        %v1075 = vunpack.c.l.b16 %v936
        %v1076 = vunpack.c.h.b16 %v936
        %v1077 = vunpack.c.l.b16 %v937
        %v1078 = vunpack.c.h.b16 %v937
        %v1079 = vunpack.c.l.b16 %v938
        %v1080 = vunpack.c.h.b16 %v938
        %v1081 = vunpack.c.l.b16 %v939
        %v1082 = vunpack.c.h.b16 %v939
        %v1083 = vunpack.c.l.b16 %v940
        %v1084 = vunpack.c.h.b16 %v940
        %v1085 = vunpack.c.l.b16 %v941
        %v1086 = vunpack.c.h.b16 %v941
        %v1087 = vunpack.c.l.b16 %v942
        %v1088 = vunpack.c.h.b16 %v942
        %v1089 = vunpack.c.l.b16 %v943
        %v1090 = vunpack.c.h.b16 %v943
        %v1091 = vunpack.c.l.b16 %v944
        %v1092 = vunpack.c.h.b16 %v944
        %v1093 = vunpack.c.l.b16 %v945
        %v1094 = vunpack.c.h.b16 %v945
        %v1095 = vunpack.c.l.b16 %v946
        %v1096 = vunpack.c.h.b16 %v946
        %v1097 = vpack.c.b16 %v1003, %v1001
        %v1098 = vpack.c.b16 %v1004, %v1002
        %v1099 = vpack.c.b16 %v1007, %v1005
        %v1100 = vpack.c.b16 %v1008, %v1006
        %v1101 = vpack.c.b16 %v1011, %v1009
        %v1102 = vpack.c.b16 %v1012, %v1010
        %v1103 = vpack.c.b16 %v1015, %v1013
        %v1104 = vpack.c.b16 %v1016, %v1014
        %v1105 = vpack.c.b16 %v1019, %v1017
        %v1106 = vpack.c.b16 %v1020, %v1018
        %v1107 = vpack.c.b16 %v1023, %v1021
        %v1108 = vpack.c.b16 %v1024, %v1022
        %v1109 = vpack.c.b16 %v1027, %v1025
        %v1110 = vpack.c.b16 %v1028, %v1026
        %v1111 = vpack.c.b16 %v1031, %v1029
        %v1112 = vpack.c.b16 %v1032, %v1030
        %v1113 = vpack.c.b16 %v1035, %v1033
        %v1114 = vpack.c.b16 %v1036, %v1034
        %v1115 = vpack.c.b16 %v1039, %v1037
        %v1116 = vpack.c.b16 %v1040, %v1038
        %v1117 = vpack.c.b16 %v1043, %v1041
        %v1118 = vpack.c.b16 %v1044, %v1042
        %v1119 = vpack.c.b16 %v1047, %v1045
        %v1120 = vpack.c.b16 %v1048, %v1046
        %v1121 = vpack.c.b16 %v1051, %v1049
        %v1122 = vpack.c.b16 %v1052, %v1050
        %v1123 = vpack.c.b16 %v1055, %v1053
        %v1124 = vpack.c.b16 %v1056, %v1054
        %v1125 = vpack.c.b16 %v1059, %v1057
        %v1126 = vpack.c.b16 %v1060, %v1058
        %v1127 = vpack.c.b16 %v1063, %v1061
        %v1128 = vpack.c.b16 %v1064, %v1062
        %v1129 = vpack.c.b16 %v1067, %v1065
        %v1130 = vpack.c.b16 %v1068, %v1066
        %v1131 = vpack.c.b16 %v1071, %v1069
        %v1132 = vpack.c.b16 %v1072, %v1070
        %v1133 = vpack.c.b16 %v1075, %v1073
        %v1134 = vpack.c.b16 %v1076, %v1074
        %v1135 = vpack.c.b16 %v1079, %v1077
        %v1136 = vpack.c.b16 %v1080, %v1078
        %v1137 = vpack.c.b16 %v1083, %v1081
        %v1138 = vpack.c.b16 %v1084, %v1082
        %v1139 = vpack.c.b16 %v1087, %v1085
        %v1140 = vpack.c.b16 %v1088, %v1086
        %v1141 = vpack.c.b16 %v1091, %v1089
        %v1142 = vpack.c.b16 %v1092, %v1090
        %v1143 = vpack.c.b16 %v1095, %v1093
        %v1144 = vpack.c.b16 %v1096, %v1094
        %1193 = vmatpush.bf16.msra.mxu0 %v1111
        %1194 = vmatpush.bf16.msra.mxu0 %v1109
        %1195 = vmatpush.bf16.msra.mxu0 %v1107
        %1196 = vmatpush.bf16.msra.mxu0 %v1105
        %1197 = vmatpush.bf16.msra.mxu0 %v1103
        %1198 = vmatpush.bf16.msra.mxu0 %v1101
        %1199 = vmatpush.bf16.msra.mxu0 %v1099
        %1200 = vmatpush.bf16.msra.mxu0 %v1097
        %1201 = vmatmul.bf16.gmra.mxu0 %v896
        %v1202 = vpop.f32.mrf.mxu0
        %v1203 = vadd.f32 %v949, %v1202
        %v1204 = vpop.f32.mrf.mxu0
        %1205 = vdwg.mxu0
        %1206 = vmatpush.bf16.msra.mxu0 %v1127
        %1207 = vmatpush.bf16.msra.mxu0 %v1125
        %1208 = vmatpush.bf16.msra.mxu0 %v1123
        %1209 = vmatpush.bf16.msra.mxu0 %v1121
        %1210 = vmatpush.bf16.msra.mxu0 %v1119
        %1211 = vmatpush.bf16.msra.mxu0 %v1117
        %1212 = vmatpush.bf16.msra.mxu0 %v1115
        %1213 = vmatpush.bf16.msra.mxu0 %v1113
        %1214 = vmatmul.bf16.gmra.mxu0 %v897
        %v1215 = vpop.f32.mrf.mxu0
        %v1216 = vadd.f32 %v1203, %v1215
        %v1217 = vpop.f32.mrf.mxu0
        %1218 = vdwg.mxu0
        %1219 = vmatpush.bf16.msra.mxu0 %v1143
        %1220 = vmatpush.bf16.msra.mxu0 %v1141
        %1221 = vmatpush.bf16.msra.mxu0 %v1139
        %1222 = vmatpush.bf16.msra.mxu0 %v1137
        %1223 = vmatpush.bf16.msra.mxu0 %v1135
        %1224 = vmatpush.bf16.msra.mxu0 %v1133
        %1225 = vmatpush.bf16.msra.mxu0 %v1131
        %1226 = vmatpush.bf16.msra.mxu0 %v1129
        %1227 = vmatmul.bf16.gmra.mxu0 %v898
        %v1228 = vpop.f32.mrf.mxu0
        %v1229 = vadd.f32 %v1216, %v1228
        %v1230 = vpop.f32.mrf.mxu0
        %1231 = vdwg.mxu0
        %1232 = vmatpush.bf16.msra.mxu0 %v1112
        %1233 = vmatpush.bf16.msra.mxu0 %v1110
        %1234 = vmatpush.bf16.msra.mxu0 %v1108
        %1235 = vmatpush.bf16.msra.mxu0 %v1106
        %1236 = vmatpush.bf16.msra.mxu0 %v1104
        %1237 = vmatpush.bf16.msra.mxu0 %v1102
        %1238 = vmatpush.bf16.msra.mxu0 %v1100
        %1239 = vmatpush.bf16.msra.mxu0 %v1098
        %1240 = vmatmul.bf16.gmra.mxu0 %v896
        %v1241 = vpop.f32.mrf.mxu0
        %v1242 = vadd.f32 %v950, %v1241
        %v1243 = vpop.f32.mrf.mxu0
        %1244 = vdwg.mxu0
        %1245 = vmatpush.bf16.msra.mxu0 %v1128
        %1246 = vmatpush.bf16.msra.mxu0 %v1126
        %1247 = vmatpush.bf16.msra.mxu0 %v1124
        %1248 = vmatpush.bf16.msra.mxu0 %v1122
        %1249 = vmatpush.bf16.msra.mxu0 %v1120
        %1250 = vmatpush.bf16.msra.mxu0 %v1118
        %1251 = vmatpush.bf16.msra.mxu0 %v1116
        %1252 = vmatpush.bf16.msra.mxu0 %v1114
        %1253 = vmatmul.bf16.gmra.mxu0 %v897
        %v1254 = vpop.f32.mrf.mxu0
        %v1255 = vadd.f32 %v1242, %v1254
        %v1256 = vpop.f32.mrf.mxu0
        %1257 = vdwg.mxu0
        %1258 = vmatpush.bf16.msra.mxu0 %v1144
        %1259 = vmatpush.bf16.msra.mxu0 %v1142
        %1260 = vmatpush.bf16.msra.mxu0 %v1140
        %1261 = vmatpush.bf16.msra.mxu0 %v1138
        %1262 = vmatpush.bf16.msra.mxu0 %v1136
        %1263 = vmatpush.bf16.msra.mxu0 %v1134
        %1264 = vmatpush.bf16.msra.mxu0 %v1132
        %1265 = vmatpush.bf16.msra.mxu0 %v1130
        %1266 = vmatmul.bf16.gmra.mxu0 %v898
        %v1267 = vpop.f32.mrf.mxu0
        %v1268 = vadd.f32 %v1255, %v1267
        %v1269 = vpop.f32.mrf.mxu0
        %1270 = vdwg.mxu0
        %v1271 = vld [vmem:[#allocation12] sm:$0xff]
        %v1272 = vld [vmem:[#allocation12 + $0x8] sm:$0xf]
        %v1273 = vld [vmem:[#allocation12 + $0xc] sm:$0xff]
        %v1274 = vld [vmem:[#allocation12 + $0x14] sm:$0xf]
        %v1275 = vld [vmem:[#allocation12 + $0x18] sm:$0xff]
        %v1276 = vld [vmem:[#allocation12 + $0x20] sm:$0xf]
        %v1277 = vld [vmem:[#allocation12 + $0x24] sm:$0xff]
        %v1278 = vld [vmem:[#allocation12 + $0x2c] sm:$0xf]
        %v1279 = vld [vmem:[#allocation12 + $0x30] sm:$0xff]
        %v1280 = vld [vmem:[#allocation12 + $0x38] sm:$0xf]
        %v1281 = vld [vmem:[#allocation12 + $0x3c] sm:$0xff]
        %v1282 = vld [vmem:[#allocation12 + $0x44] sm:$0xf]
        %v1283 = vld [vmem:[#allocation12 + $0x48] sm:$0xff]
        %v1284 = vld [vmem:[#allocation12 + $0x50] sm:$0xf]
        %v1285 = vld [vmem:[#allocation12 + $0x54] sm:$0xff]
        %v1286 = vld [vmem:[#allocation12 + $0x5c] sm:$0xf]
        %v1287 = vld [vmem:[#allocation12 + $0x60] sm:$0xff]
        %v1288 = vld [vmem:[#allocation12 + $0x68] sm:$0xf]
        %v1289 = vld [vmem:[#allocation12 + $0x6c] sm:$0xff]
        %v1290 = vld [vmem:[#allocation12 + $0x74] sm:$0xf]
        %v1291 = vld [vmem:[#allocation12 + $0x78] sm:$0xff]
        %v1292 = vld [vmem:[#allocation12 + $0x80] sm:$0xf]
        %v1293 = vld [vmem:[#allocation12 + $0x84] sm:$0xff]
        %v1294 = vld [vmem:[#allocation12 + $0x8c] sm:$0xf]
        %v1295 = vld [vmem:[#allocation12 + $0x90] sm:$0xff]
        %v1296 = vld [vmem:[#allocation12 + $0x98] sm:$0xf]
        %v1297 = vld [vmem:[#allocation12 + $0x9c] sm:$0xff]
        %v1298 = vld [vmem:[#allocation12 + $0xa4] sm:$0xf]
        %v1299 = vld [vmem:[#allocation12 + $0xa8] sm:$0xff]
        %v1300 = vld [vmem:[#allocation12 + $0xb0] sm:$0xf]
        %v1301 = vld [vmem:[#allocation12 + $0xb4] sm:$0xff]
        %v1302 = vld [vmem:[#allocation12 + $0xbc] sm:$0xf]
        %v1303 = vld [vmem:[#allocation12 + $0xc0] sm:$0xff]
        %v1304 = vld [vmem:[#allocation12 + $0xc8] sm:$0xf]
        %v1305 = vld [vmem:[#allocation12 + $0xcc] sm:$0xff]
        %v1306 = vld [vmem:[#allocation12 + $0xd4] sm:$0xf]
        %v1307 = vld [vmem:[#allocation12 + $0xd8] sm:$0xff]
        %v1308 = vld [vmem:[#allocation12 + $0xe0] sm:$0xf]
        %v1309 = vld [vmem:[#allocation12 + $0xe4] sm:$0xff]
        %v1310 = vld [vmem:[#allocation12 + $0xec] sm:$0xf]
        %v1311 = vld [vmem:[#allocation12 + $0xf0] sm:$0xff]
        %v1312 = vld [vmem:[#allocation12 + $0xf8] sm:$0xf]
        %v1313 = vld [vmem:[#allocation12 + $0xfc] sm:$0xff]
        %v1314 = vld [vmem:[#allocation12 + $0x104] sm:$0xf]
        %v1315 = vld [vmem:[#allocation12 + $0x108] sm:$0xff]
        %v1316 = vld [vmem:[#allocation12 + $0x110] sm:$0xf]
        %v1317 = vld [vmem:[#allocation12 + $0x114] sm:$0xff]
        %v1318 = vld [vmem:[#allocation12 + $0x11c] sm:$0xf]
        %v1319 = vld [vmem:[#allocation12 + $0x120] sm:$0xff]
        %v1320 = vld [vmem:[#allocation12 + $0x128] sm:$0xf]
        %v1321 = vld [vmem:[#allocation12 + $0x12c] sm:$0xff]
        %v1322 = vld [vmem:[#allocation12 + $0x134] sm:$0xf]
        %v1323 = vld [vmem:[#allocation12 + $0x138] sm:$0xff]
        %v1324 = vld [vmem:[#allocation12 + $0x140] sm:$0xf]
        %v1325 = vld [vmem:[#allocation12 + $0x144] sm:$0xff]
        %v1326 = vld [vmem:[#allocation12 + $0x14c] sm:$0xf]
        %v1327 = vld [vmem:[#allocation12 + $0x150] sm:$0xff]
        %v1328 = vld [vmem:[#allocation12 + $0x158] sm:$0xf]
        %v1329 = vld [vmem:[#allocation12 + $0x15c] sm:$0xff]
        %v1330 = vld [vmem:[#allocation12 + $0x164] sm:$0xf]
        %v1331 = vld [vmem:[#allocation12 + $0x168] sm:$0xff]
        %v1332 = vld [vmem:[#allocation12 + $0x170] sm:$0xf]
        %v1333 = vld [vmem:[#allocation12 + $0x174] sm:$0xff]
        %v1334 = vld [vmem:[#allocation12 + $0x17c] sm:$0xf]
        %v1335 = vld [vmem:[%s7] sm:$0x7]
        %v1336 = vld [vmem:[%s8] sm:$0x7]
        %s1337 = sld [smem:[#allocation2]]
        %v1338 = vld [vmem:[%s410] sm:$0xff]
        %v1339 = vld [vmem:[%s410 + $0x8] sm:$0xff]
        %v1340 = vpack.c.bf16 %v1338, %v1338
        %v1341 = vpack.c.bf16 %v1339, %v1339
        %v1343 = vperm.slane %v1335, 0
        %v1344 = vperm.slane %v1335, 1
        %v1345 = vperm.slane %v1335, 2
        %v1413 = vunpack.c.l.b16 %v1271
        %v1414 = vunpack.c.h.b16 %v1271
        %v1415 = vunpack.c.l.b16 %v1272
        %v1416 = vunpack.c.l.b16 %v1273
        %v1417 = vunpack.c.h.b16 %v1273
        %v1418 = vunpack.c.l.b16 %v1274
        %v1419 = vunpack.c.l.b16 %v1275
        %v1420 = vunpack.c.h.b16 %v1275
        %v1421 = vunpack.c.l.b16 %v1276
        %v1422 = vunpack.c.l.b16 %v1277
        %v1423 = vunpack.c.h.b16 %v1277
        %v1424 = vunpack.c.l.b16 %v1278
        %v1425 = vunpack.c.l.b16 %v1279
        %v1426 = vunpack.c.h.b16 %v1279
        %v1427 = vunpack.c.l.b16 %v1280
        %v1428 = vunpack.c.l.b16 %v1281
        %v1429 = vunpack.c.h.b16 %v1281
        %v1430 = vunpack.c.l.b16 %v1282
        %v1431 = vunpack.c.l.b16 %v1283
        %v1432 = vunpack.c.h.b16 %v1283
        %v1433 = vunpack.c.l.b16 %v1284
        %v1434 = vunpack.c.l.b16 %v1285
        %v1435 = vunpack.c.h.b16 %v1285
        %v1436 = vunpack.c.l.b16 %v1286
        %v1437 = vunpack.c.l.b16 %v1287
        %v1438 = vunpack.c.h.b16 %v1287
        %v1439 = vunpack.c.l.b16 %v1288
        %v1440 = vunpack.c.l.b16 %v1289
        %v1441 = vunpack.c.h.b16 %v1289
        %v1442 = vunpack.c.l.b16 %v1290
        %v1443 = vunpack.c.l.b16 %v1291
        %v1444 = vunpack.c.h.b16 %v1291
        %v1445 = vunpack.c.l.b16 %v1292
        %v1446 = vunpack.c.l.b16 %v1293
        %v1447 = vunpack.c.h.b16 %v1293
        %v1448 = vunpack.c.l.b16 %v1294
        %v1449 = vunpack.c.l.b16 %v1295
        %v1450 = vunpack.c.h.b16 %v1295
        %v1451 = vunpack.c.l.b16 %v1296
        %v1452 = vunpack.c.l.b16 %v1297
        %v1453 = vunpack.c.h.b16 %v1297
        %v1454 = vunpack.c.l.b16 %v1298
        %v1455 = vunpack.c.l.b16 %v1299
        %v1456 = vunpack.c.h.b16 %v1299
        %v1457 = vunpack.c.l.b16 %v1300
        %v1458 = vunpack.c.l.b16 %v1301
        %v1459 = vunpack.c.h.b16 %v1301
        %v1460 = vunpack.c.l.b16 %v1302
        %v1461 = vunpack.c.l.b16 %v1303
        %v1462 = vunpack.c.h.b16 %v1303
        %v1463 = vunpack.c.l.b16 %v1304
        %v1464 = vunpack.c.l.b16 %v1305
        %v1465 = vunpack.c.h.b16 %v1305
        %v1466 = vunpack.c.l.b16 %v1306
        %v1467 = vunpack.c.l.b16 %v1307
        %v1468 = vunpack.c.h.b16 %v1307
        %v1469 = vunpack.c.l.b16 %v1308
        %v1470 = vunpack.c.l.b16 %v1309
        %v1471 = vunpack.c.h.b16 %v1309
        %v1472 = vunpack.c.l.b16 %v1310
        %v1473 = vunpack.c.l.b16 %v1311
        %v1474 = vunpack.c.h.b16 %v1311
        %v1475 = vunpack.c.l.b16 %v1312
        %v1476 = vunpack.c.l.b16 %v1313
        %v1477 = vunpack.c.h.b16 %v1313
        %v1478 = vunpack.c.l.b16 %v1314
        %v1479 = vunpack.c.l.b16 %v1315
        %v1480 = vunpack.c.h.b16 %v1315
        %v1481 = vunpack.c.l.b16 %v1316
        %v1482 = vunpack.c.l.b16 %v1317
        %v1483 = vunpack.c.h.b16 %v1317
        %v1484 = vunpack.c.l.b16 %v1318
        %v1485 = vunpack.c.l.b16 %v1319
        %v1486 = vunpack.c.h.b16 %v1319
        %v1487 = vunpack.c.l.b16 %v1320
        %v1488 = vunpack.c.l.b16 %v1321
        %v1489 = vunpack.c.h.b16 %v1321
        %v1490 = vunpack.c.l.b16 %v1322
        %v1491 = vunpack.c.l.b16 %v1323
        %v1492 = vunpack.c.h.b16 %v1323
        %v1493 = vunpack.c.l.b16 %v1324
        %v1494 = vunpack.c.l.b16 %v1325
        %v1495 = vunpack.c.h.b16 %v1325
        %v1496 = vunpack.c.l.b16 %v1326
        %v1497 = vunpack.c.l.b16 %v1327
        %v1498 = vunpack.c.h.b16 %v1327
        %v1499 = vunpack.c.l.b16 %v1328
        %v1500 = vunpack.c.l.b16 %v1329
        %v1501 = vunpack.c.h.b16 %v1329
        %v1502 = vunpack.c.l.b16 %v1330
        %v1503 = vunpack.c.l.b16 %v1331
        %v1504 = vunpack.c.h.b16 %v1331
        %v1505 = vunpack.c.l.b16 %v1332
        %v1506 = vunpack.c.l.b16 %v1333
        %v1507 = vunpack.c.h.b16 %v1333
        %v1508 = vunpack.c.l.b16 %v1334
        %v1509 = vpack.c.b16 %v1416, %v1413
        %v1510 = vpack.c.b16 %v1417, %v1414
        %v1511 = vpack.c.b16 %v1418, %v1415
        %v1512 = vpack.c.b16 %v1422, %v1419
        %v1513 = vpack.c.b16 %v1423, %v1420
        %v1514 = vpack.c.b16 %v1424, %v1421
        %v1515 = vpack.c.b16 %v1428, %v1425
        %v1516 = vpack.c.b16 %v1429, %v1426
        %v1517 = vpack.c.b16 %v1430, %v1427
        %v1518 = vpack.c.b16 %v1434, %v1431
        %v1519 = vpack.c.b16 %v1435, %v1432
        %v1520 = vpack.c.b16 %v1436, %v1433
        %v1521 = vpack.c.b16 %v1440, %v1437
        %v1522 = vpack.c.b16 %v1441, %v1438
        %v1523 = vpack.c.b16 %v1442, %v1439
        %v1524 = vpack.c.b16 %v1446, %v1443
        %v1525 = vpack.c.b16 %v1447, %v1444
        %v1526 = vpack.c.b16 %v1448, %v1445
        %v1527 = vpack.c.b16 %v1452, %v1449
        %v1528 = vpack.c.b16 %v1453, %v1450
        %v1529 = vpack.c.b16 %v1454, %v1451
        %v1530 = vpack.c.b16 %v1458, %v1455
        %v1531 = vpack.c.b16 %v1459, %v1456
        %v1532 = vpack.c.b16 %v1460, %v1457
        %v1533 = vpack.c.b16 %v1464, %v1461
        %v1534 = vpack.c.b16 %v1465, %v1462
        %v1535 = vpack.c.b16 %v1466, %v1463
        %v1536 = vpack.c.b16 %v1470, %v1467
        %v1537 = vpack.c.b16 %v1471, %v1468
        %v1538 = vpack.c.b16 %v1472, %v1469
        %v1539 = vpack.c.b16 %v1476, %v1473
        %v1540 = vpack.c.b16 %v1477, %v1474
        %v1541 = vpack.c.b16 %v1478, %v1475
        %v1542 = vpack.c.b16 %v1482, %v1479
        %v1543 = vpack.c.b16 %v1483, %v1480
        %v1544 = vpack.c.b16 %v1484, %v1481
        %v1545 = vpack.c.b16 %v1488, %v1485
        %v1546 = vpack.c.b16 %v1489, %v1486
        %v1547 = vpack.c.b16 %v1490, %v1487
        %v1548 = vpack.c.b16 %v1494, %v1491
        %v1549 = vpack.c.b16 %v1495, %v1492
        %v1550 = vpack.c.b16 %v1496, %v1493
        %v1551 = vpack.c.b16 %v1500, %v1497
        %v1552 = vpack.c.b16 %v1501, %v1498
        %v1553 = vpack.c.b16 %v1502, %v1499
        %v1554 = vpack.c.b16 %v1506, %v1503
        %v1555 = vpack.c.b16 %v1507, %v1504
        %v1556 = vpack.c.b16 %v1508, %v1505
        %1605 = vmatpush.bf16.msra.mxu0 %v1530
        %1606 = vmatpush.bf16.msra.mxu0 %v1527
        %1607 = vmatpush.bf16.msra.mxu0 %v1524
        %1608 = vmatpush.bf16.msra.mxu0 %v1521
        %1609 = vmatpush.bf16.msra.mxu0 %v1518
        %1610 = vmatpush.bf16.msra.mxu0 %v1515
        %1611 = vmatpush.bf16.msra.mxu0 %v1512
        %1612 = vmatpush.bf16.msra.mxu0 %v1509
        %1613 = vmatmul.bf16.gmra.mxu0 %v1340
        %v1614 = vpop.f32.mrf.mxu0
        %v1615 = vadd.f32 %v1343, %v1614
        %v1616 = vpop.f32.mrf.mxu0
        %1617 = vdwg.mxu0
        %1618 = vmatpush.bf16.msra.mxu0 %v1554
        %1619 = vmatpush.bf16.msra.mxu0 %v1551
        %1620 = vmatpush.bf16.msra.mxu0 %v1548
        %1621 = vmatpush.bf16.msra.mxu0 %v1545
        %1622 = vmatpush.bf16.msra.mxu0 %v1542
        %1623 = vmatpush.bf16.msra.mxu0 %v1539
        %1624 = vmatpush.bf16.msra.mxu0 %v1536
        %1625 = vmatpush.bf16.msra.mxu0 %v1533
        %1626 = vmatmul.bf16.gmra.mxu0 %v1341
        %v1627 = vpop.f32.mrf.mxu0
        %v1628 = vadd.f32 %v1615, %v1627
        %v1629 = vpop.f32.mrf.mxu0
        %1630 = vdwg.mxu0
        %1631 = vmatpush.bf16.msra.mxu0 %v1531
        %1632 = vmatpush.bf16.msra.mxu0 %v1528
        %1633 = vmatpush.bf16.msra.mxu0 %v1525
        %1634 = vmatpush.bf16.msra.mxu0 %v1522
        %1635 = vmatpush.bf16.msra.mxu0 %v1519
        %1636 = vmatpush.bf16.msra.mxu0 %v1516
        %1637 = vmatpush.bf16.msra.mxu0 %v1513
        %1638 = vmatpush.bf16.msra.mxu0 %v1510
        %1639 = vmatmul.bf16.gmra.mxu0 %v1340
        %v1640 = vpop.f32.mrf.mxu0
        %v1641 = vadd.f32 %v1344, %v1640
        %v1642 = vpop.f32.mrf.mxu0
        %1643 = vdwg.mxu0
        %1644 = vmatpush.bf16.msra.mxu0 %v1555
        %1645 = vmatpush.bf16.msra.mxu0 %v1552
        %1646 = vmatpush.bf16.msra.mxu0 %v1549
        %1647 = vmatpush.bf16.msra.mxu0 %v1546
        %1648 = vmatpush.bf16.msra.mxu0 %v1543
        %1649 = vmatpush.bf16.msra.mxu0 %v1540
        %1650 = vmatpush.bf16.msra.mxu0 %v1537
        %1651 = vmatpush.bf16.msra.mxu0 %v1534
        %1652 = vmatmul.bf16.gmra.mxu0 %v1341
        %v1653 = vpop.f32.mrf.mxu0
        %v1654 = vadd.f32 %v1641, %v1653
        %v1655 = vpop.f32.mrf.mxu0
        %1656 = vdwg.mxu0
        %1657 = vmatpush.bf16.msra.mxu0 %v1532
        %1658 = vmatpush.bf16.msra.mxu0 %v1529
        %1659 = vmatpush.bf16.msra.mxu0 %v1526
        %1660 = vmatpush.bf16.msra.mxu0 %v1523
        %1661 = vmatpush.bf16.msra.mxu0 %v1520
        %1662 = vmatpush.bf16.msra.mxu0 %v1517
        %1663 = vmatpush.bf16.msra.mxu0 %v1514
        %1664 = vmatpush.bf16.msra.mxu0 %v1511
        %1665 = vmatmul.bf16.gmra.mxu0 %v1340
        %v1666 = vpop.f32.mrf.mxu0
        %v1667 = vadd.f32 %v1345, %v1666
        %v1668 = vpop.f32.mrf.mxu0
        %1669 = vdwg.mxu0
        %1670 = vmatpush.bf16.msra.mxu0 %v1556
        %1671 = vmatpush.bf16.msra.mxu0 %v1553
        %1672 = vmatpush.bf16.msra.mxu0 %v1550
        %1673 = vmatpush.bf16.msra.mxu0 %v1547
        %1674 = vmatpush.bf16.msra.mxu0 %v1544
        %1675 = vmatpush.bf16.msra.mxu0 %v1541
        %1676 = vmatpush.bf16.msra.mxu0 %v1538
        %1677 = vmatpush.bf16.msra.mxu0 %v1535
        %1678 = vmatmul.bf16.gmra.mxu0 %v1341
        %v1679 = vpop.f32.mrf.mxu0
        %v1680 = vadd.f32 %v1667, %v1679
        %v1681 = vpop.f32.mrf.mxu0
        %1682 = vdwg.mxu0
        %v1683 = vmax.f32 %v1628, 0.0
        %v1684 = vmax.f32 %v1654, 0.0
        %v1685 = vmax.f32 %v1680, 0.0
        %v1687 = vperm.slane %v1336, 0
        %v1688 = vperm.slane %v1336, 1
        %v1689 = vperm.slane %v1336, 2
        %v1693 = vmul.f32 %v1683, %v1687
        %v1694 = vmul.f32 %v1684, %v1688
        %v1695 = vmul.f32 %v1685, %v1689
        %v1696 = vadd.f32 %v1693, %v1694
        %v1697 = vadd.f32 %v1696, %v1695
        %1698 = vadd.xlane.f32.xlu0 %v1697
        %v1699 = vpop.xlane.xlu0 %1698
        %v1700 = vstv %s1337
        %v1701 = vadd.f32 %v1699, %v1700
        %v1702 = vxor.u32 %v1701, 2147483648
        %v1703 = vmul.f32 %v1702, 1.442695
        %v1704 = vpow.pop %v1703
        %v1705 = vadd.f32 %v1704, 1.0
        %v1706 = vrcp.pop %v1705
        %v1707 = vmul.f32 %v1705, %v1706
        %v1708 = vsub.f32 1.0, %v1707
        %v1709 = vmul.f32 %v1706, %v1708
        %v1710 = vadd.f32 %v1706, %v1709
        %vm1711 = vweird.f32 %v1705
        %vm1712 = vweird.f32 %v1706
        %vm1713 = vmor %vm1711, %vm1712
        %v1714 = vsel %vm1713, %v1706, %v1710
        %v1715 = vand.u32 2147483647, %v1705
        %vm1716 = vcmp.eq.f32.partialorder %v1715, 8.507059e+37
        %v1717 = vand.u32 %v1705, 2147483648
        %v1718 = vor.u32 1.1754944e-38, %v1717
        %v1719 = vsel %vm1716, %v1718, %v1714
        %v1720 = vmul.f32 1.0, %v1719
        %v1721 = vpack.c.bf16 %v1229, %v1229
        %v1722 = vpack.c.bf16 %v1268, %v1268
        %1723 = vmatpush.bf16.msra.mxu0 %v1530
        %1724 = vmatpush.bf16.msra.mxu0 %v1527
        %1725 = vmatpush.bf16.msra.mxu0 %v1524
        %1726 = vmatpush.bf16.msra.mxu0 %v1521
        %1727 = vmatpush.bf16.msra.mxu0 %v1518
        %1728 = vmatpush.bf16.msra.mxu0 %v1515
        %1729 = vmatpush.bf16.msra.mxu0 %v1512
        %1730 = vmatpush.bf16.msra.mxu0 %v1509
        %1731 = vmatmul.bf16.gmra.mxu0 %v1721
        %v1732 = vpop.f32.mrf.mxu0
        %v1733 = vadd.f32 %v1343, %v1732
        %v1734 = vpop.f32.mrf.mxu0
        %1735 = vdwg.mxu0
        %1736 = vmatpush.bf16.msra.mxu0 %v1554
        %1737 = vmatpush.bf16.msra.mxu0 %v1551
        %1738 = vmatpush.bf16.msra.mxu0 %v1548
        %1739 = vmatpush.bf16.msra.mxu0 %v1545
        %1740 = vmatpush.bf16.msra.mxu0 %v1542
        %1741 = vmatpush.bf16.msra.mxu0 %v1539
        %1742 = vmatpush.bf16.msra.mxu0 %v1536
        %1743 = vmatpush.bf16.msra.mxu0 %v1533
        %1744 = vmatmul.bf16.gmra.mxu0 %v1722
        %v1745 = vpop.f32.mrf.mxu0
        %v1746 = vadd.f32 %v1733, %v1745
        %v1747 = vpop.f32.mrf.mxu0
        %1748 = vdwg.mxu0
        %1749 = vmatpush.bf16.msra.mxu0 %v1531
        %1750 = vmatpush.bf16.msra.mxu0 %v1528
        %1751 = vmatpush.bf16.msra.mxu0 %v1525
        %1752 = vmatpush.bf16.msra.mxu0 %v1522
        %1753 = vmatpush.bf16.msra.mxu0 %v1519
        %1754 = vmatpush.bf16.msra.mxu0 %v1516
        %1755 = vmatpush.bf16.msra.mxu0 %v1513
        %1756 = vmatpush.bf16.msra.mxu0 %v1510
        %1757 = vmatmul.bf16.gmra.mxu0 %v1721
        %v1758 = vpop.f32.mrf.mxu0
        %v1759 = vadd.f32 %v1344, %v1758
        %v1760 = vpop.f32.mrf.mxu0
        %1761 = vdwg.mxu0
        %1762 = vmatpush.bf16.msra.mxu0 %v1555
        %1763 = vmatpush.bf16.msra.mxu0 %v1552
        %1764 = vmatpush.bf16.msra.mxu0 %v1549
        %1765 = vmatpush.bf16.msra.mxu0 %v1546
        %1766 = vmatpush.bf16.msra.mxu0 %v1543
        %1767 = vmatpush.bf16.msra.mxu0 %v1540
        %1768 = vmatpush.bf16.msra.mxu0 %v1537
        %1769 = vmatpush.bf16.msra.mxu0 %v1534
        %1770 = vmatmul.bf16.gmra.mxu0 %v1722
        %v1771 = vpop.f32.mrf.mxu0
        %v1772 = vadd.f32 %v1759, %v1771
        %v1773 = vpop.f32.mrf.mxu0
        %1774 = vdwg.mxu0
        %1775 = vmatpush.bf16.msra.mxu0 %v1532
        %1776 = vmatpush.bf16.msra.mxu0 %v1529
        %1777 = vmatpush.bf16.msra.mxu0 %v1526
        %1778 = vmatpush.bf16.msra.mxu0 %v1523
        %1779 = vmatpush.bf16.msra.mxu0 %v1520
        %1780 = vmatpush.bf16.msra.mxu0 %v1517
        %1781 = vmatpush.bf16.msra.mxu0 %v1514
        %1782 = vmatpush.bf16.msra.mxu0 %v1511
        %1783 = vmatmul.bf16.gmra.mxu0 %v1721
        %v1784 = vpop.f32.mrf.mxu0
        %v1785 = vadd.f32 %v1345, %v1784
        %v1786 = vpop.f32.mrf.mxu0
        %1787 = vdwg.mxu0
        %1788 = vmatpush.bf16.msra.mxu0 %v1556
        %1789 = vmatpush.bf16.msra.mxu0 %v1553
        %1790 = vmatpush.bf16.msra.mxu0 %v1550
        %1791 = vmatpush.bf16.msra.mxu0 %v1547
        %1792 = vmatpush.bf16.msra.mxu0 %v1544
        %1793 = vmatpush.bf16.msra.mxu0 %v1541
        %1794 = vmatpush.bf16.msra.mxu0 %v1538
        %1795 = vmatpush.bf16.msra.mxu0 %v1535
        %1796 = vmatmul.bf16.gmra.mxu0 %v1722
        %v1797 = vpop.f32.mrf.mxu0
        %v1798 = vadd.f32 %v1785, %v1797
        %v1799 = vpop.f32.mrf.mxu0
        %1800 = vdwg.mxu0
        %v1801 = vmax.f32 %v1746, 0.0
        %v1802 = vmax.f32 %v1772, 0.0
        %v1803 = vmax.f32 %v1798, 0.0
        %v1804 = vmul.f32 %v1801, %v1687
        %v1805 = vmul.f32 %v1802, %v1688
        %v1806 = vmul.f32 %v1803, %v1689
        %v1807 = vadd.f32 %v1804, %v1805
        %v1808 = vadd.f32 %v1807, %v1806
        %1809 = vadd.xlane.f32.xlu0 %v1808
        %v1810 = vpop.xlane.xlu0 %1809
        %v1811 = vadd.f32 %v1810, %v1700
        %v1812 = vxor.u32 %v1811, 2147483648
        %v1813 = vmul.f32 %v1812, 1.442695
        %v1814 = vpow.pop %v1813
        %v1815 = vadd.f32 %v1814, 1.0
        %v1816 = vrcp.pop %v1815
        %v1817 = vmul.f32 %v1815, %v1816
        %v1818 = vsub.f32 1.0, %v1817
        %v1819 = vmul.f32 %v1816, %v1818
        %v1820 = vadd.f32 %v1816, %v1819
        %vm1821 = vweird.f32 %v1815
        %vm1822 = vweird.f32 %v1816
        %vm1823 = vmor %vm1821, %vm1822
        %v1824 = vsel %vm1823, %v1816, %v1820
        %v1825 = vand.u32 2147483647, %v1815
        %vm1826 = vcmp.eq.f32.partialorder %v1825, 8.507059e+37
        %v1827 = vand.u32 %v1815, 2147483648
        %v1828 = vor.u32 1.1754944e-38, %v1827
        %v1829 = vsel %vm1826, %v1828, %v1824
        %v1830 = vmul.f32 1.0, %v1829
        %v1831 = vlaneseq
        %v1832 = vand.u32 %v1831, 127
        %vm1833 = vcmp.eq.s32.totalorder %v1832, 0
        %vm1834 = vcmp.eq.s32.totalorder %v1832, 1
        %v1835 = vsel %vm1834, %v1830, 0.0
        %v1836 = vsel %vm1833, %v1720, %v1835
        %1837 = vst [vmem:[%s482] sm:$0xff] %v1836
        %s1838 = sand.u32 %s261, 1
        %s1839 = scalar_lea.sflag [#allocation5], %s1838
        %s1840 = sand.u32 %s261, 1
        %s1841 = smul.addr %s1840, 8
        %s1842 = scalar_lea.vmem [#allocation14], %s1841
        // Predicated region
        $region85: #{tpu_custom_call.1} parent=59 // pred_check
          %p1843 = pneg %p271
        $region86: #{tpu_custom_call.1} parent=59 // pred_check_branch
          %1845 = sbr.rel (%p1843) target = $region88
        $region87: #{tpu_custom_call.1} parent=59 // pred_region
          %1847 = vsyncadd %s1839, 0
          %s1848 = smul.addr %s33, 8
          %s1849 = scalar_lea.hbm %s10, %s1848
          %s1851 = sshll.u32 %s1842, 4
          %s1852 = int_to_ptr.vmem [resolvable:$true] %s1851
          %s1853 = sshll.u32 %s1849, 4
          %s1854 = int_to_ptr.hbm [resolvable:$true] %s1853
          %1856 = dma.vmem_to_hbm [thread:$0]  %s1852, 128, %s1854, %s1839
        $region88: #{tpu_custom_call.1} parent=59 // pred_fallthru
          _
      $region60: #{tpu_custom_call.1} parent=5 // pred_fallthru
        _
      %p1857 = scmp.le.s32.totalorder 2, %s28
      // Predicated region
      $region89: #{tpu_custom_call.1} parent=5 // pred_check
        %p1858 = pneg %p1857
      $region90: #{tpu_custom_call.1} parent=5 // pred_check_branch
        %1860 = sbr.rel (%p1858) target = $region92
      $region91: #{tpu_custom_call.1} parent=5 // pred_region
        %s1861 = ssub.s32 %s28, 2
        // Predicated region
        $region93: #{tpu_custom_call.1} parent=91 // pred_check
          %p1862 = pneg %p277
        $region94: #{tpu_custom_call.1} parent=91 // pred_check_branch
          %1864 = sbr.rel (%p1862) target = $region96
        $region95: #{tpu_custom_call.1} parent=91 // pred_region
          %s1865 = sand.u32 %s262, 1
          %s1866 = scalar_lea.sflag [#allocation5], %s1865
          %s1867 = sand.u32 %s262, 1
          %s1868 = smul.addr %s1867, 8
          %s1869 = scalar_lea.vmem [#allocation14], %s1868
          %1871 = dma.done %s1866, 128
        $region96: #{tpu_custom_call.1} parent=91 // pred_fallthru
          _
      $region92: #{tpu_custom_call.1} parent=5 // pred_fallthru
        _
    $region6: #{tpu_custom_call.1} parent=1 // loop_footer
      %s32 = sadd.s32 1, %s28
    $region7: #{tpu_custom_call.1} parent=1 // loop_footer_branch
      %27 = sbr.rel target = $region3
    $region8: #{tpu_custom_call.1} parent=1 // loop_exit
      _
    %1872 = vsyncpa [#allocation4], 1
    %s1873 = scalar_lea.sflag [#allocation4], 1
    %1874 = vsyncpa %s1873, 1
    %1875 = vsyncpa [#allocation7], 1
    %s1876 = scalar_lea.sflag [#allocation7], 1
    %1877 = vsyncpa %s1876, 1
    %1878 = vsyncpa [#allocation10], 1
    %1879 = vsyncpa [#allocation13], 1
    %1880 = vsyncpa [#allocation5], 1
    %s1881 = scalar_lea.sflag [#allocation5], 1
    %1882 = vsyncpa %s1881, 1

// kernel: tpu_custom_call.1
$region0: #{tpu_custom_call.1}
  #allocation0 [shape = 'u32[]', space=smem, size = 0x4, offset = 0x4, fixed_abs, tag = 'smem constant byte address 0x4 - core index']
  #allocation1 [shape = 'u32[72,128]{1,0:T(1,128)}', space=vmem, size = 0x9000, scoped, tag = 'internal scratch']
  #allocation2 [shape = 'f32[1,1]{1,0:T(1,128)S(6)}', space=smem, size = 0x200, scoped, tag = 'scoped memory for tpu_custom_call.1']
  %s0 = inlined_call_operand.hbm [shape: f32[16,256], index: 0, kind: input, shape index: {}]
  %s1 = inlined_call_operand.hbm [shape: f32[16,256], index: 1, kind: input, shape index: {}]
  %s2 = inlined_call_operand.hbm [shape: bf16[256,384], index: 2, kind: input, shape index: {}]
  %s3 = inlined_call_operand.vmem [shape: f32[1,384], index: 3, kind: input, shape index: {}]
  %s4 = inlined_call_operand.hbm [shape: bf16[384,256], index: 4, kind: input, shape index: {}]
  %s5 = inlined_call_operand.hbm [shape: f32[1,256], index: 5, kind: input, shape index: {}]
  %s6 = inlined_call_operand.hbm [shape: bf16[256,384], index: 6, kind: input, shape index: {}]
  %s7 = inlined_call_operand.vmem [shape: f32[1,384], index: 7, kind: input, shape index: {}]
  %s8 = inlined_call_operand.vmem [shape: f32[1,384], index: 8, kind: input, shape index: {}]
  %s9 = inlined_call_operand.<no memory space> [shape: f32[1,1], index: 9, kind: input, shape index: {}]
  %s10 = inlined_call_operand.hbm [shape: f32[16,128], index: 10, kind: output, shape index: {}]
  %s11 = sld [smem:[#allocation0]]
  $region97: #{tpu_custom_call.1} parent=0
    _
  %s13 = ssub.s32 1, %s11
  %s14 = scalar_select 0, %s13, %s11
  %15 = sst [smem:[#allocation2]] %s9
  $region1: #{tpu_custom_call.1} parent=0
    #allocation3 [shape = 'u8[16384]{0}', space=vmem, size = 0x4000, scoped, tag = 'input window, operand 0']
    #allocation4 [shape = 's32[2]{0}', space=sflag, size = 0x8, scoped, tag = 'scoped memory for tpu_custom_call.1']
    #allocation5 [shape = 's32[2]{0}', space=sflag, size = 0x8, scoped, tag = 'scoped memory for tpu_custom_call.1']
    #allocation6 [shape = 'u8[16384]{0}', space=vmem, size = 0x4000, scoped, tag = 'input window, operand 1']
    #allocation7 [shape = 's32[2]{0}', space=sflag, size = 0x8, scoped, tag = 'scoped memory for tpu_custom_call.1']
    #allocation8 [shape = 'u8[196608]{0}', space=vmem, size = 0x30000, scoped, tag = 'input window, operand 2, single buffered']
    #allocation9 [shape = 'u8[196608]{0}', space=vmem, size = 0x30000, scoped, tag = 'input window, operand 4, single buffered']
    #allocation10 [shape = 's32[1]{0}', space=sflag, size = 0x4, scoped, tag = 'scoped memory for tpu_custom_call.1']
    #allocation11 [shape = 'u8[1024]{0}', space=vmem, size = 0x400, scoped, tag = 'input window, operand 5, single buffered']
    #allocation12 [shape = 'u8[196608]{0}', space=vmem, size = 0x30000, scoped, tag = 'input window, operand 6, single buffered']
    #allocation13 [shape = 's32[1]{0}', space=sflag, size = 0x4, scoped, tag = 'scoped memory for tpu_custom_call.1']
    #allocation14 [shape = 'u8[8192]{0}', space=vmem, size = 0x2000, scoped, tag = 'output window, operand 0']
    %16 = vsyncpa [#allocation4], 0
    %s17 = scalar_lea.sflag [#allocation4], 1
    %18 = vsyncpa %s17, 0
    %19 = vsyncpa [#allocation7], 0
    %s20 = scalar_lea.sflag [#allocation7], 1
    %21 = vsyncpa %s20, 0
    %22 = vsyncpa [#allocation10], 0
    %23 = vsyncpa [#allocation13], 0
    %24 = vsyncpa [#allocation5], 0
    %s25 = scalar_lea.sflag [#allocation5], 1
    %26 = vsyncpa %s25, 0
    loop: start=0, step=1, limit=4
    $region2: #{tpu_custom_call.1} parent=1 // loop_pre_header
      _
    $region3: #{tpu_custom_call.1} parent=1 // loop_header
      %s28 = sphi 0, %s32
      %p29 = scmp.ge.s32.totalorder %s28, 4
      %s38 = sphi 0, %s40
      %s41 = sphi 0, %s38
      %s42 = sphi 0, %s41
      %s58 = sphi 0, %s42
      %s64 = sphi 0, %s66
      %s67 = sphi 0, %s64
      %s68 = sphi 0, %s67
      %s84 = sphi 0, %s68
      %s88 = sphi 0, %s88
      %s90 = sphi 0, %s88
      %s91 = sphi 0, %s90
      %s105 = sphi 0, %s91
      %s109 = sphi 0, %s109
      %s111 = sphi 0, %s109
      %s112 = sphi 0, %s111
      %s126 = sphi 0, %s112
      %s130 = sphi 0, %s130
      %s132 = sphi 0, %s130
      %s133 = sphi 0, %s132
      %s147 = sphi 0, %s133
      %s151 = sphi 0, %s151
      %s153 = sphi 0, %s151
      %s154 = sphi 0, %s153
      %s168 = sphi 0, %s154
      %s172 = sphi 0, %s172
      %s174 = sphi 0, %s172
      %s175 = sphi 0, %s174
      %s189 = sphi 0, %s175
      %s193 = sphi 0, %s193
      %s195 = sphi 0, %s193
      %s196 = sphi 0, %s195
      %s210 = sphi 0, %s196
      %s214 = sphi 0, %s214
      %s216 = sphi 0, %s214
      %s217 = sphi 0, %s216
      %s231 = sphi 0, %s217
      %s235 = sphi 0, %s235
      %s237 = sphi 0, %s235
      %s238 = sphi 0, %s237
      %s252 = sphi 0, %s238
      %s258 = sphi 0, %s260
      %s261 = sphi 0, %s258
      %s262 = sphi 0, %s261
      %s278 = sphi 0, %s262
    $region4: #{tpu_custom_call.1} parent=1 // loop_header_branch
      %31 = sbr.rel (%p29) target = $region8
    $region5: #{tpu_custom_call.1} parent=1 // loop_body
      %s33 = ssub.s32 %s28, 1
      %s34 = ssub.s32 %s28, 2
      %s35 = sadd.s32 %s28, 1
      %s36 = ssub.s32 %s28, %s35
      %p37 = scmp.eq.s32.totalorder %s36, 0
      %s39 = sadd.s32 %s38, 1
      %s40 = scalar_select %p37, %s38, %s39
      %p43 = pneg %p37
      %p44 = scmp.eq.s32.totalorder %s28, 1
      %p45 = por %p43, %p44
      %p46 = scmp.ne.s32.totalorder %s38, %s41
      %p47 = scmp.eq.s32.totalorder %s28, 0
      %p48 = por %p46, %p47
      %p49 = scmp.ne.s32.totalorder %s38, %s41
      %p50 = scmp.eq.s32.totalorder %s33, 1
      %p51 = por %p49, %p50
      %p52 = scmp.ne.s32.totalorder %s41, %s42
      %p53 = scmp.eq.s32.totalorder %s33, 0
      %p54 = por %p52, %p53
      %p55 = scmp.ne.s32.totalorder %s41, %s42
      %p56 = scmp.eq.s32.totalorder %s34, 1
      %p57 = por %p55, %p56
      %p59 = scmp.ne.s32.totalorder %s42, %s58
      %p60 = scmp.eq.s32.totalorder %s34, 0
      %p61 = por %p59, %p60
      %s62 = ssub.s32 %s28, %s35
      %p63 = scmp.eq.s32.totalorder %s62, 0
      %s65 = sadd.s32 %s64, 1
      %s66 = scalar_select %p63, %s64, %s65
      %p69 = pneg %p63
      %p70 = scmp.eq.s32.totalorder %s28, 1
      %p71 = por %p69, %p70
      %p72 = scmp.ne.s32.totalorder %s64, %s67
      %p73 = scmp.eq.s32.totalorder %s28, 0
      %p74 = por %p72, %p73
      %p75 = scmp.ne.s32.totalorder %s64, %s67
      %p76 = scmp.eq.s32.totalorder %s33, 1
      %p77 = por %p75, %p76
      %p78 = scmp.ne.s32.totalorder %s67, %s68
      %p79 = scmp.eq.s32.totalorder %s33, 0
      %p80 = por %p78, %p79
      %p81 = scmp.ne.s32.totalorder %s67, %s68
      %p82 = scmp.eq.s32.totalorder %s34, 1
      %p83 = por %p81, %p82
      %p85 = scmp.ne.s32.totalorder %s68, %s84
      %p86 = scmp.eq.s32.totalorder %s34, 0
      %p87 = por %p85, %p86
      %s89 = sadd.s32 %s88, 1
      %p92 = scmp.eq.s32.totalorder %s28, 1
      %p93 = scmp.ne.s32.totalorder %s88, %s90
      %p94 = scmp.eq.s32.totalorder %s28, 0
      %p95 = por %p93, %p94
      %p96 = scmp.ne.s32.totalorder %s88, %s90
      %p97 = scmp.eq.s32.totalorder %s33, 1
      %p98 = por %p96, %p97
      %p99 = scmp.ne.s32.totalorder %s90, %s91
      %p100 = scmp.eq.s32.totalorder %s33, 0
      %p101 = por %p99, %p100
      %p102 = scmp.ne.s32.totalorder %s90, %s91
      %p103 = scmp.eq.s32.totalorder %s34, 1
      %p104 = por %p102, %p103
      %p106 = scmp.ne.s32.totalorder %s91, %s105
      %p107 = scmp.eq.s32.totalorder %s34, 0
      %p108 = por %p106, %p107
      %s110 = sadd.s32 %s109, 1
      %p113 = scmp.eq.s32.totalorder %s28, 1
      %p114 = scmp.ne.s32.totalorder %s109, %s111
      %p115 = scmp.eq.s32.totalorder %s28, 0
      %p116 = por %p114, %p115
      %p117 = scmp.ne.s32.totalorder %s109, %s111
      %p118 = scmp.eq.s32.totalorder %s33, 1
      %p119 = por %p117, %p118
      %p120 = scmp.ne.s32.totalorder %s111, %s112
      %p121 = scmp.eq.s32.totalorder %s33, 0
      %p122 = por %p120, %p121
      %p123 = scmp.ne.s32.totalorder %s111, %s112
      %p124 = scmp.eq.s32.totalorder %s34, 1
      %p125 = por %p123, %p124
      %p127 = scmp.ne.s32.totalorder %s112, %s126
      %p128 = scmp.eq.s32.totalorder %s34, 0
      %p129 = por %p127, %p128
      %s131 = sadd.s32 %s130, 1
      %p134 = scmp.eq.s32.totalorder %s28, 1
      %p135 = scmp.ne.s32.totalorder %s130, %s132
      %p136 = scmp.eq.s32.totalorder %s28, 0
      %p137 = por %p135, %p136
      %p138 = scmp.ne.s32.totalorder %s130, %s132
      %p139 = scmp.eq.s32.totalorder %s33, 1
      %p140 = por %p138, %p139
      %p141 = scmp.ne.s32.totalorder %s132, %s133
      %p142 = scmp.eq.s32.totalorder %s33, 0
      %p143 = por %p141, %p142
      %p144 = scmp.ne.s32.totalorder %s132, %s133
      %p145 = scmp.eq.s32.totalorder %s34, 1
      %p146 = por %p144, %p145
      %p148 = scmp.ne.s32.totalorder %s133, %s147
      %p149 = scmp.eq.s32.totalorder %s34, 0
      %p150 = por %p148, %p149
      %s152 = sadd.s32 %s151, 1
      %p155 = scmp.eq.s32.totalorder %s28, 1
      %p156 = scmp.ne.s32.totalorder %s151, %s153
      %p157 = scmp.eq.s32.totalorder %s28, 0
      %p158 = por %p156, %p157
      %p159 = scmp.ne.s32.totalorder %s151, %s153
      %p160 = scmp.eq.s32.totalorder %s33, 1
      %p161 = por %p159, %p160
      %p162 = scmp.ne.s32.totalorder %s153, %s154
      %p163 = scmp.eq.s32.totalorder %s33, 0
      %p164 = por %p162, %p163
      %p165 = scmp.ne.s32.totalorder %s153, %s154
      %p166 = scmp.eq.s32.totalorder %s34, 1
      %p167 = por %p165, %p166
      %p169 = scmp.ne.s32.totalorder %s154, %s168
      %p170 = scmp.eq.s32.totalorder %s34, 0
      %p171 = por %p169, %p170
      %s173 = sadd.s32 %s172, 1
      %p176 = scmp.eq.s32.totalorder %s28, 1
      %p177 = scmp.ne.s32.totalorder %s172, %s174
      %p178 = scmp.eq.s32.totalorder %s28, 0
      %p179 = por %p177, %p178
      %p180 = scmp.ne.s32.totalorder %s172, %s174
      %p181 = scmp.eq.s32.totalorder %s33, 1
      %p182 = por %p180, %p181
      %p183 = scmp.ne.s32.totalorder %s174, %s175
      %p184 = scmp.eq.s32.totalorder %s33, 0
      %p185 = por %p183, %p184
      %p186 = scmp.ne.s32.totalorder %s174, %s175
      %p187 = scmp.eq.s32.totalorder %s34, 1
      %p188 = por %p186, %p187
      %p190 = scmp.ne.s32.totalorder %s175, %s189
      %p191 = scmp.eq.s32.totalorder %s34, 0
      %p192 = por %p190, %p191
      %s194 = sadd.s32 %s193, 1
      %p197 = scmp.eq.s32.totalorder %s28, 1
      %p198 = scmp.ne.s32.totalorder %s193, %s195
      %p199 = scmp.eq.s32.totalorder %s28, 0
      %p200 = por %p198, %p199
      %p201 = scmp.ne.s32.totalorder %s193, %s195
      %p202 = scmp.eq.s32.totalorder %s33, 1
      %p203 = por %p201, %p202
      %p204 = scmp.ne.s32.totalorder %s195, %s196
      %p205 = scmp.eq.s32.totalorder %s33, 0
      %p206 = por %p204, %p205
      %p207 = scmp.ne.s32.totalorder %s195, %s196
      %p208 = scmp.eq.s32.totalorder %s34, 1
      %p209 = por %p207, %p208
      %p211 = scmp.ne.s32.totalorder %s196, %s210
      %p212 = scmp.eq.s32.totalorder %s34, 0
      %p213 = por %p211, %p212
      %s215 = sadd.s32 %s214, 1
      %p218 = scmp.eq.s32.totalorder %s28, 1
      %p219 = scmp.ne.s32.totalorder %s214, %s216
      %p220 = scmp.eq.s32.totalorder %s28, 0
      %p221 = por %p219, %p220
      %p222 = scmp.ne.s32.totalorder %s214, %s216
      %p223 = scmp.eq.s32.totalorder %s33, 1
      %p224 = por %p222, %p223
      %p225 = scmp.ne.s32.totalorder %s216, %s217
      %p226 = scmp.eq.s32.totalorder %s33, 0
      %p227 = por %p225, %p226
      %p228 = scmp.ne.s32.totalorder %s216, %s217
      %p229 = scmp.eq.s32.totalorder %s34, 1
      %p230 = por %p228, %p229
      %p232 = scmp.ne.s32.totalorder %s217, %s231
      %p233 = scmp.eq.s32.totalorder %s34, 0
      %p234 = por %p232, %p233
      %s236 = sadd.s32 %s235, 1
      %p239 = scmp.eq.s32.totalorder %s28, 1
      %p240 = scmp.ne.s32.totalorder %s235, %s237
      %p241 = scmp.eq.s32.totalorder %s28, 0
      %p242 = por %p240, %p241
      %p243 = scmp.ne.s32.totalorder %s235, %s237
      %p244 = scmp.eq.s32.totalorder %s33, 1
      %p245 = por %p243, %p244
      %p246 = scmp.ne.s32.totalorder %s237, %s238
      %p247 = scmp.eq.s32.totalorder %s33, 0
      %p248 = por %p246, %p247
      %p249 = scmp.ne.s32.totalorder %s237, %s238
      %p250 = scmp.eq.s32.totalorder %s34, 1
      %p251 = por %p249, %p250
      %p253 = scmp.ne.s32.totalorder %s238, %s252
      %p254 = scmp.eq.s32.totalorder %s34, 0
      %p255 = por %p253, %p254
      %s256 = ssub.s32 %s28, %s35
      %p257 = scmp.eq.s32.totalorder %s256, 0
      %s259 = sadd.s32 %s258, 1
      %s260 = scalar_select %p257, %s258, %s259
      %p263 = pneg %p257
      %p264 = scmp.eq.s32.totalorder %s28, 1
      %p265 = por %p263, %p264
      %p266 = scmp.ne.s32.totalorder %s258, %s261
      %p267 = scmp.eq.s32.totalorder %s28, 0
      %p268 = por %p266, %p267
      %p269 = scmp.ne.s32.totalorder %s258, %s261
      %p270 = scmp.eq.s32.totalorder %s33, 1
      %p271 = por %p269, %p270
      %p272 = scmp.ne.s32.totalorder %s261, %s262
      %p273 = scmp.eq.s32.totalorder %s33, 0
      %p274 = por %p272, %p273
      %p275 = scmp.ne.s32.totalorder %s261, %s262
      %p276 = scmp.eq.s32.totalorder %s34, 1
      %p277 = por %p275, %p276
      %p279 = scmp.ne.s32.totalorder %s262, %s278
      %p280 = scmp.eq.s32.totalorder %s34, 0
      %p281 = por %p279, %p280
      %p282 = scmp.le.s32.totalorder 1, %s28
      %p283 = scmp.lt.s32.totalorder %s28, 3
      %p284 = pnand %p282, %p283
      %p285 = pneg %p284
      // Predicated region
      $region9: #{tpu_custom_call.1} parent=5 // pred_check
        _
      $region10: #{tpu_custom_call.1} parent=5 // pred_check_branch
        %287 = sbr.rel (%p284) target = $region12
      $region11: #{tpu_custom_call.1} parent=5 // pred_region
        %s288 = ssub.s32 %s28, 1
        // Predicated region
        $region13: #{tpu_custom_call.1} parent=11 // pred_check
          %p289 = pneg %p101
        $region14: #{tpu_custom_call.1} parent=11 // pred_check_branch
          %291 = sbr.rel (%p289) target = $region16
        $region15: #{tpu_custom_call.1} parent=11 // pred_region
          %293 = vsyncadd [#allocation7], 0
          %s294 = sshll.u32 %s2, 4
          %s295 = int_to_ptr.hbm [resolvable:$true] %s294
          %s296 = sshll.u32 [#allocation8], 4
          %s297 = int_to_ptr.vmem [resolvable:$true] %s296
          %302 = dma.hbm_to_vmem [thread:$0]  %s295, 6144, %s297, [#allocation7], 192, 192, 12
        $region16: #{tpu_custom_call.1} parent=11 // pred_fallthru
          _
        // Predicated region
        $region17: #{tpu_custom_call.1} parent=11 // pred_check
          %p303 = pneg %p122
        $region18: #{tpu_custom_call.1} parent=11 // pred_check_branch
          %305 = sbr.rel (%p303) target = $region20
        $region19: #{tpu_custom_call.1} parent=11 // pred_region
          _
        $region20: #{tpu_custom_call.1} parent=11 // pred_fallthru
          _
        // Predicated region
        $region21: #{tpu_custom_call.1} parent=11 // pred_check
          %p306 = pneg %p143
        $region22: #{tpu_custom_call.1} parent=11 // pred_check_branch
          %308 = sbr.rel (%p306) target = $region24
        $region23: #{tpu_custom_call.1} parent=11 // pred_region
          %310 = vsyncadd [#allocation10], 0
          %s311 = sshll.u32 %s4, 4
          %s312 = int_to_ptr.hbm [resolvable:$true] %s311
          %s313 = sshll.u32 [#allocation9], 4
          %s314 = int_to_ptr.vmem [resolvable:$true] %s313
          %319 = dma.hbm_to_vmem [thread:$0]  %s312, 6144, %s314, [#allocation10], 128, 128, 8
        $region24: #{tpu_custom_call.1} parent=11 // pred_fallthru
          _
        // Predicated region
        $region25: #{tpu_custom_call.1} parent=11 // pred_check
          %p320 = pneg %p164
        $region26: #{tpu_custom_call.1} parent=11 // pred_check_branch
          %322 = sbr.rel (%p320) target = $region28
        $region27: #{tpu_custom_call.1} parent=11 // pred_region
          %324 = vsyncadd [#allocation10], 0
          %s326 = sshll.u32 %s5, 4
          %s327 = int_to_ptr.hbm [resolvable:$true] %s326
          %s328 = sshll.u32 [#allocation11], 4
          %s329 = int_to_ptr.vmem [resolvable:$true] %s328
          %331 = dma.hbm_to_vmem [thread:$0]  %s327, 32, %s329, [#allocation10]
        $region28: #{tpu_custom_call.1} parent=11 // pred_fallthru
          _
        // Predicated region
        $region29: #{tpu_custom_call.1} parent=11 // pred_check
          %p332 = pneg %p185
        $region30: #{tpu_custom_call.1} parent=11 // pred_check_branch
          %334 = sbr.rel (%p332) target = $region32
        $region31: #{tpu_custom_call.1} parent=11 // pred_region
          %336 = vsyncadd [#allocation13], 0
          %s337 = sshll.u32 %s6, 4
          %s338 = int_to_ptr.hbm [resolvable:$true] %s337
          %s339 = sshll.u32 [#allocation12], 4
          %s340 = int_to_ptr.vmem [resolvable:$true] %s339
          %345 = dma.hbm_to_vmem [thread:$0]  %s338, 6144, %s340, [#allocation13], 192, 192, 12
        $region32: #{tpu_custom_call.1} parent=11 // pred_fallthru
          _
        // Predicated region
        $region33: #{tpu_custom_call.1} parent=11 // pred_check
          %p346 = pneg %p206
        $region34: #{tpu_custom_call.1} parent=11 // pred_check_branch
          %348 = sbr.rel (%p346) target = $region36
        $region35: #{tpu_custom_call.1} parent=11 // pred_region
          _
        $region36: #{tpu_custom_call.1} parent=11 // pred_fallthru
          _
        // Predicated region
        $region37: #{tpu_custom_call.1} parent=11 // pred_check
          %p349 = pneg %p227
        $region38: #{tpu_custom_call.1} parent=11 // pred_check_branch
          %351 = sbr.rel (%p349) target = $region40
        $region39: #{tpu_custom_call.1} parent=11 // pred_region
          _
        $region40: #{tpu_custom_call.1} parent=11 // pred_fallthru
          _
        // Predicated region
        $region41: #{tpu_custom_call.1} parent=11 // pred_check
          %p352 = pneg %p248
        $region42: #{tpu_custom_call.1} parent=11 // pred_check_branch
          %354 = sbr.rel (%p352) target = $region44
        $region43: #{tpu_custom_call.1} parent=11 // pred_region
          _
        $region44: #{tpu_custom_call.1} parent=11 // pred_fallthru
          _
      $region12: #{tpu_custom_call.1} parent=5 // pred_fallthru
        _
      %p355 = scmp.lt.s32.totalorder %s28, 2
      // Predicated region
      $region45: #{tpu_custom_call.1} parent=5 // pred_check
        %p356 = pneg %p355
      $region46: #{tpu_custom_call.1} parent=5 // pred_check_branch
        %358 = sbr.rel (%p356) target = $region48
      $region47: #{tpu_custom_call.1} parent=5 // pred_region
        // Predicated region
        $region49: #{tpu_custom_call.1} parent=47 // pred_check
          %p359 = pneg %p48
        $region50: #{tpu_custom_call.1} parent=47 // pred_check_branch
          %361 = sbr.rel (%p359) target = $region52
        $region51: #{tpu_custom_call.1} parent=47 // pred_region
          %s362 = sand.u32 %s38, 1
          %s363 = scalar_lea.sflag [#allocation4], %s362
          %s364 = sand.u32 %s38, 1
          %s365 = smul.addr %s364, 16
          %s366 = scalar_lea.vmem [#allocation3], %s365
          %368 = vsyncadd %s363, 0
          %s369 = smul.addr %s28, 2
          %s370 = smul.addr %s369, 8
          %s371 = scalar_lea.hbm %s0, %s370
          %s373 = sshll.u32 %s371, 4
          %s374 = int_to_ptr.hbm [resolvable:$true] %s373
          %s375 = sshll.u32 %s366, 4
          %s376 = int_to_ptr.vmem [resolvable:$true] %s375
          %378 = dma.hbm_to_vmem [thread:$0]  %s374, 256, %s376, %s363
        $region52: #{tpu_custom_call.1} parent=47 // pred_fallthru
          _
        // Predicated region
        $region53: #{tpu_custom_call.1} parent=47 // pred_check
          %p379 = pneg %p74
        $region54: #{tpu_custom_call.1} parent=47 // pred_check_branch
          %381 = sbr.rel (%p379) target = $region56
        $region55: #{tpu_custom_call.1} parent=47 // pred_region
          %s382 = sand.u32 %s28, 1
          %s383 = scalar_lea.sflag [#allocation7], %s382
          %s384 = sand.u32 %s64, 1
          %s385 = smul.addr %s384, 16
          %s386 = scalar_lea.vmem [#allocation6], %s385
          %388 = vsyncadd %s383, 0
          %s389 = smul.addr %s28, 2
          %s390 = smul.addr %s389, 8
          %s391 = scalar_lea.hbm %s1, %s390
          %s393 = sshll.u32 %s391, 4
          %s394 = int_to_ptr.hbm [resolvable:$true] %s393
          %s395 = sshll.u32 %s386, 4
          %s396 = int_to_ptr.vmem [resolvable:$true] %s395
          %398 = dma.hbm_to_vmem [thread:$0]  %s394, 256, %s396, %s383
        $region56: #{tpu_custom_call.1} parent=47 // pred_fallthru
          _
      $region48: #{tpu_custom_call.1} parent=5 // pred_fallthru
        _
      %p399 = scmp.le.s32.totalorder 1, %s28
      %p400 = scmp.lt.s32.totalorder %s28, 3
      %p401 = pnand %p399, %p400
      %p402 = pneg %p401
      // Predicated region
      $region57: #{tpu_custom_call.1} parent=5 // pred_check
        _
      $region58: #{tpu_custom_call.1} parent=5 // pred_check_branch
        %404 = sbr.rel (%p401) target = $region60
      $region59: #{tpu_custom_call.1} parent=5 // pred_region
        %s405 = ssub.s32 %s28, 1
        %s406 = sand.u32 %s41, 1
        %s407 = scalar_lea.sflag [#allocation4], %s406
        %s408 = sand.u32 %s41, 1
        %s409 = smul.addr %s408, 16
        %s410 = scalar_lea.vmem [#allocation3], %s409
        // Predicated region
        $region61: #{tpu_custom_call.1} parent=59 // pred_check
          %p411 = pneg %p54
        $region62: #{tpu_custom_call.1} parent=59 // pred_check_branch
          %413 = sbr.rel (%p411) target = $region64
        $region63: #{tpu_custom_call.1} parent=59 // pred_region
          %415 = dma.done %s407, 256
        $region64: #{tpu_custom_call.1} parent=59 // pred_fallthru
          _
        %s416 = sand.u32 %s33, 1
        %s417 = scalar_lea.sflag [#allocation7], %s416
        %s418 = sand.u32 %s67, 1
        %s419 = smul.addr %s418, 16
        %s420 = scalar_lea.vmem [#allocation6], %s419
        // Predicated region
        $region65: #{tpu_custom_call.1} parent=59 // pred_check
          %p421 = pneg %p80
        $region66: #{tpu_custom_call.1} parent=59 // pred_check_branch
          %423 = sbr.rel (%p421) target = $region68
        $region67: #{tpu_custom_call.1} parent=59 // pred_region
          %425 = dma.done %s417, 256
        $region68: #{tpu_custom_call.1} parent=59 // pred_fallthru
          _
        // Predicated region
        $region69: #{tpu_custom_call.1} parent=59 // pred_check
          %p426 = pneg %p101
        $region70: #{tpu_custom_call.1} parent=59 // pred_check_branch
          %428 = sbr.rel (%p426) target = $region72
        $region71: #{tpu_custom_call.1} parent=59 // pred_region
          %430 = dma.done [#allocation7], 6144
        $region72: #{tpu_custom_call.1} parent=59 // pred_fallthru
          _
        // Predicated region
        $region73: #{tpu_custom_call.1} parent=59 // pred_check
          %p431 = pneg %p143
        $region74: #{tpu_custom_call.1} parent=59 // pred_check_branch
          %433 = sbr.rel (%p431) target = $region76
        $region75: #{tpu_custom_call.1} parent=59 // pred_region
          %435 = dma.done [#allocation10], 6144
        $region76: #{tpu_custom_call.1} parent=59 // pred_fallthru
          _
        // Predicated region
        $region77: #{tpu_custom_call.1} parent=59 // pred_check
          %p436 = pneg %p164
        $region78: #{tpu_custom_call.1} parent=59 // pred_check_branch
          %438 = sbr.rel (%p436) target = $region80
        $region79: #{tpu_custom_call.1} parent=59 // pred_region
          %440 = dma.done [#allocation10], 32
        $region80: #{tpu_custom_call.1} parent=59 // pred_fallthru
          _
        // Predicated region
        $region81: #{tpu_custom_call.1} parent=59 // pred_check
          %p441 = pneg %p185
        $region82: #{tpu_custom_call.1} parent=59 // pred_check_branch
          %443 = sbr.rel (%p441) target = $region84
        $region83: #{tpu_custom_call.1} parent=59 // pred_region
          %445 = dma.done [#allocation13], 6144
        $region84: #{tpu_custom_call.1} parent=59 // pred_fallthru
          _
        %s446 = sand.u32 %s41, 1
        %s447 = scalar_lea.sflag [#allocation4], %s446
        %s448 = sand.u32 %s41, 1
        %s449 = smul.addr %s448, 16
        %s450 = scalar_lea.vmem [#allocation3], %s449
        %p451 = pneg %p54
        %p452 = pneg %p51
        %s453 = sand.u32 %s33, 1
        %s454 = scalar_lea.sflag [#allocation7], %s453
        %s455 = sand.u32 %s67, 1
        %s456 = smul.addr %s455, 16
        %s457 = scalar_lea.vmem [#allocation6], %s456
        %p458 = pneg %p80
        %p459 = pneg %p77
        %p460 = pneg %p101
        %p461 = pneg %p98
        %p462 = pneg %p122
        %p463 = pneg %p119
        %p464 = pneg %p143
        %p465 = pneg %p140
        %p466 = pneg %p164
        %p467 = pneg %p161
        %p468 = pneg %p185
        %p469 = pneg %p182
        %p470 = pneg %p206
        %p471 = pneg %p203
        %p472 = pneg %p227
        %p473 = pneg %p224
        %p474 = pneg %p248
        %p475 = pneg %p245
        %p476 = pneg %p274
        %p477 = pneg %p271
        %s478 = sand.u32 %s261, 1
        %s479 = scalar_lea.sflag [#allocation5], %s478
        %s480 = sand.u32 %s261, 1
        %s481 = smul.addr %s480, 8
        %s482 = scalar_lea.vmem [#allocation14], %s481
        %v483 = vld [vmem:[%s420] sm:$0xff]
        %v484 = vld [vmem:[%s420 + $0x8] sm:$0xff]
        %v485 = vpack.c.bf16 %v483, %v483
        %v486 = vpack.c.bf16 %v484, %v484
        %v487 = vld [vmem:[#allocation8] sm:$0xff]
        %v488 = vld [vmem:[#allocation8 + $0x8] sm:$0xf]
        %v489 = vld [vmem:[#allocation8 + $0xc] sm:$0xff]
        %v490 = vld [vmem:[#allocation8 + $0x14] sm:$0xf]
        %v491 = vld [vmem:[#allocation8 + $0x18] sm:$0xff]
        %v492 = vld [vmem:[#allocation8 + $0x20] sm:$0xf]
        %v493 = vld [vmem:[#allocation8 + $0x24] sm:$0xff]
        %v494 = vld [vmem:[#allocation8 + $0x2c] sm:$0xf]
        %v495 = vld [vmem:[#allocation8 + $0x30] sm:$0xff]
        %v496 = vld [vmem:[#allocation8 + $0x38] sm:$0xf]
        %v497 = vld [vmem:[#allocation8 + $0x3c] sm:$0xff]
        %v498 = vld [vmem:[#allocation8 + $0x44] sm:$0xf]
        %v499 = vld [vmem:[#allocation8 + $0x48] sm:$0xff]
        %v500 = vld [vmem:[#allocation8 + $0x50] sm:$0xf]
        %v501 = vld [vmem:[#allocation8 + $0x54] sm:$0xff]
        %v502 = vld [vmem:[#allocation8 + $0x5c] sm:$0xf]
        %v503 = vld [vmem:[#allocation8 + $0x60] sm:$0xff]
        %v504 = vld [vmem:[#allocation8 + $0x68] sm:$0xf]
        %v505 = vld [vmem:[#allocation8 + $0x6c] sm:$0xff]
        %v506 = vld [vmem:[#allocation8 + $0x74] sm:$0xf]
        %v507 = vld [vmem:[#allocation8 + $0x78] sm:$0xff]
        %v508 = vld [vmem:[#allocation8 + $0x80] sm:$0xf]
        %v509 = vld [vmem:[#allocation8 + $0x84] sm:$0xff]
        %v510 = vld [vmem:[#allocation8 + $0x8c] sm:$0xf]
        %v511 = vld [vmem:[#allocation8 + $0x90] sm:$0xff]
        %v512 = vld [vmem:[#allocation8 + $0x98] sm:$0xf]
        %v513 = vld [vmem:[#allocation8 + $0x9c] sm:$0xff]
        %v514 = vld [vmem:[#allocation8 + $0xa4] sm:$0xf]
        %v515 = vld [vmem:[#allocation8 + $0xa8] sm:$0xff]
        %v516 = vld [vmem:[#allocation8 + $0xb0] sm:$0xf]
        %v517 = vld [vmem:[#allocation8 + $0xb4] sm:$0xff]
        %v518 = vld [vmem:[#allocation8 + $0xbc] sm:$0xf]
        %v519 = vld [vmem:[#allocation8 + $0xc0] sm:$0xff]
        %v520 = vld [vmem:[#allocation8 + $0xc8] sm:$0xf]
        %v521 = vld [vmem:[#allocation8 + $0xcc] sm:$0xff]
        %v522 = vld [vmem:[#allocation8 + $0xd4] sm:$0xf]
        %v523 = vld [vmem:[#allocation8 + $0xd8] sm:$0xff]
        %v524 = vld [vmem:[#allocation8 + $0xe0] sm:$0xf]
        %v525 = vld [vmem:[#allocation8 + $0xe4] sm:$0xff]
        %v526 = vld [vmem:[#allocation8 + $0xec] sm:$0xf]
        %v527 = vld [vmem:[#allocation8 + $0xf0] sm:$0xff]
        %v528 = vld [vmem:[#allocation8 + $0xf8] sm:$0xf]
        %v529 = vld [vmem:[#allocation8 + $0xfc] sm:$0xff]
        %v530 = vld [vmem:[#allocation8 + $0x104] sm:$0xf]
        %v531 = vld [vmem:[#allocation8 + $0x108] sm:$0xff]
        %v532 = vld [vmem:[#allocation8 + $0x110] sm:$0xf]
        %v533 = vld [vmem:[#allocation8 + $0x114] sm:$0xff]
        %v534 = vld [vmem:[#allocation8 + $0x11c] sm:$0xf]
        %v535 = vld [vmem:[#allocation8 + $0x120] sm:$0xff]
        %v536 = vld [vmem:[#allocation8 + $0x128] sm:$0xf]
        %v537 = vld [vmem:[#allocation8 + $0x12c] sm:$0xff]
        %v538 = vld [vmem:[#allocation8 + $0x134] sm:$0xf]
        %v539 = vld [vmem:[#allocation8 + $0x138] sm:$0xff]
        %v540 = vld [vmem:[#allocation8 + $0x140] sm:$0xf]
        %v541 = vld [vmem:[#allocation8 + $0x144] sm:$0xff]
        %v542 = vld [vmem:[#allocation8 + $0x14c] sm:$0xf]
        %v543 = vld [vmem:[#allocation8 + $0x150] sm:$0xff]
        %v544 = vld [vmem:[#allocation8 + $0x158] sm:$0xf]
        %v545 = vld [vmem:[#allocation8 + $0x15c] sm:$0xff]
        %v546 = vld [vmem:[#allocation8 + $0x164] sm:$0xf]
        %v547 = vld [vmem:[#allocation8 + $0x168] sm:$0xff]
        %v548 = vld [vmem:[#allocation8 + $0x170] sm:$0xf]
        %v549 = vld [vmem:[#allocation8 + $0x174] sm:$0xff]
        %v550 = vld [vmem:[#allocation8 + $0x17c] sm:$0xf]
        %v551 = vld [vmem:[%s3] sm:$0x7]
        %v553 = vperm.slane %v551, 0
        %v554 = vperm.slane %v551, 1
        %v555 = vperm.slane %v551, 2
        %v623 = vunpack.c.l.b16 %v487
        %v624 = vunpack.c.h.b16 %v487
        %v625 = vunpack.c.l.b16 %v488
        %v626 = vunpack.c.l.b16 %v489
        %v627 = vunpack.c.h.b16 %v489
        %v628 = vunpack.c.l.b16 %v490
        %v629 = vunpack.c.l.b16 %v491
        %v630 = vunpack.c.h.b16 %v491
        %v631 = vunpack.c.l.b16 %v492
        %v632 = vunpack.c.l.b16 %v493
        %v633 = vunpack.c.h.b16 %v493
        %v634 = vunpack.c.l.b16 %v494
        %v635 = vunpack.c.l.b16 %v495
        %v636 = vunpack.c.h.b16 %v495
        %v637 = vunpack.c.l.b16 %v496
        %v638 = vunpack.c.l.b16 %v497
        %v639 = vunpack.c.h.b16 %v497
        %v640 = vunpack.c.l.b16 %v498
        %v641 = vunpack.c.l.b16 %v499
        %v642 = vunpack.c.h.b16 %v499
        %v643 = vunpack.c.l.b16 %v500
        %v644 = vunpack.c.l.b16 %v501
        %v645 = vunpack.c.h.b16 %v501
        %v646 = vunpack.c.l.b16 %v502
        %v647 = vunpack.c.l.b16 %v503
        %v648 = vunpack.c.h.b16 %v503
        %v649 = vunpack.c.l.b16 %v504
        %v650 = vunpack.c.l.b16 %v505
        %v651 = vunpack.c.h.b16 %v505
        %v652 = vunpack.c.l.b16 %v506
        %v653 = vunpack.c.l.b16 %v507
        %v654 = vunpack.c.h.b16 %v507
        %v655 = vunpack.c.l.b16 %v508
        %v656 = vunpack.c.l.b16 %v509
        %v657 = vunpack.c.h.b16 %v509
        %v658 = vunpack.c.l.b16 %v510
        %v659 = vunpack.c.l.b16 %v511
        %v660 = vunpack.c.h.b16 %v511
        %v661 = vunpack.c.l.b16 %v512
        %v662 = vunpack.c.l.b16 %v513
        %v663 = vunpack.c.h.b16 %v513
        %v664 = vunpack.c.l.b16 %v514
        %v665 = vunpack.c.l.b16 %v515
        %v666 = vunpack.c.h.b16 %v515
        %v667 = vunpack.c.l.b16 %v516
        %v668 = vunpack.c.l.b16 %v517
        %v669 = vunpack.c.h.b16 %v517
        %v670 = vunpack.c.l.b16 %v518
        %v671 = vunpack.c.l.b16 %v519
        %v672 = vunpack.c.h.b16 %v519
        %v673 = vunpack.c.l.b16 %v520
        %v674 = vunpack.c.l.b16 %v521
        %v675 = vunpack.c.h.b16 %v521
        %v676 = vunpack.c.l.b16 %v522
        %v677 = vunpack.c.l.b16 %v523
        %v678 = vunpack.c.h.b16 %v523
        %v679 = vunpack.c.l.b16 %v524
        %v680 = vunpack.c.l.b16 %v525
        %v681 = vunpack.c.h.b16 %v525
        %v682 = vunpack.c.l.b16 %v526
        %v683 = vunpack.c.l.b16 %v527
        %v684 = vunpack.c.h.b16 %v527
        %v685 = vunpack.c.l.b16 %v528
        %v686 = vunpack.c.l.b16 %v529
        %v687 = vunpack.c.h.b16 %v529
        %v688 = vunpack.c.l.b16 %v530
        %v689 = vunpack.c.l.b16 %v531
        %v690 = vunpack.c.h.b16 %v531
        %v691 = vunpack.c.l.b16 %v532
        %v692 = vunpack.c.l.b16 %v533
        %v693 = vunpack.c.h.b16 %v533
        %v694 = vunpack.c.l.b16 %v534
        %v695 = vunpack.c.l.b16 %v535
        %v696 = vunpack.c.h.b16 %v535
        %v697 = vunpack.c.l.b16 %v536
        %v698 = vunpack.c.l.b16 %v537
        %v699 = vunpack.c.h.b16 %v537
        %v700 = vunpack.c.l.b16 %v538
        %v701 = vunpack.c.l.b16 %v539
        %v702 = vunpack.c.h.b16 %v539
        %v703 = vunpack.c.l.b16 %v540
        %v704 = vunpack.c.l.b16 %v541
        %v705 = vunpack.c.h.b16 %v541
        %v706 = vunpack.c.l.b16 %v542
        %v707 = vunpack.c.l.b16 %v543
        %v708 = vunpack.c.h.b16 %v543
        %v709 = vunpack.c.l.b16 %v544
        %v710 = vunpack.c.l.b16 %v545
        %v711 = vunpack.c.h.b16 %v545
        %v712 = vunpack.c.l.b16 %v546
        %v713 = vunpack.c.l.b16 %v547
        %v714 = vunpack.c.h.b16 %v547
        %v715 = vunpack.c.l.b16 %v548
        %v716 = vunpack.c.l.b16 %v549
        %v717 = vunpack.c.h.b16 %v549
        %v718 = vunpack.c.l.b16 %v550
        %v719 = vpack.c.b16 %v626, %v623
        %v720 = vpack.c.b16 %v627, %v624
        %v721 = vpack.c.b16 %v628, %v625
        %v722 = vpack.c.b16 %v632, %v629
        %v723 = vpack.c.b16 %v633, %v630
        %v724 = vpack.c.b16 %v634, %v631
        %v725 = vpack.c.b16 %v638, %v635
        %v726 = vpack.c.b16 %v639, %v636
        %v727 = vpack.c.b16 %v640, %v637
        %v728 = vpack.c.b16 %v644, %v641
        %v729 = vpack.c.b16 %v645, %v642
        %v730 = vpack.c.b16 %v646, %v643
        %v731 = vpack.c.b16 %v650, %v647
        %v732 = vpack.c.b16 %v651, %v648
        %v733 = vpack.c.b16 %v652, %v649
        %v734 = vpack.c.b16 %v656, %v653
        %v735 = vpack.c.b16 %v657, %v654
        %v736 = vpack.c.b16 %v658, %v655
        %v737 = vpack.c.b16 %v662, %v659
        %v738 = vpack.c.b16 %v663, %v660
        %v739 = vpack.c.b16 %v664, %v661
        %v740 = vpack.c.b16 %v668, %v665
        %v741 = vpack.c.b16 %v669, %v666
        %v742 = vpack.c.b16 %v670, %v667
        %v743 = vpack.c.b16 %v674, %v671
        %v744 = vpack.c.b16 %v675, %v672
        %v745 = vpack.c.b16 %v676, %v673
        %v746 = vpack.c.b16 %v680, %v677
        %v747 = vpack.c.b16 %v681, %v678
        %v748 = vpack.c.b16 %v682, %v679
        %v749 = vpack.c.b16 %v686, %v683
        %v750 = vpack.c.b16 %v687, %v684
        %v751 = vpack.c.b16 %v688, %v685
        %v752 = vpack.c.b16 %v692, %v689
        %v753 = vpack.c.b16 %v693, %v690
        %v754 = vpack.c.b16 %v694, %v691
        %v755 = vpack.c.b16 %v698, %v695
        %v756 = vpack.c.b16 %v699, %v696
        %v757 = vpack.c.b16 %v700, %v697
        %v758 = vpack.c.b16 %v704, %v701
        %v759 = vpack.c.b16 %v705, %v702
        %v760 = vpack.c.b16 %v706, %v703
        %v761 = vpack.c.b16 %v710, %v707
        %v762 = vpack.c.b16 %v711, %v708
        %v763 = vpack.c.b16 %v712, %v709
        %v764 = vpack.c.b16 %v716, %v713
        %v765 = vpack.c.b16 %v717, %v714
        %v766 = vpack.c.b16 %v718, %v715
        %815 = vmatpush.bf16.msra.mxu0 %v740
        %816 = vmatpush.bf16.msra.mxu0 %v737
        %817 = vmatpush.bf16.msra.mxu0 %v734
        %818 = vmatpush.bf16.msra.mxu0 %v731
        %819 = vmatpush.bf16.msra.mxu0 %v728
        %820 = vmatpush.bf16.msra.mxu0 %v725
        %821 = vmatpush.bf16.msra.mxu0 %v722
        %822 = vmatpush.bf16.msra.mxu0 %v719
        %823 = vmatmul.bf16.gmra.mxu0 %v485
        %v824 = vpop.f32.mrf.mxu0
        %v825 = vadd.f32 %v553, %v824
        %v826 = vpop.f32.mrf.mxu0
        %827 = vdwg.mxu0
        %828 = vmatpush.bf16.msra.mxu0 %v764
        %829 = vmatpush.bf16.msra.mxu0 %v761
        %830 = vmatpush.bf16.msra.mxu0 %v758
        %831 = vmatpush.bf16.msra.mxu0 %v755
        %832 = vmatpush.bf16.msra.mxu0 %v752
        %833 = vmatpush.bf16.msra.mxu0 %v749
        %834 = vmatpush.bf16.msra.mxu0 %v746
        %835 = vmatpush.bf16.msra.mxu0 %v743
        %836 = vmatmul.bf16.gmra.mxu0 %v486
        %v837 = vpop.f32.mrf.mxu0
        %v838 = vadd.f32 %v825, %v837
        %v839 = vpop.f32.mrf.mxu0
        %840 = vdwg.mxu0
        %841 = vmatpush.bf16.msra.mxu0 %v741
        %842 = vmatpush.bf16.msra.mxu0 %v738
        %843 = vmatpush.bf16.msra.mxu0 %v735
        %844 = vmatpush.bf16.msra.mxu0 %v732
        %845 = vmatpush.bf16.msra.mxu0 %v729
        %846 = vmatpush.bf16.msra.mxu0 %v726
        %847 = vmatpush.bf16.msra.mxu0 %v723
        %848 = vmatpush.bf16.msra.mxu0 %v720
        %849 = vmatmul.bf16.gmra.mxu0 %v485
        %v850 = vpop.f32.mrf.mxu0
        %v851 = vadd.f32 %v554, %v850
        %v852 = vpop.f32.mrf.mxu0
        %853 = vdwg.mxu0
        %854 = vmatpush.bf16.msra.mxu0 %v765
        %855 = vmatpush.bf16.msra.mxu0 %v762
        %856 = vmatpush.bf16.msra.mxu0 %v759
        %857 = vmatpush.bf16.msra.mxu0 %v756
        %858 = vmatpush.bf16.msra.mxu0 %v753
        %859 = vmatpush.bf16.msra.mxu0 %v750
        %860 = vmatpush.bf16.msra.mxu0 %v747
        %861 = vmatpush.bf16.msra.mxu0 %v744
        %862 = vmatmul.bf16.gmra.mxu0 %v486
        %v863 = vpop.f32.mrf.mxu0
        %v864 = vadd.f32 %v851, %v863
        %v865 = vpop.f32.mrf.mxu0
        %866 = vdwg.mxu0
        %867 = vmatpush.bf16.msra.mxu0 %v742
        %868 = vmatpush.bf16.msra.mxu0 %v739
        %869 = vmatpush.bf16.msra.mxu0 %v736
        %870 = vmatpush.bf16.msra.mxu0 %v733
        %871 = vmatpush.bf16.msra.mxu0 %v730
        %872 = vmatpush.bf16.msra.mxu0 %v727
        %873 = vmatpush.bf16.msra.mxu0 %v724
        %874 = vmatpush.bf16.msra.mxu0 %v721
        %875 = vmatmul.bf16.gmra.mxu0 %v485
        %v876 = vpop.f32.mrf.mxu0
        %v877 = vadd.f32 %v555, %v876
        %v878 = vpop.f32.mrf.mxu0
        %879 = vdwg.mxu0
        %880 = vmatpush.bf16.msra.mxu0 %v766
        %881 = vmatpush.bf16.msra.mxu0 %v763
        %882 = vmatpush.bf16.msra.mxu0 %v760
        %883 = vmatpush.bf16.msra.mxu0 %v757
        %884 = vmatpush.bf16.msra.mxu0 %v754
        %885 = vmatpush.bf16.msra.mxu0 %v751
        %886 = vmatpush.bf16.msra.mxu0 %v748
        %887 = vmatpush.bf16.msra.mxu0 %v745
        %888 = vmatmul.bf16.gmra.mxu0 %v486
        %v889 = vpop.f32.mrf.mxu0
        %v890 = vadd.f32 %v877, %v889
        %v891 = vpop.f32.mrf.mxu0
        %892 = vdwg.mxu0
        %v893 = vmax.f32 %v838, 0.0
        %v894 = vmax.f32 %v864, 0.0
        %v895 = vmax.f32 %v890, 0.0
        %v896 = vpack.c.bf16 %v893, %v893
        %v897 = vpack.c.bf16 %v894, %v894
        %v898 = vpack.c.bf16 %v895, %v895
        %v899 = vld [vmem:[#allocation9] sm:$0xff]
        %v900 = vld [vmem:[#allocation9 + $0x8] sm:$0xff]
        %v901 = vld [vmem:[#allocation9 + $0x10] sm:$0xff]
        %v902 = vld [vmem:[#allocation9 + $0x18] sm:$0xff]
        %v903 = vld [vmem:[#allocation9 + $0x20] sm:$0xff]
        %v904 = vld [vmem:[#allocation9 + $0x28] sm:$0xff]
        %v905 = vld [vmem:[#allocation9 + $0x30] sm:$0xff]
        %v906 = vld [vmem:[#allocation9 + $0x38] sm:$0xff]
        %v907 = vld [vmem:[#allocation9 + $0x40] sm:$0xff]
        %v908 = vld [vmem:[#allocation9 + $0x48] sm:$0xff]
        %v909 = vld [vmem:[#allocation9 + $0x50] sm:$0xff]
        %v910 = vld [vmem:[#allocation9 + $0x58] sm:$0xff]
        %v911 = vld [vmem:[#allocation9 + $0x60] sm:$0xff]
        %v912 = vld [vmem:[#allocation9 + $0x68] sm:$0xff]
        %v913 = vld [vmem:[#allocation9 + $0x70] sm:$0xff]
        %v914 = vld [vmem:[#allocation9 + $0x78] sm:$0xff]
        %v915 = vld [vmem:[#allocation9 + $0x80] sm:$0xff]
        %v916 = vld [vmem:[#allocation9 + $0x88] sm:$0xff]
        %v917 = vld [vmem:[#allocation9 + $0x90] sm:$0xff]
        %v918 = vld [vmem:[#allocation9 + $0x98] sm:$0xff]
        %v919 = vld [vmem:[#allocation9 + $0xa0] sm:$0xff]
        %v920 = vld [vmem:[#allocation9 + $0xa8] sm:$0xff]
        %v921 = vld [vmem:[#allocation9 + $0xb0] sm:$0xff]
        %v922 = vld [vmem:[#allocation9 + $0xb8] sm:$0xff]
        %v923 = vld [vmem:[#allocation9 + $0xc0] sm:$0xff]
        %v924 = vld [vmem:[#allocation9 + $0xc8] sm:$0xff]
        %v925 = vld [vmem:[#allocation9 + $0xd0] sm:$0xff]
        %v926 = vld [vmem:[#allocation9 + $0xd8] sm:$0xff]
        %v927 = vld [vmem:[#allocation9 + $0xe0] sm:$0xff]
        %v928 = vld [vmem:[#allocation9 + $0xe8] sm:$0xff]
        %v929 = vld [vmem:[#allocation9 + $0xf0] sm:$0xff]
        %v930 = vld [vmem:[#allocation9 + $0xf8] sm:$0xff]
        %v931 = vld [vmem:[#allocation9 + $0x100] sm:$0xff]
        %v932 = vld [vmem:[#allocation9 + $0x108] sm:$0xff]
        %v933 = vld [vmem:[#allocation9 + $0x110] sm:$0xff]
        %v934 = vld [vmem:[#allocation9 + $0x118] sm:$0xff]
        %v935 = vld [vmem:[#allocation9 + $0x120] sm:$0xff]
        %v936 = vld [vmem:[#allocation9 + $0x128] sm:$0xff]
        %v937 = vld [vmem:[#allocation9 + $0x130] sm:$0xff]
        %v938 = vld [vmem:[#allocation9 + $0x138] sm:$0xff]
        %v939 = vld [vmem:[#allocation9 + $0x140] sm:$0xff]
        %v940 = vld [vmem:[#allocation9 + $0x148] sm:$0xff]
        %v941 = vld [vmem:[#allocation9 + $0x150] sm:$0xff]
        %v942 = vld [vmem:[#allocation9 + $0x158] sm:$0xff]
        %v943 = vld [vmem:[#allocation9 + $0x160] sm:$0xff]
        %v944 = vld [vmem:[#allocation9 + $0x168] sm:$0xff]
        %v945 = vld [vmem:[#allocation9 + $0x170] sm:$0xff]
        %v946 = vld [vmem:[#allocation9 + $0x178] sm:$0xff]
        %v947 = vld [vmem:[#allocation11] sm:$0x3]
        %v949 = vperm.slane %v947, 0
        %v950 = vperm.slane %v947, 1
        %v1001 = vunpack.c.l.b16 %v899
        %v1002 = vunpack.c.h.b16 %v899
        %v1003 = vunpack.c.l.b16 %v900
        %v1004 = vunpack.c.h.b16 %v900
        %v1005 = vunpack.c.l.b16 %v901
        %v1006 = vunpack.c.h.b16 %v901
        %v1007 = vunpack.c.l.b16 %v902
        %v1008 = vunpack.c.h.b16 %v902
        %v1009 = vunpack.c.l.b16 %v903
        %v1010 = vunpack.c.h.b16 %v903
        %v1011 = vunpack.c.l.b16 %v904
        %v1012 = vunpack.c.h.b16 %v904
        %v1013 = vunpack.c.l.b16 %v905
        %v1014 = vunpack.c.h.b16 %v905
        %v1015 = vunpack.c.l.b16 %v906
        %v1016 = vunpack.c.h.b16 %v906
        %v1017 = vunpack.c.l.b16 %v907
        %v1018 = vunpack.c.h.b16 %v907
        %v1019 = vunpack.c.l.b16 %v908
        %v1020 = vunpack.c.h.b16 %v908
        %v1021 = vunpack.c.l.b16 %v909
        %v1022 = vunpack.c.h.b16 %v909
        %v1023 = vunpack.c.l.b16 %v910
        %v1024 = vunpack.c.h.b16 %v910
        %v1025 = vunpack.c.l.b16 %v911
        %v1026 = vunpack.c.h.b16 %v911
        %v1027 = vunpack.c.l.b16 %v912
        %v1028 = vunpack.c.h.b16 %v912
        %v1029 = vunpack.c.l.b16 %v913
        %v1030 = vunpack.c.h.b16 %v913
        %v1031 = vunpack.c.l.b16 %v914
        %v1032 = vunpack.c.h.b16 %v914
        %v1033 = vunpack.c.l.b16 %v915
        %v1034 = vunpack.c.h.b16 %v915
        %v1035 = vunpack.c.l.b16 %v916
        %v1036 = vunpack.c.h.b16 %v916
        %v1037 = vunpack.c.l.b16 %v917
        %v1038 = vunpack.c.h.b16 %v917
        %v1039 = vunpack.c.l.b16 %v918
        %v1040 = vunpack.c.h.b16 %v918
        %v1041 = vunpack.c.l.b16 %v919
        %v1042 = vunpack.c.h.b16 %v919
        %v1043 = vunpack.c.l.b16 %v920
        %v1044 = vunpack.c.h.b16 %v920
        %v1045 = vunpack.c.l.b16 %v921
        %v1046 = vunpack.c.h.b16 %v921
        %v1047 = vunpack.c.l.b16 %v922
        %v1048 = vunpack.c.h.b16 %v922
        %v1049 = vunpack.c.l.b16 %v923
        %v1050 = vunpack.c.h.b16 %v923
        %v1051 = vunpack.c.l.b16 %v924
        %v1052 = vunpack.c.h.b16 %v924
        %v1053 = vunpack.c.l.b16 %v925
        %v1054 = vunpack.c.h.b16 %v925
        %v1055 = vunpack.c.l.b16 %v926
        %v1056 = vunpack.c.h.b16 %v926
        %v1057 = vunpack.c.l.b16 %v927
        %v1058 = vunpack.c.h.b16 %v927
        %v1059 = vunpack.c.l.b16 %v928
        %v1060 = vunpack.c.h.b16 %v928
        %v1061 = vunpack.c.l.b16 %v929
        %v1062 = vunpack.c.h.b16 %v929
        %v1063 = vunpack.c.l.b16 %v930
        %v1064 = vunpack.c.h.b16 %v930
        %v1065 = vunpack.c.l.b16 %v931
        %v1066 = vunpack.c.h.b16 %v931
        %v1067 = vunpack.c.l.b16 %v932
        %v1068 = vunpack.c.h.b16 %v932
        %v1069 = vunpack.c.l.b16 %v933
        %v1070 = vunpack.c.h.b16 %v933
        %v1071 = vunpack.c.l.b16 %v934
        %v1072 = vunpack.c.h.b16 %v934
        %v1073 = vunpack.c.l.b16 %v935
        %v1074 = vunpack.c.h.b16 %v935
        %v1075 = vunpack.c.l.b16 %v936
        %v1076 = vunpack.c.h.b16 %v936
        %v1077 = vunpack.c.l.b16 %v937
        %v1078 = vunpack.c.h.b16 %v937
        %v1079 = vunpack.c.l.b16 %v938
        %v1080 = vunpack.c.h.b16 %v938
        %v1081 = vunpack.c.l.b16 %v939
        %v1082 = vunpack.c.h.b16 %v939
        %v1083 = vunpack.c.l.b16 %v940
        %v1084 = vunpack.c.h.b16 %v940
        %v1085 = vunpack.c.l.b16 %v941
        %v1086 = vunpack.c.h.b16 %v941
        %v1087 = vunpack.c.l.b16 %v942
        %v1088 = vunpack.c.h.b16 %v942
        %v1089 = vunpack.c.l.b16 %v943
        %v1090 = vunpack.c.h.b16 %v943
        %v1091 = vunpack.c.l.b16 %v944
        %v1092 = vunpack.c.h.b16 %v944
        %v1093 = vunpack.c.l.b16 %v945
        %v1094 = vunpack.c.h.b16 %v945
        %v1095 = vunpack.c.l.b16 %v946
        %v1096 = vunpack.c.h.b16 %v946
        %v1097 = vpack.c.b16 %v1003, %v1001
        %v1098 = vpack.c.b16 %v1004, %v1002
        %v1099 = vpack.c.b16 %v1007, %v1005
        %v1100 = vpack.c.b16 %v1008, %v1006
        %v1101 = vpack.c.b16 %v1011, %v1009
        %v1102 = vpack.c.b16 %v1012, %v1010
        %v1103 = vpack.c.b16 %v1015, %v1013
        %v1104 = vpack.c.b16 %v1016, %v1014
        %v1105 = vpack.c.b16 %v1019, %v1017
        %v1106 = vpack.c.b16 %v1020, %v1018
        %v1107 = vpack.c.b16 %v1023, %v1021
        %v1108 = vpack.c.b16 %v1024, %v1022
        %v1109 = vpack.c.b16 %v1027, %v1025
        %v1110 = vpack.c.b16 %v1028, %v1026
        %v1111 = vpack.c.b16 %v1031, %v1029
        %v1112 = vpack.c.b16 %v1032, %v1030
        %v1113 = vpack.c.b16 %v1035, %v1033
        %v1114 = vpack.c.b16 %v1036, %v1034
        %v1115 = vpack.c.b16 %v1039, %v1037
        %v1116 = vpack.c.b16 %v1040, %v1038
        %v1117 = vpack.c.b16 %v1043, %v1041
        %v1118 = vpack.c.b16 %v1044, %v1042
        %v1119 = vpack.c.b16 %v1047, %v1045
        %v1120 = vpack.c.b16 %v1048, %v1046
        %v1121 = vpack.c.b16 %v1051, %v1049
        %v1122 = vpack.c.b16 %v1052, %v1050
        %v1123 = vpack.c.b16 %v1055, %v1053
        %v1124 = vpack.c.b16 %v1056, %v1054
        %v1125 = vpack.c.b16 %v1059, %v1057
        %v1126 = vpack.c.b16 %v1060, %v1058
        %v1127 = vpack.c.b16 %v1063, %v1061
        %v1128 = vpack.c.b16 %v1064, %v1062
        %v1129 = vpack.c.b16 %v1067, %v1065
        %v1130 = vpack.c.b16 %v1068, %v1066
        %v1131 = vpack.c.b16 %v1071, %v1069
        %v1132 = vpack.c.b16 %v1072, %v1070
        %v1133 = vpack.c.b16 %v1075, %v1073
        %v1134 = vpack.c.b16 %v1076, %v1074
        %v1135 = vpack.c.b16 %v1079, %v1077
        %v1136 = vpack.c.b16 %v1080, %v1078
        %v1137 = vpack.c.b16 %v1083, %v1081
        %v1138 = vpack.c.b16 %v1084, %v1082
        %v1139 = vpack.c.b16 %v1087, %v1085
        %v1140 = vpack.c.b16 %v1088, %v1086
        %v1141 = vpack.c.b16 %v1091, %v1089
        %v1142 = vpack.c.b16 %v1092, %v1090
        %v1143 = vpack.c.b16 %v1095, %v1093
        %v1144 = vpack.c.b16 %v1096, %v1094
        %1193 = vmatpush.bf16.msra.mxu0 %v1111
        %1194 = vmatpush.bf16.msra.mxu0 %v1109
        %1195 = vmatpush.bf16.msra.mxu0 %v1107
        %1196 = vmatpush.bf16.msra.mxu0 %v1105
        %1197 = vmatpush.bf16.msra.mxu0 %v1103
        %1198 = vmatpush.bf16.msra.mxu0 %v1101
        %1199 = vmatpush.bf16.msra.mxu0 %v1099
        %1200 = vmatpush.bf16.msra.mxu0 %v1097
        %1201 = vmatmul.bf16.gmra.mxu0 %v896
        %v1202 = vpop.f32.mrf.mxu0
        %v1203 = vadd.f32 %v949, %v1202
        %v1204 = vpop.f32.mrf.mxu0
        %1205 = vdwg.mxu0
        %1206 = vmatpush.bf16.msra.mxu0 %v1127
        %1207 = vmatpush.bf16.msra.mxu0 %v1125
        %1208 = vmatpush.bf16.msra.mxu0 %v1123
        %1209 = vmatpush.bf16.msra.mxu0 %v1121
        %1210 = vmatpush.bf16.msra.mxu0 %v1119
        %1211 = vmatpush.bf16.msra.mxu0 %v1117
        %1212 = vmatpush.bf16.msra.mxu0 %v1115
        %1213 = vmatpush.bf16.msra.mxu0 %v1113
        %1214 = vmatmul.bf16.gmra.mxu0 %v897
        %v1215 = vpop.f32.mrf.mxu0
        %v1216 = vadd.f32 %v1203, %v1215
        %v1217 = vpop.f32.mrf.mxu0
        %1218 = vdwg.mxu0
        %1219 = vmatpush.bf16.msra.mxu0 %v1143
        %1220 = vmatpush.bf16.msra.mxu0 %v1141
        %1221 = vmatpush.bf16.msra.mxu0 %v1139
        %1222 = vmatpush.bf16.msra.mxu0 %v1137
        %1223 = vmatpush.bf16.msra.mxu0 %v1135
        %1224 = vmatpush.bf16.msra.mxu0 %v1133
        %1225 = vmatpush.bf16.msra.mxu0 %v1131
        %1226 = vmatpush.bf16.msra.mxu0 %v1129
        %1227 = vmatmul.bf16.gmra.mxu0 %v898
        %v1228 = vpop.f32.mrf.mxu0
        %v1229 = vadd.f32 %v1216, %v1228
        %v1230 = vpop.f32.mrf.mxu0
        %1231 = vdwg.mxu0
        %1232 = vmatpush.bf16.msra.mxu0 %v1112
        %1233 = vmatpush.bf16.msra.mxu0 %v1110
        %1234 = vmatpush.bf16.msra.mxu0 %v1108
        %1235 = vmatpush.bf16.msra.mxu0 %v1106
        %1236 = vmatpush.bf16.msra.mxu0 %v1104
        %1237 = vmatpush.bf16.msra.mxu0 %v1102
        %1238 = vmatpush.bf16.msra.mxu0 %v1100
        %1239 = vmatpush.bf16.msra.mxu0 %v1098
        %1240 = vmatmul.bf16.gmra.mxu0 %v896
        %v1241 = vpop.f32.mrf.mxu0
        %v1242 = vadd.f32 %v950, %v1241
        %v1243 = vpop.f32.mrf.mxu0
        %1244 = vdwg.mxu0
        %1245 = vmatpush.bf16.msra.mxu0 %v1128
        %1246 = vmatpush.bf16.msra.mxu0 %v1126
        %1247 = vmatpush.bf16.msra.mxu0 %v1124
        %1248 = vmatpush.bf16.msra.mxu0 %v1122
        %1249 = vmatpush.bf16.msra.mxu0 %v1120
        %1250 = vmatpush.bf16.msra.mxu0 %v1118
        %1251 = vmatpush.bf16.msra.mxu0 %v1116
        %1252 = vmatpush.bf16.msra.mxu0 %v1114
        %1253 = vmatmul.bf16.gmra.mxu0 %v897
        %v1254 = vpop.f32.mrf.mxu0
        %v1255 = vadd.f32 %v1242, %v1254
        %v1256 = vpop.f32.mrf.mxu0
        %1257 = vdwg.mxu0
        %1258 = vmatpush.bf16.msra.mxu0 %v1144
        %1259 = vmatpush.bf16.msra.mxu0 %v1142
        %1260 = vmatpush.bf16.msra.mxu0 %v1140
        %1261 = vmatpush.bf16.msra.mxu0 %v1138
        %1262 = vmatpush.bf16.msra.mxu0 %v1136
        %1263 = vmatpush.bf16.msra.mxu0 %v1134
        %1264 = vmatpush.bf16.msra.mxu0 %v1132
        %1265 = vmatpush.bf16.msra.mxu0 %v1130
        %1266 = vmatmul.bf16.gmra.mxu0 %v898
        %v1267 = vpop.f32.mrf.mxu0
        %v1268 = vadd.f32 %v1255, %v1267
        %v1269 = vpop.f32.mrf.mxu0
        %1270 = vdwg.mxu0
        %v1271 = vld [vmem:[#allocation12] sm:$0xff]
        %v1272 = vld [vmem:[#allocation12 + $0x8] sm:$0xf]
        %v1273 = vld [vmem:[#allocation12 + $0xc] sm:$0xff]
        %v1274 = vld [vmem:[#allocation12 + $0x14] sm:$0xf]
        %v1275 = vld [vmem:[#allocation12 + $0x18] sm:$0xff]
        %v1276 = vld [vmem:[#allocation12 + $0x20] sm:$0xf]
        %v1277 = vld [vmem:[#allocation12 + $0x24] sm:$0xff]
        %v1278 = vld [vmem:[#allocation12 + $0x2c] sm:$0xf]
        %v1279 = vld [vmem:[#allocation12 + $0x30] sm:$0xff]
        %v1280 = vld [vmem:[#allocation12 + $0x38] sm:$0xf]
        %v1281 = vld [vmem:[#allocation12 + $0x3c] sm:$0xff]
        %v1282 = vld [vmem:[#allocation12 + $0x44] sm:$0xf]
        %v1283 = vld [vmem:[#allocation12 + $0x48] sm:$0xff]
        %v1284 = vld [vmem:[#allocation12 + $0x50] sm:$0xf]
        %v1285 = vld [vmem:[#allocation12 + $0x54] sm:$0xff]
        %v1286 = vld [vmem:[#allocation12 + $0x5c] sm:$0xf]
        %v1287 = vld [vmem:[#allocation12 + $0x60] sm:$0xff]
        %v1288 = vld [vmem:[#allocation12 + $0x68] sm:$0xf]
        %v1289 = vld [vmem:[#allocation12 + $0x6c] sm:$0xff]
        %v1290 = vld [vmem:[#allocation12 + $0x74] sm:$0xf]
        %v1291 = vld [vmem:[#allocation12 + $0x78] sm:$0xff]
        %v1292 = vld [vmem:[#allocation12 + $0x80] sm:$0xf]
        %v1293 = vld [vmem:[#allocation12 + $0x84] sm:$0xff]
        %v1294 = vld [vmem:[#allocation12 + $0x8c] sm:$0xf]
        %v1295 = vld [vmem:[#allocation12 + $0x90] sm:$0xff]
        %v1296 = vld [vmem:[#allocation12 + $0x98] sm:$0xf]
        %v1297 = vld [vmem:[#allocation12 + $0x9c] sm:$0xff]
        %v1298 = vld [vmem:[#allocation12 + $0xa4] sm:$0xf]
        %v1299 = vld [vmem:[#allocation12 + $0xa8] sm:$0xff]
        %v1300 = vld [vmem:[#allocation12 + $0xb0] sm:$0xf]
        %v1301 = vld [vmem:[#allocation12 + $0xb4] sm:$0xff]
        %v1302 = vld [vmem:[#allocation12 + $0xbc] sm:$0xf]
        %v1303 = vld [vmem:[#allocation12 + $0xc0] sm:$0xff]
        %v1304 = vld [vmem:[#allocation12 + $0xc8] sm:$0xf]
        %v1305 = vld [vmem:[#allocation12 + $0xcc] sm:$0xff]
        %v1306 = vld [vmem:[#allocation12 + $0xd4] sm:$0xf]
        %v1307 = vld [vmem:[#allocation12 + $0xd8] sm:$0xff]
        %v1308 = vld [vmem:[#allocation12 + $0xe0] sm:$0xf]
        %v1309 = vld [vmem:[#allocation12 + $0xe4] sm:$0xff]
        %v1310 = vld [vmem:[#allocation12 + $0xec] sm:$0xf]
        %v1311 = vld [vmem:[#allocation12 + $0xf0] sm:$0xff]
        %v1312 = vld [vmem:[#allocation12 + $0xf8] sm:$0xf]
        %v1313 = vld [vmem:[#allocation12 + $0xfc] sm:$0xff]
        %v1314 = vld [vmem:[#allocation12 + $0x104] sm:$0xf]
        %v1315 = vld [vmem:[#allocation12 + $0x108] sm:$0xff]
        %v1316 = vld [vmem:[#allocation12 + $0x110] sm:$0xf]
        %v1317 = vld [vmem:[#allocation12 + $0x114] sm:$0xff]
        %v1318 = vld [vmem:[#allocation12 + $0x11c] sm:$0xf]
        %v1319 = vld [vmem:[#allocation12 + $0x120] sm:$0xff]
        %v1320 = vld [vmem:[#allocation12 + $0x128] sm:$0xf]
        %v1321 = vld [vmem:[#allocation12 + $0x12c] sm:$0xff]
        %v1322 = vld [vmem:[#allocation12 + $0x134] sm:$0xf]
        %v1323 = vld [vmem:[#allocation12 + $0x138] sm:$0xff]
        %v1324 = vld [vmem:[#allocation12 + $0x140] sm:$0xf]
        %v1325 = vld [vmem:[#allocation12 + $0x144] sm:$0xff]
        %v1326 = vld [vmem:[#allocation12 + $0x14c] sm:$0xf]
        %v1327 = vld [vmem:[#allocation12 + $0x150] sm:$0xff]
        %v1328 = vld [vmem:[#allocation12 + $0x158] sm:$0xf]
        %v1329 = vld [vmem:[#allocation12 + $0x15c] sm:$0xff]
        %v1330 = vld [vmem:[#allocation12 + $0x164] sm:$0xf]
        %v1331 = vld [vmem:[#allocation12 + $0x168] sm:$0xff]
        %v1332 = vld [vmem:[#allocation12 + $0x170] sm:$0xf]
        %v1333 = vld [vmem:[#allocation12 + $0x174] sm:$0xff]
        %v1334 = vld [vmem:[#allocation12 + $0x17c] sm:$0xf]
        %v1335 = vld [vmem:[%s7] sm:$0x7]
        %v1336 = vld [vmem:[%s8] sm:$0x7]
        %s1337 = sld [smem:[#allocation2]]
        %v1338 = vld [vmem:[%s410] sm:$0xff]
        %v1339 = vld [vmem:[%s410 + $0x8] sm:$0xff]
        %v1340 = vpack.c.bf16 %v1338, %v1338
        %v1341 = vpack.c.bf16 %v1339, %v1339
        %v1343 = vperm.slane %v1335, 0
        %v1344 = vperm.slane %v1335, 1
        %v1345 = vperm.slane %v1335, 2
        %v1413 = vunpack.c.l.b16 %v1271
        %v1414 = vunpack.c.h.b16 %v1271
        %v1415 = vunpack.c.l.b16 %v1272
        %v1416 = vunpack.c.l.b16 %v1273
        %v1417 = vunpack.c.h.b16 %v1273
        %v1418 = vunpack.c.l.b16 %v1274
        %v1419 = vunpack.c.l.b16 %v1275
        %v1420 = vunpack.c.h.b16 %v1275
        %v1421 = vunpack.c.l.b16 %v1276
        %v1422 = vunpack.c.l.b16 %v1277
        %v1423 = vunpack.c.h.b16 %v1277
        %v1424 = vunpack.c.l.b16 %v1278
        %v1425 = vunpack.c.l.b16 %v1279
        %v1426 = vunpack.c.h.b16 %v1279
        %v1427 = vunpack.c.l.b16 %v1280
        %v1428 = vunpack.c.l.b16 %v1281
        %v1429 = vunpack.c.h.b16 %v1281
        %v1430 = vunpack.c.l.b16 %v1282
        %v1431 = vunpack.c.l.b16 %v1283
        %v1432 = vunpack.c.h.b16 %v1283
        %v1433 = vunpack.c.l.b16 %v1284
        %v1434 = vunpack.c.l.b16 %v1285
        %v1435 = vunpack.c.h.b16 %v1285
        %v1436 = vunpack.c.l.b16 %v1286
        %v1437 = vunpack.c.l.b16 %v1287
        %v1438 = vunpack.c.h.b16 %v1287
        %v1439 = vunpack.c.l.b16 %v1288
        %v1440 = vunpack.c.l.b16 %v1289
        %v1441 = vunpack.c.h.b16 %v1289
        %v1442 = vunpack.c.l.b16 %v1290
        %v1443 = vunpack.c.l.b16 %v1291
        %v1444 = vunpack.c.h.b16 %v1291
        %v1445 = vunpack.c.l.b16 %v1292
        %v1446 = vunpack.c.l.b16 %v1293
        %v1447 = vunpack.c.h.b16 %v1293
        %v1448 = vunpack.c.l.b16 %v1294
        %v1449 = vunpack.c.l.b16 %v1295
        %v1450 = vunpack.c.h.b16 %v1295
        %v1451 = vunpack.c.l.b16 %v1296
        %v1452 = vunpack.c.l.b16 %v1297
        %v1453 = vunpack.c.h.b16 %v1297
        %v1454 = vunpack.c.l.b16 %v1298
        %v1455 = vunpack.c.l.b16 %v1299
        %v1456 = vunpack.c.h.b16 %v1299
        %v1457 = vunpack.c.l.b16 %v1300
        %v1458 = vunpack.c.l.b16 %v1301
        %v1459 = vunpack.c.h.b16 %v1301
        %v1460 = vunpack.c.l.b16 %v1302
        %v1461 = vunpack.c.l.b16 %v1303
        %v1462 = vunpack.c.h.b16 %v1303
        %v1463 = vunpack.c.l.b16 %v1304
        %v1464 = vunpack.c.l.b16 %v1305
        %v1465 = vunpack.c.h.b16 %v1305
        %v1466 = vunpack.c.l.b16 %v1306
        %v1467 = vunpack.c.l.b16 %v1307
        %v1468 = vunpack.c.h.b16 %v1307
        %v1469 = vunpack.c.l.b16 %v1308
        %v1470 = vunpack.c.l.b16 %v1309
        %v1471 = vunpack.c.h.b16 %v1309
        %v1472 = vunpack.c.l.b16 %v1310
        %v1473 = vunpack.c.l.b16 %v1311
        %v1474 = vunpack.c.h.b16 %v1311
        %v1475 = vunpack.c.l.b16 %v1312
        %v1476 = vunpack.c.l.b16 %v1313
        %v1477 = vunpack.c.h.b16 %v1313
        %v1478 = vunpack.c.l.b16 %v1314
        %v1479 = vunpack.c.l.b16 %v1315
        %v1480 = vunpack.c.h.b16 %v1315
        %v1481 = vunpack.c.l.b16 %v1316
        %v1482 = vunpack.c.l.b16 %v1317
        %v1483 = vunpack.c.h.b16 %v1317
        %v1484 = vunpack.c.l.b16 %v1318
        %v1485 = vunpack.c.l.b16 %v1319
        %v1486 = vunpack.c.h.b16 %v1319
        %v1487 = vunpack.c.l.b16 %v1320
        %v1488 = vunpack.c.l.b16 %v1321
        %v1489 = vunpack.c.h.b16 %v1321
        %v1490 = vunpack.c.l.b16 %v1322
        %v1491 = vunpack.c.l.b16 %v1323
        %v1492 = vunpack.c.h.b16 %v1323
        %v1493 = vunpack.c.l.b16 %v1324
        %v1494 = vunpack.c.l.b16 %v1325
        %v1495 = vunpack.c.h.b16 %v1325
        %v1496 = vunpack.c.l.b16 %v1326
        %v1497 = vunpack.c.l.b16 %v1327
        %v1498 = vunpack.c.h.b16 %v1327
        %v1499 = vunpack.c.l.b16 %v1328
        %v1500 = vunpack.c.l.b16 %v1329
        %v1501 = vunpack.c.h.b16 %v1329
        %v1502 = vunpack.c.l.b16 %v1330
        %v1503 = vunpack.c.l.b16 %v1331
        %v1504 = vunpack.c.h.b16 %v1331
        %v1505 = vunpack.c.l.b16 %v1332
        %v1506 = vunpack.c.l.b16 %v1333
        %v1507 = vunpack.c.h.b16 %v1333
        %v1508 = vunpack.c.l.b16 %v1334
        %v1509 = vpack.c.b16 %v1416, %v1413
        %v1510 = vpack.c.b16 %v1417, %v1414
        %v1511 = vpack.c.b16 %v1418, %v1415
        %v1512 = vpack.c.b16 %v1422, %v1419
        %v1513 = vpack.c.b16 %v1423, %v1420
        %v1514 = vpack.c.b16 %v1424, %v1421
        %v1515 = vpack.c.b16 %v1428, %v1425
        %v1516 = vpack.c.b16 %v1429, %v1426
        %v1517 = vpack.c.b16 %v1430, %v1427
        %v1518 = vpack.c.b16 %v1434, %v1431
        %v1519 = vpack.c.b16 %v1435, %v1432
        %v1520 = vpack.c.b16 %v1436, %v1433
        %v1521 = vpack.c.b16 %v1440, %v1437
        %v1522 = vpack.c.b16 %v1441, %v1438
        %v1523 = vpack.c.b16 %v1442, %v1439
        %v1524 = vpack.c.b16 %v1446, %v1443
        %v1525 = vpack.c.b16 %v1447, %v1444
        %v1526 = vpack.c.b16 %v1448, %v1445
        %v1527 = vpack.c.b16 %v1452, %v1449
        %v1528 = vpack.c.b16 %v1453, %v1450
        %v1529 = vpack.c.b16 %v1454, %v1451
        %v1530 = vpack.c.b16 %v1458, %v1455
        %v1531 = vpack.c.b16 %v1459, %v1456
        %v1532 = vpack.c.b16 %v1460, %v1457
        %v1533 = vpack.c.b16 %v1464, %v1461
        %v1534 = vpack.c.b16 %v1465, %v1462
        %v1535 = vpack.c.b16 %v1466, %v1463
        %v1536 = vpack.c.b16 %v1470, %v1467
        %v1537 = vpack.c.b16 %v1471, %v1468
        %v1538 = vpack.c.b16 %v1472, %v1469
        %v1539 = vpack.c.b16 %v1476, %v1473
        %v1540 = vpack.c.b16 %v1477, %v1474
        %v1541 = vpack.c.b16 %v1478, %v1475
        %v1542 = vpack.c.b16 %v1482, %v1479
        %v1543 = vpack.c.b16 %v1483, %v1480
        %v1544 = vpack.c.b16 %v1484, %v1481
        %v1545 = vpack.c.b16 %v1488, %v1485
        %v1546 = vpack.c.b16 %v1489, %v1486
        %v1547 = vpack.c.b16 %v1490, %v1487
        %v1548 = vpack.c.b16 %v1494, %v1491
        %v1549 = vpack.c.b16 %v1495, %v1492
        %v1550 = vpack.c.b16 %v1496, %v1493
        %v1551 = vpack.c.b16 %v1500, %v1497
        %v1552 = vpack.c.b16 %v1501, %v1498
        %v1553 = vpack.c.b16 %v1502, %v1499
        %v1554 = vpack.c.b16 %v1506, %v1503
        %v1555 = vpack.c.b16 %v1507, %v1504
        %v1556 = vpack.c.b16 %v1508, %v1505
        %1605 = vmatpush.bf16.msra.mxu0 %v1530
        %1606 = vmatpush.bf16.msra.mxu0 %v1527
        %1607 = vmatpush.bf16.msra.mxu0 %v1524
        %1608 = vmatpush.bf16.msra.mxu0 %v1521
        %1609 = vmatpush.bf16.msra.mxu0 %v1518
        %1610 = vmatpush.bf16.msra.mxu0 %v1515
        %1611 = vmatpush.bf16.msra.mxu0 %v1512
        %1612 = vmatpush.bf16.msra.mxu0 %v1509
        %1613 = vmatmul.bf16.gmra.mxu0 %v1340
        %v1614 = vpop.f32.mrf.mxu0
        %v1615 = vadd.f32 %v1343, %v1614
        %v1616 = vpop.f32.mrf.mxu0
        %1617 = vdwg.mxu0
        %1618 = vmatpush.bf16.msra.mxu0 %v1554
        %1619 = vmatpush.bf16.msra.mxu0 %v1551
        %1620 = vmatpush.bf16.msra.mxu0 %v1548
        %1621 = vmatpush.bf16.msra.mxu0 %v1545
        %1622 = vmatpush.bf16.msra.mxu0 %v1542
        %1623 = vmatpush.bf16.msra.mxu0 %v1539
        %1624 = vmatpush.bf16.msra.mxu0 %v1536
        %1625 = vmatpush.bf16.msra.mxu0 %v1533
        %1626 = vmatmul.bf16.gmra.mxu0 %v1341
        %v1627 = vpop.f32.mrf.mxu0
        %v1628 = vadd.f32 %v1615, %v1627
        %v1629 = vpop.f32.mrf.mxu0
        %1630 = vdwg.mxu0
        %1631 = vmatpush.bf16.msra.mxu0 %v1531
        %1632 = vmatpush.bf16.msra.mxu0 %v1528
        %1633 = vmatpush.bf16.msra.mxu0 %v1525
        %1634 = vmatpush.bf16.msra.mxu0 %v1522
        %1635 = vmatpush.bf16.msra.mxu0 %v1519
        %1636 = vmatpush.bf16.msra.mxu0 %v1516
        %1637 = vmatpush.bf16.msra.mxu0 %v1513
        %1638 = vmatpush.bf16.msra.mxu0 %v1510
        %1639 = vmatmul.bf16.gmra.mxu0 %v1340
        %v1640 = vpop.f32.mrf.mxu0
        %v1641 = vadd.f32 %v1344, %v1640
        %v1642 = vpop.f32.mrf.mxu0
        %1643 = vdwg.mxu0
        %1644 = vmatpush.bf16.msra.mxu0 %v1555
        %1645 = vmatpush.bf16.msra.mxu0 %v1552
        %1646 = vmatpush.bf16.msra.mxu0 %v1549
        %1647 = vmatpush.bf16.msra.mxu0 %v1546
        %1648 = vmatpush.bf16.msra.mxu0 %v1543
        %1649 = vmatpush.bf16.msra.mxu0 %v1540
        %1650 = vmatpush.bf16.msra.mxu0 %v1537
        %1651 = vmatpush.bf16.msra.mxu0 %v1534
        %1652 = vmatmul.bf16.gmra.mxu0 %v1341
        %v1653 = vpop.f32.mrf.mxu0
        %v1654 = vadd.f32 %v1641, %v1653
        %v1655 = vpop.f32.mrf.mxu0
        %1656 = vdwg.mxu0
        %1657 = vmatpush.bf16.msra.mxu0 %v1532
        %1658 = vmatpush.bf16.msra.mxu0 %v1529
        %1659 = vmatpush.bf16.msra.mxu0 %v1526
        %1660 = vmatpush.bf16.msra.mxu0 %v1523
        %1661 = vmatpush.bf16.msra.mxu0 %v1520
        %1662 = vmatpush.bf16.msra.mxu0 %v1517
        %1663 = vmatpush.bf16.msra.mxu0 %v1514
        %1664 = vmatpush.bf16.msra.mxu0 %v1511
        %1665 = vmatmul.bf16.gmra.mxu0 %v1340
        %v1666 = vpop.f32.mrf.mxu0
        %v1667 = vadd.f32 %v1345, %v1666
        %v1668 = vpop.f32.mrf.mxu0
        %1669 = vdwg.mxu0
        %1670 = vmatpush.bf16.msra.mxu0 %v1556
        %1671 = vmatpush.bf16.msra.mxu0 %v1553
        %1672 = vmatpush.bf16.msra.mxu0 %v1550
        %1673 = vmatpush.bf16.msra.mxu0 %v1547
        %1674 = vmatpush.bf16.msra.mxu0 %v1544
        %1675 = vmatpush.bf16.msra.mxu0 %v1541
        %1676 = vmatpush.bf16.msra.mxu0 %v1538
        %1677 = vmatpush.bf16.msra.mxu0 %v1535
        %1678 = vmatmul.bf16.gmra.mxu0 %v1341
        %v1679 = vpop.f32.mrf.mxu0
        %v1680 = vadd.f32 %v1667, %v1679
        %v1681 = vpop.f32.mrf.mxu0
        %1682 = vdwg.mxu0
        %v1683 = vmax.f32 %v1628, 0.0
        %v1684 = vmax.f32 %v1654, 0.0
        %v1685 = vmax.f32 %v1680, 0.0
        %v1687 = vperm.slane %v1336, 0
        %v1688 = vperm.slane %v1336, 1
        %v1689 = vperm.slane %v1336, 2
        %v1693 = vmul.f32 %v1683, %v1687
        %v1694 = vmul.f32 %v1684, %v1688
        %v1695 = vmul.f32 %v1685, %v1689
        %v1696 = vadd.f32 %v1693, %v1694
        %v1697 = vadd.f32 %v1696, %v1695
        %1698 = vadd.xlane.f32.xlu0 %v1697
        %v1699 = vpop.xlane.xlu0 %1698
        %v1700 = vstv %s1337
        %v1701 = vadd.f32 %v1699, %v1700
        %v1702 = vxor.u32 %v1701, 2147483648
        %v1703 = vmul.f32 %v1702, 1.442695
        %v1704 = vpow.pop %v1703
        %v1705 = vadd.f32 %v1704, 1.0
        %v1706 = vrcp.pop %v1705
        %v1707 = vmul.f32 %v1705, %v1706
        %v1708 = vsub.f32 1.0, %v1707
        %v1709 = vmul.f32 %v1706, %v1708
        %v1710 = vadd.f32 %v1706, %v1709
        %vm1711 = vweird.f32 %v1705
        %vm1712 = vweird.f32 %v1706
        %vm1713 = vmor %vm1711, %vm1712
        %v1714 = vsel %vm1713, %v1706, %v1710
        %v1715 = vand.u32 2147483647, %v1705
        %vm1716 = vcmp.eq.f32.partialorder %v1715, 8.507059e+37
        %v1717 = vand.u32 %v1705, 2147483648
        %v1718 = vor.u32 1.1754944e-38, %v1717
        %v1719 = vsel %vm1716, %v1718, %v1714
        %v1720 = vmul.f32 1.0, %v1719
        %v1721 = vpack.c.bf16 %v1229, %v1229
        %v1722 = vpack.c.bf16 %v1268, %v1268
        %1723 = vmatpush.bf16.msra.mxu0 %v1530
        %1724 = vmatpush.bf16.msra.mxu0 %v1527
        %1725 = vmatpush.bf16.msra.mxu0 %v1524
        %1726 = vmatpush.bf16.msra.mxu0 %v1521
        %1727 = vmatpush.bf16.msra.mxu0 %v1518
        %1728 = vmatpush.bf16.msra.mxu0 %v1515
        %1729 = vmatpush.bf16.msra.mxu0 %v1512
        %1730 = vmatpush.bf16.msra.mxu0 %v1509
        %1731 = vmatmul.bf16.gmra.mxu0 %v1721
        %v1732 = vpop.f32.mrf.mxu0
        %v1733 = vadd.f32 %v1343, %v1732
        %v1734 = vpop.f32.mrf.mxu0
        %1735 = vdwg.mxu0
        %1736 = vmatpush.bf16.msra.mxu0 %v1554
        %1737 = vmatpush.bf16.msra.mxu0 %v1551
        %1738 = vmatpush.bf16.msra.mxu0 %v1548
        %1739 = vmatpush.bf16.msra.mxu0 %v1545
        %1740 = vmatpush.bf16.msra.mxu0 %v1542
        %1741 = vmatpush.bf16.msra.mxu0 %v1539
        %1742 = vmatpush.bf16.msra.mxu0 %v1536
        %1743 = vmatpush.bf16.msra.mxu0 %v1533
        %1744 = vmatmul.bf16.gmra.mxu0 %v1722
        %v1745 = vpop.f32.mrf.mxu0
        %v1746 = vadd.f32 %v1733, %v1745
        %v1747 = vpop.f32.mrf.mxu0
        %1748 = vdwg.mxu0
        %1749 = vmatpush.bf16.msra.mxu0 %v1531
        %1750 = vmatpush.bf16.msra.mxu0 %v1528
        %1751 = vmatpush.bf16.msra.mxu0 %v1525
        %1752 = vmatpush.bf16.msra.mxu0 %v1522
        %1753 = vmatpush.bf16.msra.mxu0 %v1519
        %1754 = vmatpush.bf16.msra.mxu0 %v1516
        %1755 = vmatpush.bf16.msra.mxu0 %v1513
        %1756 = vmatpush.bf16.msra.mxu0 %v1510
        %1757 = vmatmul.bf16.gmra.mxu0 %v1721
        %v1758 = vpop.f32.mrf.mxu0
        %v1759 = vadd.f32 %v1344, %v1758
        %v1760 = vpop.f32.mrf.mxu0
        %1761 = vdwg.mxu0
        %1762 = vmatpush.bf16.msra.mxu0 %v1555
        %1763 = vmatpush.bf16.msra.mxu0 %v1552
        %1764 = vmatpush.bf16.msra.mxu0 %v1549
        %1765 = vmatpush.bf16.msra.mxu0 %v1546
        %1766 = vmatpush.bf16.msra.mxu0 %v1543
        %1767 = vmatpush.bf16.msra.mxu0 %v1540
        %1768 = vmatpush.bf16.msra.mxu0 %v1537
        %1769 = vmatpush.bf16.msra.mxu0 %v1534
        %1770 = vmatmul.bf16.gmra.mxu0 %v1722
        %v1771 = vpop.f32.mrf.mxu0
        %v1772 = vadd.f32 %v1759, %v1771
        %v1773 = vpop.f32.mrf.mxu0
        %1774 = vdwg.mxu0
        %1775 = vmatpush.bf16.msra.mxu0 %v1532
        %1776 = vmatpush.bf16.msra.mxu0 %v1529
        %1777 = vmatpush.bf16.msra.mxu0 %v1526
        %1778 = vmatpush.bf16.msra.mxu0 %v1523
        %1779 = vmatpush.bf16.msra.mxu0 %v1520
        %1780 = vmatpush.bf16.msra.mxu0 %v1517
        %1781 = vmatpush.bf16.msra.mxu0 %v1514
        %1782 = vmatpush.bf16.msra.mxu0 %v1511
        %1783 = vmatmul.bf16.gmra.mxu0 %v1721
        %v1784 = vpop.f32.mrf.mxu0
        %v1785 = vadd.f32 %v1345, %v1784
        %v1786 = vpop.f32.mrf.mxu0
        %1787 = vdwg.mxu0
        %1788 = vmatpush.bf16.msra.mxu0 %v1556
        %1789 = vmatpush.bf16.msra.mxu0 %v1553
        %1790 = vmatpush.bf16.msra.mxu0 %v1550
        %1791 = vmatpush.bf16.msra.mxu0 %v1547
        %1792 = vmatpush.bf16.msra.mxu0 %v1544
        %1793 = vmatpush.bf16.msra.mxu0 %v1541
        %1794 = vmatpush.bf16.msra.mxu0 %v1538
        %1795 = vmatpush.bf16.msra.mxu0 %v1535
        %1796 = vmatmul.bf16.gmra.mxu0 %v1722
        %v1797 = vpop.f32.mrf.mxu0
        %v1798 = vadd.f32 %v1785, %v1797
        %v1799 = vpop.f32.mrf.mxu0
        %1800 = vdwg.mxu0
        %v1801 = vmax.f32 %v1746, 0.0
        %v1802 = vmax.f32 %v1772, 0.0
        %v1803 = vmax.f32 %v1798, 0.0
        %v1804 = vmul.f32 %v1801, %v1687
        %v1805 = vmul.f32 %v1802, %v1688
        %v1806 = vmul.f32 %v1803, %v1689
        %v1807 = vadd.f32 %v1804, %v1805
        %v1808 = vadd.f32 %v1807, %v1806
        %1809 = vadd.xlane.f32.xlu0 %v1808
        %v1810 = vpop.xlane.xlu0 %1809
        %v1811 = vadd.f32 %v1810, %v1700
        %v1812 = vxor.u32 %v1811, 2147483648
        %v1813 = vmul.f32 %v1812, 1.442695
        %v1814 = vpow.pop %v1813
        %v1815 = vadd.f32 %v1814, 1.0
        %v1816 = vrcp.pop %v1815
        %v1817 = vmul.f32 %v1815, %v1816
        %v1818 = vsub.f32 1.0, %v1817
        %v1819 = vmul.f32 %v1816, %v1818
        %v1820 = vadd.f32 %v1816, %v1819
        %vm1821 = vweird.f32 %v1815
        %vm1822 = vweird.f32 %v1816
        %vm1823 = vmor %vm1821, %vm1822
        %v1824 = vsel %vm1823, %v1816, %v1820
        %v1825 = vand.u32 2147483647, %v1815
        %vm1826 = vcmp.eq.f32.partialorder %v1825, 8.507059e+37
        %v1827 = vand.u32 %v1815, 2147483648
        %v1828 = vor.u32 1.1754944e-38, %v1827
        %v1829 = vsel %vm1826, %v1828, %v1824
        %v1830 = vmul.f32 1.0, %v1829
        %v1831 = vlaneseq
        %v1832 = vand.u32 %v1831, 127
        %vm1833 = vcmp.eq.s32.totalorder %v1832, 0
        %vm1834 = vcmp.eq.s32.totalorder %v1832, 1
        %v1835 = vsel %vm1834, %v1830, 0.0
        %v1836 = vsel %vm1833, %v1720, %v1835
        %1837 = vst [vmem:[%s482] sm:$0xff] %v1836
        %s1838 = sand.u32 %s261, 1
        %s1839 = scalar_lea.sflag [#allocation5], %s1838
        %s1840 = sand.u32 %s261, 1
        %s1841 = smul.addr %s1840, 8
        %s1842 = scalar_lea.vmem [#allocation14], %s1841
        // Predicated region
        $region85: #{tpu_custom_call.1} parent=59 // pred_check
          %p1843 = pneg %p271
        $region86: #{tpu_custom_call.1} parent=59 // pred_check_branch
          %1845 = sbr.rel (%p1843) target = $region88
        $region87: #{tpu_custom_call.1} parent=59 // pred_region
          %1847 = vsyncadd %s1839, 0
          %s1848 = smul.addr %s33, 8
          %s1849 = scalar_lea.hbm %s10, %s1848
          %s1851 = sshll.u32 %s1842, 4
          %s1852 = int_to_ptr.vmem [resolvable:$true] %s1851
          %s1853 = sshll.u32 %s1849, 4
          %s1854 = int_to_ptr.hbm [resolvable:$true] %s1853
          %1856 = dma.vmem_to_hbm [thread:$0]  %s1852, 128, %s1854, %s1839
        $region88: #{tpu_custom_call.1} parent=59 // pred_fallthru
          _
      $region60: #{tpu_custom_call.1} parent=5 // pred_fallthru
        _
      %p1857 = scmp.le.s32.totalorder 2, %s28
      // Predicated region
      $region89: #{tpu_custom_call.1} parent=5 // pred_check
        %p1858 = pneg %p1857
      $region90: #{tpu_custom_call.1} parent=5 // pred_check_branch
        %1860 = sbr.rel (%p1858) target = $region92
      $region91: #{tpu_custom_call.1} parent=5 // pred_region
        %s1861 = ssub.s32 %s28, 2
        // Predicated region
        $region93: #{tpu_custom_call.1} parent=91 // pred_check
          %p1862 = pneg %p277
        $region94: #{tpu_custom_call.1} parent=91 // pred_check_branch
          %1864 = sbr.rel (%p1862) target = $region96
        $region95: #{tpu_custom_call.1} parent=91 // pred_region
          %s1865 = sand.u32 %s262, 1
          %s1866 = scalar_lea.sflag [#allocation5], %s1865
          %s1867 = sand.u32 %s262, 1
          %s1868 = smul.addr %s1867, 8
          %s1869 = scalar_lea.vmem [#allocation14], %s1868
          %1871 = dma.done %s1866, 128
        $region96: #{tpu_custom_call.1} parent=91 // pred_fallthru
          _
      $region92: #{tpu_custom_call.1} parent=5 // pred_fallthru
        _
    $region6: #{tpu_custom_call.1} parent=1 // loop_footer
      %s32 = sadd.s32 1, %s28
    $region7: #{tpu_custom_call.1} parent=1 // loop_footer_branch
      %27 = sbr.rel target = $region3
    $region8: #{tpu_custom_call.1} parent=1 // loop_exit
      _
    %1872 = vsyncpa [#allocation4], 1
    %s1873 = scalar_lea.sflag [#allocation4], 1
    %1874 = vsyncpa %s1873, 1
    %1875 = vsyncpa [#allocation7], 1
    %s1876 = scalar_lea.sflag [#allocation7], 1
    %1877 = vsyncpa %s1876, 1
    %1878 = vsyncpa [#allocation10], 1
    %1879 = vsyncpa [#allocation13], 1
    %1880 = vsyncpa [#allocation5], 1
    %s1881 = scalar_lea.sflag [#allocation5], 1
    %1882 = vsyncpa %s1881, 1

</llo_original>
